<compile_context>
chip_gen: v7x
topology: tpu7x:2x2x1
jax: 0.10.0
libtpu: 0.0.40
codegen_flags: <defaults>
</compile_context>

<pallas_src>
import functools

import jax
import jax.numpy as jnp
from jax.experimental import pallas as pl
from jax.experimental.pallas import tpu as pltpu


# ---------------------------------------------------------------------------
# In-kernel helpers (all shapes static).
# ---------------------------------------------------------------------------
def _shift_h(a, dh):
    """result[h] = a[h + dh], zero fill outside [0, H).  Leading-axis shift."""
    if dh == 0:
        return a
    H = a.shape[0]
    pad = jnp.zeros((abs(dh),) + a.shape[1:], a.dtype)
    if dh > 0:
        return jnp.concatenate([a[dh:], pad], axis=0)
    return jnp.concatenate([pad, a[:H + dh]], axis=0)


def _shift_w(a, dw):
    """result[:, w] = a[:, w + dw], zero fill outside [0, W)."""
    if dw == 0:
        return a
    W = a.shape[1]
    pad = jnp.zeros((a.shape[0], abs(dw)) + a.shape[2:], a.dtype)
    if dw > 0:
        return jnp.concatenate([a[:, dw:], pad], axis=1)
    return jnp.concatenate([pad, a[:, :W + dw]], axis=1)


def _im2col_3x3(a):
    """(H, W, C) -> (H*W, 9*C) patches of a 3x3 / pad=1 conv.
    Column order: (kh*3 + kw)*C + c.  Only used on small-C (dim=4) tensors."""
    H, W, C = a.shape
    cols = []
    for kh in range(3):
        ah = _shift_h(a, kh - 1)
        for kw in range(3):
            cols.append(_shift_w(ah, kw - 1))
    return jnp.concatenate(cols, axis=-1).reshape(H * W, 9 * C)


def _rev_cummax(a, axis):
    """out[i] = max_{i' >= i} a[i'] along `axis`; log-step Hillis-Steele
    (4 whole-block maxes for extent 16), O(1) live values, no stack/gather."""
    n = a.shape[axis]
    s = 1
    while s < n:
        if axis == 0:
            pad = jnp.full((s,) + a.shape[1:], -jnp.inf, a.dtype)
            shifted = jnp.concatenate([a[s:], pad], axis=0)
        else:  # axis == 1
            pad = jnp.full((a.shape[0], s) + a.shape[2:], -jnp.inf, a.dtype)
            shifted = jnp.concatenate([a[:, s:], pad], axis=1)
        a = jnp.maximum(a, shifted)
        s *= 2
    return a


# ---------------------------------------------------------------------------
# Fused kernel: whole line_pool_tlbr forward for one batch element.
# ---------------------------------------------------------------------------
def _line_pool_tlbr_kernel(x_ref, w_br_ref, sb_br_ref, wp_ref, wc2_ref,
                           sb_sm_ref, o_ref, *, H, W, Cin, Cmid, Cout):
    f32, bf16 = jnp.float32, jnp.bfloat16

    x = x_ref[0]                                            # (H, W, Cin) f32

    # -- four 3x3 branch convs (dim -> 128) + the 1x1 conv1, as ONE matmul ----
    #    K = 9*Cin, N = 4*Cmid + Cout
    #    column order: [branch1 | branch3 | branch2 | branch4 | conv1(center tap)]
    patches = _im2col_3x3(x).astype(bf16)                   # (H*W, 9*Cin)
    y = jnp.dot(patches, w_br_ref[...], preferred_element_type=f32)
    y = y * sb_br_ref[0:1, :] + sb_br_ref[1:2, :]           # folded BN affine

    y_br = jnp.maximum(y[:, :4 * Cmid], 0.0)                # branch ReLUs only
    bn1 = y[:, 4 * Cmid:4 * Cmid + Cout]                    # conv1(1x1) + bn1

    bh = y_br[:, :2 * Cmid].reshape(H, W, 2 * Cmid)         # branches 1 & 3
    bw = y_br[:, 2 * Cmid:].reshape(H, W, 2 * Cmid)         # branches 2 & 4

    # -- pools: TopPool (H) on branches 1&3, LeftPool (W) on branches 2&4 -----
    ph = _rev_cummax(bh, axis=0)
    pw = _rev_cummax(bw, axis=1)
    p_concat = (ph[:, :, :Cmid] + ph[:, :, Cmid:] +
                pw[:, :, :Cmid] + pw[:, :, Cmid:])          # (H, W, Cmid) f32

    # -- p_conv1 (3x3, 128 -> dim) + p_bn1 -------------------------------------
    #    Taps grouped by kh: the 128-channel tensor only gets leading-axis (H)
    #    shifts; the per-kw combine happens on tiny (H, W, dim) tensors.
    pc = p_concat.astype(bf16)
    col_h = jnp.concatenate([_shift_h(pc, -1), pc, _shift_h(pc, 1)],
                            axis=-1).reshape(H * W, 3 * Cmid)
    t = jnp.dot(col_h, wp_ref[...], preferred_element_type=f32)   # (H*W, 3*Cout)
    t0 = t[:, 0 * Cout:1 * Cout].reshape(H, W, Cout)        # kw = 0 -> needs w-1
    t1 = t[:, 1 * Cout:2 * Cout].reshape(H, W, Cout)        # kw = 1
    t2 = t[:, 2 * Cout:3 * Cout].reshape(H, W, Cout)        # kw = 2 -> needs w+1
    p_conv = t1 + _shift_w(t0, -1) + _shift_w(t2, 1)
    p_bn1 = p_conv.reshape(H * W, Cout) * sb_sm_ref[0:1, :] + sb_sm_ref[1:2, :]

    relu1 = jnp.maximum(p_bn1 + bn1, 0.0)                   # (H*W, Cout)

    # -- conv2 (3x3 + BN + ReLU, dim -> dim) as one matmul ---------------------
    patches2 = _im2col_3x3(relu1.reshape(H, W, Cout)).astype(bf16)
    y2 = jnp.dot(patches2, wc2_ref[...], preferred_element_type=f32)
    y2 = jnp.maximum(y2 * sb_sm_ref[2:3, :] + sb_sm_ref[3:4, :], 0.0)

    o_ref[0] = y2.reshape(H, W, Cout).astype(o_ref.dtype)


def line_pool_tlbr_forward(x_nhwc, p):
    B, H, W, Cin = x_nhwc.shape
    Cout = p["wc2"].shape[1]
    Cmid = (p["w_br"].shape[1] - Cout) // 4
    kernel = functools.partial(_line_pool_tlbr_kernel,
                               H=H, W=W, Cin=Cin, Cmid=Cmid, Cout=Cout)

    def bcast(shape):  # whole-array block, same block idx every grid step -> DMA'd once
        return pl.BlockSpec(shape, lambda b: (0,) * len(shape))

    return pl.pallas_call(
        kernel,
        out_shape=jax.ShapeDtypeStruct((B, H, W, Cout), x_nhwc.dtype),
        grid=(B,),
        in_specs=[
            pl.BlockSpec((1, H, W, Cin), lambda b: (b, 0, 0, 0)),
            bcast(p["w_br"].shape),
            bcast(p["sb_br"].shape),
            bcast(p["wp"].shape),
            bcast(p["wc2"].shape),
            bcast(p["sb_sm"].shape),
        ],
        out_specs=pl.BlockSpec((1, H, W, Cout), lambda b: (b, 0, 0, 0)),
        compiler_params=pltpu.CompilerParams(dimension_semantics=("parallel",)),
    )(x_nhwc, p["w_br"], p["sb_br"], p["wp"], p["wc2"], p["sb_sm"])


# ---------------------------------------------------------------------------
# Parameter init (deterministic, synthetic) + packing for the fused kernel.
# ---------------------------------------------------------------------------
def _bn_fold(key, c, eps=1e-5):
    k1, k2, k3, k4 = jax.random.split(key, 4)
    gamma = 1.0 + 0.1 * jax.random.normal(k1, (c,), jnp.float32)
    beta = 0.1 * jax.random.normal(k2, (c,), jnp.float32)
    mean = 0.1 * jax.random.normal(k3, (c,), jnp.float32)
    var = 0.5 + jax.random.uniform(k4, (c,), jnp.float32)
    scale = gamma / jnp.sqrt(var + eps)
    bias = beta - mean * scale
    return scale, bias


def _conv_w(key, cout, cin, k):
    # bf16-representable f32 weights so the kernel's bf16 copy is exact
    w = 0.05 * jax.random.normal(key, (cout, cin, k, k), jnp.float32)
    return w.astype(jnp.bfloat16).astype(jnp.float32)


def _pack_taps(w_oihw):
    # OIHW -> ((kh*3+kw)*Cin + cin, cout)   [matches _im2col_3x3 column order]
    cout, cin = w_oihw.shape[:2]
    return jnp.transpose(w_oihw, (2, 3, 1, 0)).reshape(9 * cin, cout)


def _pack_kh_major(w_oihw):
    # OIHW -> (kh*Cin + cin, kw*Cout + cout)   [for the kh-grouped p_conv1 dot]
    cout, cin = w_oihw.shape[:2]
    return jnp.transpose(w_oihw, (2, 1, 3, 0)).reshape(3 * cin, 3 * cout)


def init_line_pool_tlbr_params(key, dim, mid=128):
    ks = jax.random.split(key, 14)
    w1, w2, w3, w4 = (_conv_w(ks[i], mid, dim, 3) for i in range(4))
    s1, b1 = _bn_fold(ks[4], mid)
    s2, b2 = _bn_fold(ks[5], mid)
    s3, b3 = _bn_fold(ks[6], mid)
    s4, b4 = _bn_fold(ks[7], mid)
    wp = _conv_w(ks[8], dim, mid, 3)      # p_conv1 (128 -> dim)
    ps, pb = _bn_fold(ks[9], dim)         # p_bn1
    wc1 = _conv_w(ks[10], dim, dim, 1)    # conv1 (1x1)
    c1s, c1b = _bn_fold(ks[11], dim)      # bn1
    wc2 = _conv_w(ks[12], dim, dim, 3)    # conv2.conv
    c2s, c2b = _bn_fold(ks[13], dim)      # conv2.bn

    # Fuse the 1x1 conv1 into the branch matmul: 4 extra output columns that
    # read only the center tap (kh=kw=1) of the 3x3 im2col patches.
    wc1_in_out = jnp.transpose(wc1.reshape(dim, dim), (1, 0))     # (cin, cout)
    wc1_cols = jnp.zeros((9 * dim, dim), jnp.float32)
    wc1_cols = wc1_cols.at[4 * dim:5 * dim, :].set(wc1_in_out)    # center tap rows

    packed = {
        # branch column order [1, 3 | 2, 4 | conv1]:
        # H-pooled branches first, W-pooled second, 1x1-conv columns last
        "w_br": jnp.concatenate([_pack_taps(w1), _pack_taps(w3),
                                 _pack_taps(w2), _pack_taps(w4),
                                 wc1_cols], axis=1).astype(jnp.bfloat16),
        "sb_br": jnp.stack([jnp.concatenate([s1, s3, s2, s4, c1s]),
                            jnp.concatenate([b1, b3, b2, b4, c1b])], axis=0),
        "wp": _pack_kh_major(wp).astype(jnp.bfloat16),
        "wc2": _pack_taps(wc2).astype(jnp.bfloat16),
        "sb_sm": jnp.stack([ps, pb, c2s, c2b], axis=0),           # (4, dim)
    }
    ref = dict(w1=w1, w2=w2, w3=w3, w4=w4, s1=s1, b1=b1, s2=s2, b2=b2,
               s3=s3, b3=b3, s4=s4, b4=b4, wp=wp, ps=ps, pb=pb,
               wc1=wc1, c1s=c1s, c1b=c1b, wc2=wc2, c2s=c2s, c2b=c2b)
    return packed, ref


# ---------------------------------------------------------------------------
# Pure-JAX reference (f32) for a numerical sanity check.
# ---------------------------------------------------------------------------
def _ref_conv3x3_bn(x, w_oihw, scale, bias, relu):
    w_hwio = jnp.transpose(w_oihw, (2, 3, 1, 0))
    y = jax.lax.conv_general_dilated(
        x, w_hwio, window_strides=(1, 1), padding="SAME",
        dimension_numbers=("NHWC", "HWIO", "NHWC"))
    y = y * scale + bias
    return jnp.maximum(y, 0.0) if relu else y


def line_pool_tlbr_reference(x, r):
    top = lambda a: jax.lax.cummax(a, axis=1, reverse=True)    # pool1 / pool3
    left = lambda a: jax.lax.cummax(a, axis=2, reverse=True)   # pool2 / pool4
    p1 = _ref_conv3x3_bn(x, r["w1"], r["s1"], r["b1"], True)
    p2 = _ref_conv3x3_bn(x, r["w2"], r["s2"], r["b2"], True)
    p3 = _ref_conv3x3_bn(x, r["w3"], r["s3"], r["b3"], True)
    p4 = _ref_conv3x3_bn(x, r["w4"], r["s4"], r["b4"], True)
    p_concat = top(p1) + left(p2) + top(p3) + left(p4)
    p_bn1 = _ref_conv3x3_bn(p_concat, r["wp"], r["ps"], r["pb"], False)
    bn1 = jnp.einsum("bhwi,oi->bhwo", x, r["wc1"][:, :, 0, 0]) * r["c1s"] + r["c1b"]
    relu1 = jnp.maximum(p_bn1 + bn1, 0.0)
    return _ref_conv3x3_bn(relu1, r["wc2"], r["c2s"], r["c2b"], True)


if __name__ == "__main__":
    key = jax.random.PRNGKey(0)
    kx, kp = jax.random.split(key)

    B, dim, H, W = 2, 4, 16, 16
    x_nchw = jax.random.normal(kx, (B, dim, H, W), jnp.float32)   # PyTorch layout
    x_nhwc = jnp.transpose(x_nchw, (0, 2, 3, 1))                  # kernel layout

    packed, ref_params = init_line_pool_tlbr_params(kp, dim)

    out_nhwc = line_pool_tlbr_forward(x_nhwc, packed)
    jax.block_until_ready(out_nhwc)
    out_nchw = jnp.transpose(out_nhwc, (0, 3, 1, 2))              # back to NCHW

    assert out_nchw.shape == (B, dim, H, W)

    # Sanity check vs a pure-JAX f32 reference (kernel uses bf16 MXU operands).
    ref_nchw = jnp.transpose(line_pool_tlbr_reference(x_nhwc, ref_params),
                             (0, 3, 1, 2))
    max_err = float(jnp.max(jnp.abs(out_nchw - ref_nchw)))
    assert max_err < 0.1, f"max abs error vs reference: {max_err}"

    print("KERNEL_OK")
</pallas_src>

<mosaic_0001>
module attributes {stable_mosaic.version = 11 : i64} {
  func.func @_line_pool_tlbr_kernel(%arg0: i32, %arg1: memref<1x16x16x4xf32, #tpu.memory_space<vmem>>, %arg2: memref<36x516xbf16, #tpu.memory_space<vmem>>, %arg3: memref<2x516xf32, #tpu.memory_space<vmem>>, %arg4: memref<384x12xbf16, #tpu.memory_space<vmem>>, %arg5: memref<36x4xbf16, #tpu.memory_space<vmem>>, %arg6: memref<4x4xf32, #tpu.memory_space<vmem>>, %arg7: memref<1x16x16x4xf32, #tpu.memory_space<vmem>>) attributes {dimension_semantics = [#tpu.dimension_semantics<parallel>], iteration_bounds = array<i64: 2>, scalar_prefetch = 0 : i64, scratch_operands = 0 : i64, tpu.core_type = #tpu.core_type<tc>, window_params = [{transform_indices = @transform_0, window_bounds = array<i64: 1, 16, 16, 4>}, {pipeline_mode = #tpu.pipeline_mode<synchronous>, transform_indices = @transform_1, window_bounds = array<i64: 36, 516>}, {pipeline_mode = #tpu.pipeline_mode<synchronous>, transform_indices = @transform_2, window_bounds = array<i64: 2, 516>}, {pipeline_mode = #tpu.pipeline_mode<synchronous>, transform_indices = @transform_3, window_bounds = array<i64: 384, 12>}, {pipeline_mode = #tpu.pipeline_mode<synchronous>, transform_indices = @transform_4, window_bounds = array<i64: 36, 4>}, {pipeline_mode = #tpu.pipeline_mode<synchronous>, transform_indices = @transform_5, window_bounds = array<i64: 4, 4>}, {transform_indices = @transform_6, window_bounds = array<i64: 1, 16, 16, 4>}]} {
    %c0 = arith.constant 0 : index
    %c0_0 = arith.constant 0 : index
    %c0_1 = arith.constant 0 : index
    %c0_2 = arith.constant 0 : index
    %0 = vector.load %arg1[%c0, %c0_0, %c0_1, %c0_2] : memref<1x16x16x4xf32, #tpu.memory_space<vmem>>, vector<1x16x16x4xf32>
    %1 = vector.shape_cast %0 : vector<1x16x16x4xf32> to vector<16x16x4xf32>
    %cst = arith.constant 0.000000e+00 : f32
    %2 = vector.broadcast %cst : f32 to vector<1x16x4xf32>
    %3 = vector.extract_strided_slice %1 {offsets = [0, 0, 0], sizes = [15, 16, 4], strides = [1, 1, 1]} : vector<16x16x4xf32> to vector<15x16x4xf32>
    %4 = tpu.concatenate %2, %3 in 0 : vector<1x16x4xf32>, vector<15x16x4xf32> -> vector<16x16x4xf32>
    %cst_3 = arith.constant 0.000000e+00 : f32
    %5 = vector.broadcast %cst_3 : f32 to vector<16x1x4xf32>
    %6 = vector.extract_strided_slice %4 {offsets = [0, 0, 0], sizes = [16, 15, 4], strides = [1, 1, 1]} : vector<16x16x4xf32> to vector<16x15x4xf32>
    %7 = tpu.concatenate %5, %6 in 1 : vector<16x1x4xf32>, vector<16x15x4xf32> -> vector<16x16x4xf32>
    %cst_4 = arith.constant 0.000000e+00 : f32
    %8 = vector.broadcast %cst_4 : f32 to vector<16x1x4xf32>
    %9 = vector.extract_strided_slice %4 {offsets = [0, 1, 0], sizes = [16, 15, 4], strides = [1, 1, 1]} : vector<16x16x4xf32> to vector<16x15x4xf32>
    %10 = tpu.concatenate %9, %8 in 1 : vector<16x15x4xf32>, vector<16x1x4xf32> -> vector<16x16x4xf32>
    %cst_5 = arith.constant 0.000000e+00 : f32
    %11 = vector.broadcast %cst_5 : f32 to vector<16x1x4xf32>
    %12 = vector.extract_strided_slice %1 {offsets = [0, 0, 0], sizes = [16, 15, 4], strides = [1, 1, 1]} : vector<16x16x4xf32> to vector<16x15x4xf32>
    %13 = tpu.concatenate %11, %12 in 1 : vector<16x1x4xf32>, vector<16x15x4xf32> -> vector<16x16x4xf32>
    %cst_6 = arith.constant 0.000000e+00 : f32
    %14 = vector.broadcast %cst_6 : f32 to vector<16x1x4xf32>
    %15 = vector.extract_strided_slice %1 {offsets = [0, 1, 0], sizes = [16, 15, 4], strides = [1, 1, 1]} : vector<16x16x4xf32> to vector<16x15x4xf32>
    %16 = tpu.concatenate %15, %14 in 1 : vector<16x15x4xf32>, vector<16x1x4xf32> -> vector<16x16x4xf32>
    %cst_7 = arith.constant 0.000000e+00 : f32
    %17 = vector.broadcast %cst_7 : f32 to vector<1x16x4xf32>
    %18 = vector.extract_strided_slice %1 {offsets = [1, 0, 0], sizes = [15, 16, 4], strides = [1, 1, 1]} : vector<16x16x4xf32> to vector<15x16x4xf32>
    %19 = tpu.concatenate %18, %17 in 0 : vector<15x16x4xf32>, vector<1x16x4xf32> -> vector<16x16x4xf32>
    %cst_8 = arith.constant 0.000000e+00 : f32
    %20 = vector.broadcast %cst_8 : f32 to vector<16x1x4xf32>
    %21 = vector.extract_strided_slice %19 {offsets = [0, 0, 0], sizes = [16, 15, 4], strides = [1, 1, 1]} : vector<16x16x4xf32> to vector<16x15x4xf32>
    %22 = tpu.concatenate %20, %21 in 1 : vector<16x1x4xf32>, vector<16x15x4xf32> -> vector<16x16x4xf32>
    %cst_9 = arith.constant 0.000000e+00 : f32
    %23 = vector.broadcast %cst_9 : f32 to vector<16x1x4xf32>
    %24 = vector.extract_strided_slice %19 {offsets = [0, 1, 0], sizes = [16, 15, 4], strides = [1, 1, 1]} : vector<16x16x4xf32> to vector<16x15x4xf32>
    %25 = tpu.concatenate %24, %23 in 1 : vector<16x15x4xf32>, vector<16x1x4xf32> -> vector<16x16x4xf32>
    %26 = tpu.concatenate %7, %4, %10, %13, %1, %16, %22, %19, %25 in 2 : vector<16x16x4xf32>, vector<16x16x4xf32>, vector<16x16x4xf32>, vector<16x16x4xf32>, vector<16x16x4xf32>, vector<16x16x4xf32>, vector<16x16x4xf32>, vector<16x16x4xf32>, vector<16x16x4xf32> -> vector<16x16x36xf32>
    %27 = vector.shape_cast %26 : vector<16x16x36xf32> to vector<256x36xf32>
    %28 = arith.truncf %27 : vector<256x36xf32> to vector<256x36xbf16>
    %c0_10 = arith.constant 0 : index
    %c0_11 = arith.constant 0 : index
    %29 = vector.load %arg2[%c0_10, %c0_11] : memref<36x516xbf16, #tpu.memory_space<vmem>>, vector<36x516xbf16>
    %cst_12 = arith.constant dense<0.000000e+00> : vector<256x516xf32>
    %30 = tpu.matmul %28, %29, %cst_12 {dimension_numbers = #tpu.dot_dimension_numbers<[1], [0], [0], [1], [0, 0, 1, 1], [], []>} : vector<256x36xbf16>, vector<36x516xbf16>, vector<256x516xf32> -> vector<256x516xf32>
    %c0_13 = arith.constant 0 : index
    %c0_14 = arith.constant 0 : index
    %31 = vector.load %arg3[%c0_13, %c0_14] : memref<2x516xf32, #tpu.memory_space<vmem>>, vector<1x516xf32>
    %32 = vector.broadcast %31 : vector<1x516xf32> to vector<256x516xf32>
    %33 = arith.mulf %30, %32 : vector<256x516xf32>
    %c1 = arith.constant 1 : index
    %c0_15 = arith.constant 0 : index
    %34 = vector.load %arg3[%c1, %c0_15] : memref<2x516xf32, #tpu.memory_space<vmem>>, vector<1x516xf32>
    %35 = vector.broadcast %34 : vector<1x516xf32> to vector<256x516xf32>
    %36 = arith.addf %33, %35 : vector<256x516xf32>
    %37 = vector.extract_strided_slice %36 {offsets = [0, 0], sizes = [256, 512], strides = [1, 1]} : vector<256x516xf32> to vector<256x512xf32>
    %cst_16 = arith.constant 0.000000e+00 : f32
    %38 = vector.broadcast %cst_16 : f32 to vector<256x512xf32>
    %39 = arith.maximumf %37, %38 : vector<256x512xf32>
    %40 = vector.extract_strided_slice %36 {offsets = [0, 512], sizes = [256, 4], strides = [1, 1]} : vector<256x516xf32> to vector<256x4xf32>
    %41 = vector.extract_strided_slice %39 {offsets = [0, 0], sizes = [256, 256], strides = [1, 1]} : vector<256x512xf32> to vector<256x256xf32>
    %42 = vector.shape_cast %41 : vector<256x256xf32> to vector<16x16x256xf32>
    %43 = vector.extract_strided_slice %39 {offsets = [0, 256], sizes = [256, 256], strides = [1, 1]} : vector<256x512xf32> to vector<256x256xf32>
    %44 = vector.shape_cast %43 : vector<256x256xf32> to vector<16x16x256xf32>
    %cst_17 = arith.constant 0xFF800000 : f32
    %45 = vector.broadcast %cst_17 : f32 to vector<1x16x256xf32>
    %46 = vector.extract_strided_slice %42 {offsets = [1, 0, 0], sizes = [15, 16, 256], strides = [1, 1, 1]} : vector<16x16x256xf32> to vector<15x16x256xf32>
    %47 = tpu.concatenate %46, %45 in 0 : vector<15x16x256xf32>, vector<1x16x256xf32> -> vector<16x16x256xf32>
    %48 = arith.maximumf %42, %47 : vector<16x16x256xf32>
    %cst_18 = arith.constant 0xFF800000 : f32
    %49 = vector.broadcast %cst_18 : f32 to vector<2x16x256xf32>
    %50 = vector.extract_strided_slice %48 {offsets = [2, 0, 0], sizes = [14, 16, 256], strides = [1, 1, 1]} : vector<16x16x256xf32> to vector<14x16x256xf32>
    %51 = tpu.concatenate %50, %49 in 0 : vector<14x16x256xf32>, vector<2x16x256xf32> -> vector<16x16x256xf32>
    %52 = arith.maximumf %48, %51 : vector<16x16x256xf32>
    %cst_19 = arith.constant 0xFF800000 : f32
    %53 = vector.broadcast %cst_19 : f32 to vector<4x16x256xf32>
    %54 = vector.extract_strided_slice %52 {offsets = [4, 0, 0], sizes = [12, 16, 256], strides = [1, 1, 1]} : vector<16x16x256xf32> to vector<12x16x256xf32>
    %55 = tpu.concatenate %54, %53 in 0 : vector<12x16x256xf32>, vector<4x16x256xf32> -> vector<16x16x256xf32>
    %56 = arith.maximumf %52, %55 : vector<16x16x256xf32>
    %cst_20 = arith.constant 0xFF800000 : f32
    %57 = vector.broadcast %cst_20 : f32 to vector<8x16x256xf32>
    %58 = vector.extract_strided_slice %56 {offsets = [8, 0, 0], sizes = [8, 16, 256], strides = [1, 1, 1]} : vector<16x16x256xf32> to vector<8x16x256xf32>
    %59 = tpu.concatenate %58, %57 in 0 : vector<8x16x256xf32>, vector<8x16x256xf32> -> vector<16x16x256xf32>
    %60 = arith.maximumf %56, %59 : vector<16x16x256xf32>
    %cst_21 = arith.constant 0xFF800000 : f32
    %61 = vector.broadcast %cst_21 : f32 to vector<16x1x256xf32>
    %62 = vector.extract_strided_slice %44 {offsets = [0, 1, 0], sizes = [16, 15, 256], strides = [1, 1, 1]} : vector<16x16x256xf32> to vector<16x15x256xf32>
    %63 = tpu.concatenate %62, %61 in 1 : vector<16x15x256xf32>, vector<16x1x256xf32> -> vector<16x16x256xf32>
    %64 = arith.maximumf %44, %63 : vector<16x16x256xf32>
    %cst_22 = arith.constant 0xFF800000 : f32
    %65 = vector.broadcast %cst_22 : f32 to vector<16x2x256xf32>
    %66 = vector.extract_strided_slice %64 {offsets = [0, 2, 0], sizes = [16, 14, 256], strides = [1, 1, 1]} : vector<16x16x256xf32> to vector<16x14x256xf32>
    %67 = tpu.concatenate %66, %65 in 1 : vector<16x14x256xf32>, vector<16x2x256xf32> -> vector<16x16x256xf32>
    %68 = arith.maximumf %64, %67 : vector<16x16x256xf32>
    %cst_23 = arith.constant 0xFF800000 : f32
    %69 = vector.broadcast %cst_23 : f32 to vector<16x4x256xf32>
    %70 = vector.extract_strided_slice %68 {offsets = [0, 4, 0], sizes = [16, 12, 256], strides = [1, 1, 1]} : vector<16x16x256xf32> to vector<16x12x256xf32>
    %71 = tpu.concatenate %70, %69 in 1 : vector<16x12x256xf32>, vector<16x4x256xf32> -> vector<16x16x256xf32>
    %72 = arith.maximumf %68, %71 : vector<16x16x256xf32>
    %cst_24 = arith.constant 0xFF800000 : f32
    %73 = vector.broadcast %cst_24 : f32 to vector<16x8x256xf32>
    %74 = vector.extract_strided_slice %72 {offsets = [0, 8, 0], sizes = [16, 8, 256], strides = [1, 1, 1]} : vector<16x16x256xf32> to vector<16x8x256xf32>
    %75 = tpu.concatenate %74, %73 in 1 : vector<16x8x256xf32>, vector<16x8x256xf32> -> vector<16x16x256xf32>
    %76 = arith.maximumf %72, %75 : vector<16x16x256xf32>
    %77 = vector.extract_strided_slice %60 {offsets = [0, 0, 0], sizes = [16, 16, 128], strides = [1, 1, 1]} : vector<16x16x256xf32> to vector<16x16x128xf32>
    %78 = vector.extract_strided_slice %60 {offsets = [0, 0, 128], sizes = [16, 16, 128], strides = [1, 1, 1]} : vector<16x16x256xf32> to vector<16x16x128xf32>
    %79 = arith.addf %77, %78 : vector<16x16x128xf32>
    %80 = vector.extract_strided_slice %76 {offsets = [0, 0, 0], sizes = [16, 16, 128], strides = [1, 1, 1]} : vector<16x16x256xf32> to vector<16x16x128xf32>
    %81 = arith.addf %79, %80 : vector<16x16x128xf32>
    %82 = vector.extract_strided_slice %76 {offsets = [0, 0, 128], sizes = [16, 16, 128], strides = [1, 1, 1]} : vector<16x16x256xf32> to vector<16x16x128xf32>
    %83 = arith.addf %81, %82 : vector<16x16x128xf32>
    %84 = arith.truncf %83 : vector<16x16x128xf32> to vector<16x16x128xbf16>
    %cst_25 = arith.constant 0.000000e+00 : bf16
    %85 = vector.broadcast %cst_25 : bf16 to vector<1x16x128xbf16>
    %86 = vector.extract_strided_slice %84 {offsets = [0, 0, 0], sizes = [15, 16, 128], strides = [1, 1, 1]} : vector<16x16x128xbf16> to vector<15x16x128xbf16>
    %87 = tpu.concatenate %85, %86 in 0 : vector<1x16x128xbf16>, vector<15x16x128xbf16> -> vector<16x16x128xbf16>
    %cst_26 = arith.constant 0.000000e+00 : bf16
    %88 = vector.broadcast %cst_26 : bf16 to vector<1x16x128xbf16>
    %89 = vector.extract_strided_slice %84 {offsets = [1, 0, 0], sizes = [15, 16, 128], strides = [1, 1, 1]} : vector<16x16x128xbf16> to vector<15x16x128xbf16>
    %90 = tpu.concatenate %89, %88 in 0 : vector<15x16x128xbf16>, vector<1x16x128xbf16> -> vector<16x16x128xbf16>
    %91 = tpu.concatenate %87, %84, %90 in 2 : vector<16x16x128xbf16>, vector<16x16x128xbf16>, vector<16x16x128xbf16> -> vector<16x16x384xbf16>
    %92 = vector.shape_cast %91 : vector<16x16x384xbf16> to vector<256x384xbf16>
    %c0_27 = arith.constant 0 : index
    %c0_28 = arith.constant 0 : index
    %93 = vector.load %arg4[%c0_27, %c0_28] : memref<384x12xbf16, #tpu.memory_space<vmem>>, vector<384x12xbf16>
    %cst_29 = arith.constant dense<0.000000e+00> : vector<256x12xf32>
    %94 = tpu.matmul %92, %93, %cst_29 {dimension_numbers = #tpu.dot_dimension_numbers<[1], [0], [0], [1], [0, 0, 1, 1], [], []>} : vector<256x384xbf16>, vector<384x12xbf16>, vector<256x12xf32> -> vector<256x12xf32>
    %95 = vector.extract_strided_slice %94 {offsets = [0, 0], sizes = [256, 4], strides = [1, 1]} : vector<256x12xf32> to vector<256x4xf32>
    %96 = vector.shape_cast %95 : vector<256x4xf32> to vector<16x16x4xf32>
    %97 = vector.extract_strided_slice %94 {offsets = [0, 4], sizes = [256, 4], strides = [1, 1]} : vector<256x12xf32> to vector<256x4xf32>
    %98 = vector.shape_cast %97 : vector<256x4xf32> to vector<16x16x4xf32>
    %99 = vector.extract_strided_slice %94 {offsets = [0, 8], sizes = [256, 4], strides = [1, 1]} : vector<256x12xf32> to vector<256x4xf32>
    %100 = vector.shape_cast %99 : vector<256x4xf32> to vector<16x16x4xf32>
    %cst_30 = arith.constant 0.000000e+00 : f32
    %101 = vector.broadcast %cst_30 : f32 to vector<16x1x4xf32>
    %102 = vector.extract_strided_slice %96 {offsets = [0, 0, 0], sizes = [16, 15, 4], strides = [1, 1, 1]} : vector<16x16x4xf32> to vector<16x15x4xf32>
    %103 = tpu.concatenate %101, %102 in 1 : vector<16x1x4xf32>, vector<16x15x4xf32> -> vector<16x16x4xf32>
    %104 = arith.addf %98, %103 : vector<16x16x4xf32>
    %cst_31 = arith.constant 0.000000e+00 : f32
    %105 = vector.broadcast %cst_31 : f32 to vector<16x1x4xf32>
    %106 = vector.extract_strided_slice %100 {offsets = [0, 1, 0], sizes = [16, 15, 4], strides = [1, 1, 1]} : vector<16x16x4xf32> to vector<16x15x4xf32>
    %107 = tpu.concatenate %106, %105 in 1 : vector<16x15x4xf32>, vector<16x1x4xf32> -> vector<16x16x4xf32>
    %108 = arith.addf %104, %107 : vector<16x16x4xf32>
    %109 = vector.shape_cast %108 : vector<16x16x4xf32> to vector<256x4xf32>
    %c0_32 = arith.constant 0 : index
    %c0_33 = arith.constant 0 : index
    %110 = vector.load %arg6[%c0_32, %c0_33] : memref<4x4xf32, #tpu.memory_space<vmem>>, vector<1x4xf32>
    %111 = vector.broadcast %110 : vector<1x4xf32> to vector<256x4xf32>
    %112 = arith.mulf %109, %111 : vector<256x4xf32>
    %c1_34 = arith.constant 1 : index
    %c0_35 = arith.constant 0 : index
    %113 = vector.load %arg6[%c1_34, %c0_35] : memref<4x4xf32, #tpu.memory_space<vmem>>, vector<1x4xf32>
    %114 = vector.broadcast %113 : vector<1x4xf32> to vector<256x4xf32>
    %115 = arith.addf %112, %114 : vector<256x4xf32>
    %116 = arith.addf %115, %40 : vector<256x4xf32>
    %cst_36 = arith.constant 0.000000e+00 : f32
    %117 = vector.broadcast %cst_36 : f32 to vector<256x4xf32>
    %118 = arith.maximumf %116, %117 : vector<256x4xf32>
    %119 = vector.shape_cast %118 : vector<256x4xf32> to vector<16x16x4xf32>
    %cst_37 = arith.constant 0.000000e+00 : f32
    %120 = vector.broadcast %cst_37 : f32 to vector<1x16x4xf32>
    %121 = vector.extract_strided_slice %119 {offsets = [0, 0, 0], sizes = [15, 16, 4], strides = [1, 1, 1]} : vector<16x16x4xf32> to vector<15x16x4xf32>
    %122 = tpu.concatenate %120, %121 in 0 : vector<1x16x4xf32>, vector<15x16x4xf32> -> vector<16x16x4xf32>
    %cst_38 = arith.constant 0.000000e+00 : f32
    %123 = vector.broadcast %cst_38 : f32 to vector<16x1x4xf32>
    %124 = vector.extract_strided_slice %122 {offsets = [0, 0, 0], sizes = [16, 15, 4], strides = [1, 1, 1]} : vector<16x16x4xf32> to vector<16x15x4xf32>
    %125 = tpu.concatenate %123, %124 in 1 : vector<16x1x4xf32>, vector<16x15x4xf32> -> vector<16x16x4xf32>
    %cst_39 = arith.constant 0.000000e+00 : f32
    %126 = vector.broadcast %cst_39 : f32 to vector<16x1x4xf32>
    %127 = vector.extract_strided_slice %122 {offsets = [0, 1, 0], sizes = [16, 15, 4], strides = [1, 1, 1]} : vector<16x16x4xf32> to vector<16x15x4xf32>
    %128 = tpu.concatenate %127, %126 in 1 : vector<16x15x4xf32>, vector<16x1x4xf32> -> vector<16x16x4xf32>
    %cst_40 = arith.constant 0.000000e+00 : f32
    %129 = vector.broadcast %cst_40 : f32 to vector<16x1x4xf32>
    %130 = vector.extract_strided_slice %119 {offsets = [0, 0, 0], sizes = [16, 15, 4], strides = [1, 1, 1]} : vector<16x16x4xf32> to vector<16x15x4xf32>
    %131 = tpu.concatenate %129, %130 in 1 : vector<16x1x4xf32>, vector<16x15x4xf32> -> vector<16x16x4xf32>
    %cst_41 = arith.constant 0.000000e+00 : f32
    %132 = vector.broadcast %cst_41 : f32 to vector<16x1x4xf32>
    %133 = vector.extract_strided_slice %119 {offsets = [0, 1, 0], sizes = [16, 15, 4], strides = [1, 1, 1]} : vector<16x16x4xf32> to vector<16x15x4xf32>
    %134 = tpu.concatenate %133, %132 in 1 : vector<16x15x4xf32>, vector<16x1x4xf32> -> vector<16x16x4xf32>
    %cst_42 = arith.constant 0.000000e+00 : f32
    %135 = vector.broadcast %cst_42 : f32 to vector<1x16x4xf32>
    %136 = vector.extract_strided_slice %119 {offsets = [1, 0, 0], sizes = [15, 16, 4], strides = [1, 1, 1]} : vector<16x16x4xf32> to vector<15x16x4xf32>
    %137 = tpu.concatenate %136, %135 in 0 : vector<15x16x4xf32>, vector<1x16x4xf32> -> vector<16x16x4xf32>
    %cst_43 = arith.constant 0.000000e+00 : f32
    %138 = vector.broadcast %cst_43 : f32 to vector<16x1x4xf32>
    %139 = vector.extract_strided_slice %137 {offsets = [0, 0, 0], sizes = [16, 15, 4], strides = [1, 1, 1]} : vector<16x16x4xf32> to vector<16x15x4xf32>
    %140 = tpu.concatenate %138, %139 in 1 : vector<16x1x4xf32>, vector<16x15x4xf32> -> vector<16x16x4xf32>
    %cst_44 = arith.constant 0.000000e+00 : f32
    %141 = vector.broadcast %cst_44 : f32 to vector<16x1x4xf32>
    %142 = vector.extract_strided_slice %137 {offsets = [0, 1, 0], sizes = [16, 15, 4], strides = [1, 1, 1]} : vector<16x16x4xf32> to vector<16x15x4xf32>
    %143 = tpu.concatenate %142, %141 in 1 : vector<16x15x4xf32>, vector<16x1x4xf32> -> vector<16x16x4xf32>
    %144 = tpu.concatenate %125, %122, %128, %131, %119, %134, %140, %137, %143 in 2 : vector<16x16x4xf32>, vector<16x16x4xf32>, vector<16x16x4xf32>, vector<16x16x4xf32>, vector<16x16x4xf32>, vector<16x16x4xf32>, vector<16x16x4xf32>, vector<16x16x4xf32>, vector<16x16x4xf32> -> vector<16x16x36xf32>
    %145 = vector.shape_cast %144 : vector<16x16x36xf32> to vector<256x36xf32>
    %146 = arith.truncf %145 : vector<256x36xf32> to vector<256x36xbf16>
    %c0_45 = arith.constant 0 : index
    %c0_46 = arith.constant 0 : index
    %147 = vector.load %arg5[%c0_45, %c0_46] : memref<36x4xbf16, #tpu.memory_space<vmem>>, vector<36x4xbf16>
    %cst_47 = arith.constant dense<0.000000e+00> : vector<256x4xf32>
    %148 = tpu.matmul %146, %147, %cst_47 {dimension_numbers = #tpu.dot_dimension_numbers<[1], [0], [0], [1], [0, 0, 1, 1], [], []>} : vector<256x36xbf16>, vector<36x4xbf16>, vector<256x4xf32> -> vector<256x4xf32>
    %c2 = arith.constant 2 : index
    %c0_48 = arith.constant 0 : index
    %149 = vector.load %arg6[%c2, %c0_48] : memref<4x4xf32, #tpu.memory_space<vmem>>, vector<1x4xf32>
    %150 = vector.broadcast %149 : vector<1x4xf32> to vector<256x4xf32>
    %151 = arith.mulf %148, %150 : vector<256x4xf32>
    %c3 = arith.constant 3 : index
    %c0_49 = arith.constant 0 : index
    %152 = vector.load %arg6[%c3, %c0_49] : memref<4x4xf32, #tpu.memory_space<vmem>>, vector<1x4xf32>
    %153 = vector.broadcast %152 : vector<1x4xf32> to vector<256x4xf32>
    %154 = arith.addf %151, %153 : vector<256x4xf32>
    %cst_50 = arith.constant 0.000000e+00 : f32
    %155 = vector.broadcast %cst_50 : f32 to vector<256x4xf32>
    %156 = arith.maximumf %154, %155 : vector<256x4xf32>
    %157 = vector.shape_cast %156 : vector<256x4xf32> to vector<16x16x4xf32>
    %c0_51 = arith.constant 0 : index
    %c0_52 = arith.constant 0 : index
    %c0_53 = arith.constant 0 : index
    %c0_54 = arith.constant 0 : index
    %158 = vector.load %arg7[%c0_51, %c0_52, %c0_53, %c0_54] : memref<1x16x16x4xf32, #tpu.memory_space<vmem>>, vector<1x16x16x4xf32>
    %159 = vector.shape_cast %158 : vector<1x16x16x4xf32> to vector<16x16x4xf32>
    %160 = vector.shape_cast %157 : vector<16x16x4xf32> to vector<1x16x16x4xf32>
    tpu.vector_store %arg7[%c0_51, %c0_52, %c0_53, %c0_54], %160 {strides = array<i32>} : memref<1x16x16x4xf32, #tpu.memory_space<vmem>>, vector<1x16x16x4xf32>,
    return
  }
  func.func @transform_0(%arg0: i32) -> (i32, i32, i32, i32) {
    %c0_i32 = arith.constant 0 : i32
    %c0_i32_0 = arith.constant 0 : i32
    %c0_i32_1 = arith.constant 0 : i32
    %c0_i32_2 = arith.constant 0 : i32
    return %arg0, %c0_i32, %c0_i32_0, %c0_i32_1 : i32, i32, i32, i32
  }
  func.func @transform_1(%arg0: i32) -> (i32, i32) {
    %c0_i32 = arith.constant 0 : i32
    %c0_i32_0 = arith.constant 0 : i32
    %c0_i32_1 = arith.constant 0 : i32
    return %c0_i32, %c0_i32_0 : i32, i32
  }
  func.func @transform_2(%arg0: i32) -> (i32, i32) {
    %c0_i32 = arith.constant 0 : i32
    %c0_i32_0 = arith.constant 0 : i32
    %c0_i32_1 = arith.constant 0 : i32
    return %c0_i32, %c0_i32_0 : i32, i32
  }
  func.func @transform_3(%arg0: i32) -> (i32, i32) {
    %c0_i32 = arith.constant 0 : i32
    %c0_i32_0 = arith.constant 0 : i32
    %c0_i32_1 = arith.constant 0 : i32
    return %c0_i32, %c0_i32_0 : i32, i32
  }
  func.func @transform_4(%arg0: i32) -> (i32, i32) {
    %c0_i32 = arith.constant 0 : i32
    %c0_i32_0 = arith.constant 0 : i32
    %c0_i32_1 = arith.constant 0 : i32
    return %c0_i32, %c0_i32_0 : i32, i32
  }
  func.func @transform_5(%arg0: i32) -> (i32, i32) {
    %c0_i32 = arith.constant 0 : i32
    %c0_i32_0 = arith.constant 0 : i32
    %c0_i32_1 = arith.constant 0 : i32
    return %c0_i32, %c0_i32_0 : i32, i32
  }
  func.func @transform_6(%arg0: i32) -> (i32, i32, i32, i32) {
    %c0_i32 = arith.constant 0 : i32
    %c0_i32_0 = arith.constant 0 : i32
    %c0_i32_1 = arith.constant 0 : i32
    %c0_i32_2 = arith.constant 0 : i32
    return %arg0, %c0_i32, %c0_i32_0, %c0_i32_1 : i32, i32, i32, i32
  }
}

</mosaic_0001>

<llo_original>
// kernel: tpu_custom_call.1
$region0: #{tpu_custom_call.1}
  #allocation0 [shape = 'u32[]', space=smem, size = 0x4, offset = 0x4, fixed_abs, tag = 'smem constant byte address 0x4 - core index']
  #allocation1 [shape = 'u32[144,128]{1,0:T(1,128)}', space=vmem, size = 0x12000, scoped, tag = 'internal scratch']
  %s0 = inlined_call_operand.vmem [shape: f32[2,16,16,4], index: 0, kind: input, shape index: {}]
  %s1 = inlined_call_operand.vmem [shape: bf16[36,516], index: 1, kind: input, shape index: {}]
  %s2 = inlined_call_operand.vmem [shape: f32[2,516], index: 2, kind: input, shape index: {}]
  %s3 = inlined_call_operand.vmem [shape: bf16[384,12], index: 3, kind: input, shape index: {}]
  %s4 = inlined_call_operand.vmem [shape: bf16[36,4], index: 4, kind: input, shape index: {}]
  %s5 = inlined_call_operand.vmem [shape: f32[4,4], index: 5, kind: input, shape index: {}]
  %s6 = inlined_call_operand.vmem [shape: f32[2,16,16,4], index: 6, kind: output, shape index: {}]
  %s7 = sld [smem:[#allocation0]]
  $region57: #{tpu_custom_call.1} parent=0
    _
  %s9 = ssub.s32 1, %s7
  %s10 = scalar_select 0, %s9, %s7
  loop: start=0, step=1, limit=4
  $region2: #{tpu_custom_call.1} parent=0 // loop_pre_header
    _
  $region3: #{tpu_custom_call.1} parent=0 // loop_header
    %s12 = sphi 0, %s16
    %p13 = scmp.ge.s32.totalorder %s12, 4
    %s22 = sphi 0, %s24
    %s25 = sphi 0, %s22
    %s26 = sphi 0, %s25
    %s42 = sphi 0, %s26
    %s46 = sphi 0, %s46
    %s48 = sphi 0, %s46
    %s49 = sphi 0, %s48
    %s63 = sphi 0, %s49
    %s67 = sphi 0, %s67
    %s69 = sphi 0, %s67
    %s70 = sphi 0, %s69
    %s84 = sphi 0, %s70
    %s88 = sphi 0, %s88
    %s90 = sphi 0, %s88
    %s91 = sphi 0, %s90
    %s105 = sphi 0, %s91
    %s109 = sphi 0, %s109
    %s111 = sphi 0, %s109
    %s112 = sphi 0, %s111
    %s126 = sphi 0, %s112
    %s130 = sphi 0, %s130
    %s132 = sphi 0, %s130
    %s133 = sphi 0, %s132
    %s147 = sphi 0, %s133
    %s153 = sphi 0, %s155
    %s156 = sphi 0, %s153
    %s157 = sphi 0, %s156
    %s173 = sphi 0, %s157
  $region4: #{tpu_custom_call.1} parent=0 // loop_header_branch
    %15 = sbr.rel (%p13) target = $region8
  $region5: #{tpu_custom_call.1} parent=0 // loop_body
    %s17 = ssub.s32 %s12, 1
    %s18 = ssub.s32 %s12, 2
    %s19 = sadd.s32 %s12, 1
    %s20 = ssub.s32 %s12, %s19
    %p21 = scmp.eq.s32.totalorder %s20, 0
    %s23 = sadd.s32 %s22, 1
    %s24 = scalar_select %p21, %s22, %s23
    %p27 = pneg %p21
    %p28 = scmp.eq.s32.totalorder %s12, 1
    %p29 = por %p27, %p28
    %p30 = scmp.ne.s32.totalorder %s22, %s25
    %p31 = scmp.eq.s32.totalorder %s12, 0
    %p32 = por %p30, %p31
    %p33 = scmp.ne.s32.totalorder %s22, %s25
    %p34 = scmp.eq.s32.totalorder %s17, 1
    %p35 = por %p33, %p34
    %p36 = scmp.ne.s32.totalorder %s25, %s26
    %p37 = scmp.eq.s32.totalorder %s17, 0
    %p38 = por %p36, %p37
    %p39 = scmp.ne.s32.totalorder %s25, %s26
    %p40 = scmp.eq.s32.totalorder %s18, 1
    %p41 = por %p39, %p40
    %p43 = scmp.ne.s32.totalorder %s26, %s42
    %p44 = scmp.eq.s32.totalorder %s18, 0
    %p45 = por %p43, %p44
    %s47 = sadd.s32 %s46, 1
    %p50 = scmp.eq.s32.totalorder %s12, 1
    %p51 = scmp.ne.s32.totalorder %s46, %s48
    %p52 = scmp.eq.s32.totalorder %s12, 0
    %p53 = por %p51, %p52
    %p54 = scmp.ne.s32.totalorder %s46, %s48
    %p55 = scmp.eq.s32.totalorder %s17, 1
    %p56 = por %p54, %p55
    %p57 = scmp.ne.s32.totalorder %s48, %s49
    %p58 = scmp.eq.s32.totalorder %s17, 0
    %p59 = por %p57, %p58
    %p60 = scmp.ne.s32.totalorder %s48, %s49
    %p61 = scmp.eq.s32.totalorder %s18, 1
    %p62 = por %p60, %p61
    %p64 = scmp.ne.s32.totalorder %s49, %s63
    %p65 = scmp.eq.s32.totalorder %s18, 0
    %p66 = por %p64, %p65
    %s68 = sadd.s32 %s67, 1
    %p71 = scmp.eq.s32.totalorder %s12, 1
    %p72 = scmp.ne.s32.totalorder %s67, %s69
    %p73 = scmp.eq.s32.totalorder %s12, 0
    %p74 = por %p72, %p73
    %p75 = scmp.ne.s32.totalorder %s67, %s69
    %p76 = scmp.eq.s32.totalorder %s17, 1
    %p77 = por %p75, %p76
    %p78 = scmp.ne.s32.totalorder %s69, %s70
    %p79 = scmp.eq.s32.totalorder %s17, 0
    %p80 = por %p78, %p79
    %p81 = scmp.ne.s32.totalorder %s69, %s70
    %p82 = scmp.eq.s32.totalorder %s18, 1
    %p83 = por %p81, %p82
    %p85 = scmp.ne.s32.totalorder %s70, %s84
    %p86 = scmp.eq.s32.totalorder %s18, 0
    %p87 = por %p85, %p86
    %s89 = sadd.s32 %s88, 1
    %p92 = scmp.eq.s32.totalorder %s12, 1
    %p93 = scmp.ne.s32.totalorder %s88, %s90
    %p94 = scmp.eq.s32.totalorder %s12, 0
    %p95 = por %p93, %p94
    %p96 = scmp.ne.s32.totalorder %s88, %s90
    %p97 = scmp.eq.s32.totalorder %s17, 1
    %p98 = por %p96, %p97
    %p99 = scmp.ne.s32.totalorder %s90, %s91
    %p100 = scmp.eq.s32.totalorder %s17, 0
    %p101 = por %p99, %p100
    %p102 = scmp.ne.s32.totalorder %s90, %s91
    %p103 = scmp.eq.s32.totalorder %s18, 1
    %p104 = por %p102, %p103
    %p106 = scmp.ne.s32.totalorder %s91, %s105
    %p107 = scmp.eq.s32.totalorder %s18, 0
    %p108 = por %p106, %p107
    %s110 = sadd.s32 %s109, 1
    %p113 = scmp.eq.s32.totalorder %s12, 1
    %p114 = scmp.ne.s32.totalorder %s109, %s111
    %p115 = scmp.eq.s32.totalorder %s12, 0
    %p116 = por %p114, %p115
    %p117 = scmp.ne.s32.totalorder %s109, %s111
    %p118 = scmp.eq.s32.totalorder %s17, 1
    %p119 = por %p117, %p118
    %p120 = scmp.ne.s32.totalorder %s111, %s112
    %p121 = scmp.eq.s32.totalorder %s17, 0
    %p122 = por %p120, %p121
    %p123 = scmp.ne.s32.totalorder %s111, %s112
    %p124 = scmp.eq.s32.totalorder %s18, 1
    %p125 = por %p123, %p124
    %p127 = scmp.ne.s32.totalorder %s112, %s126
    %p128 = scmp.eq.s32.totalorder %s18, 0
    %p129 = por %p127, %p128
    %s131 = sadd.s32 %s130, 1
    %p134 = scmp.eq.s32.totalorder %s12, 1
    %p135 = scmp.ne.s32.totalorder %s130, %s132
    %p136 = scmp.eq.s32.totalorder %s12, 0
    %p137 = por %p135, %p136
    %p138 = scmp.ne.s32.totalorder %s130, %s132
    %p139 = scmp.eq.s32.totalorder %s17, 1
    %p140 = por %p138, %p139
    %p141 = scmp.ne.s32.totalorder %s132, %s133
    %p142 = scmp.eq.s32.totalorder %s17, 0
    %p143 = por %p141, %p142
    %p144 = scmp.ne.s32.totalorder %s132, %s133
    %p145 = scmp.eq.s32.totalorder %s18, 1
    %p146 = por %p144, %p145
    %p148 = scmp.ne.s32.totalorder %s133, %s147
    %p149 = scmp.eq.s32.totalorder %s18, 0
    %p150 = por %p148, %p149
    %s151 = ssub.s32 %s12, %s19
    %p152 = scmp.eq.s32.totalorder %s151, 0
    %s154 = sadd.s32 %s153, 1
    %s155 = scalar_select %p152, %s153, %s154
    %p158 = pneg %p152
    %p159 = scmp.eq.s32.totalorder %s12, 1
    %p160 = por %p158, %p159
    %p161 = scmp.ne.s32.totalorder %s153, %s156
    %p162 = scmp.eq.s32.totalorder %s12, 0
    %p163 = por %p161, %p162
    %p164 = scmp.ne.s32.totalorder %s153, %s156
    %p165 = scmp.eq.s32.totalorder %s17, 1
    %p166 = por %p164, %p165
    %p167 = scmp.ne.s32.totalorder %s156, %s157
    %p168 = scmp.eq.s32.totalorder %s17, 0
    %p169 = por %p167, %p168
    %p170 = scmp.ne.s32.totalorder %s156, %s157
    %p171 = scmp.eq.s32.totalorder %s18, 1
    %p172 = por %p170, %p171
    %p174 = scmp.ne.s32.totalorder %s157, %s173
    %p175 = scmp.eq.s32.totalorder %s18, 0
    %p176 = por %p174, %p175
    %p177 = scmp.le.s32.totalorder 1, %s12
    %p178 = scmp.lt.s32.totalorder %s12, 3
    %p179 = pnand %p177, %p178
    %p180 = pneg %p179
    // Predicated region
    $region9: #{tpu_custom_call.1} parent=5 // pred_check
      _
    $region10: #{tpu_custom_call.1} parent=5 // pred_check_branch
      %182 = sbr.rel (%p179) target = $region12
    $region11: #{tpu_custom_call.1} parent=5 // pred_region
      %s183 = ssub.s32 %s12, 1
      // Predicated region
      $region13: #{tpu_custom_call.1} parent=11 // pred_check
        %p184 = pneg %p59
      $region14: #{tpu_custom_call.1} parent=11 // pred_check_branch
        %186 = sbr.rel (%p184) target = $region16
      $region15: #{tpu_custom_call.1} parent=11 // pred_region
        _
      $region16: #{tpu_custom_call.1} parent=11 // pred_fallthru
        _
      // Predicated region
      $region17: #{tpu_custom_call.1} parent=11 // pred_check
        %p187 = pneg %p80
      $region18: #{tpu_custom_call.1} parent=11 // pred_check_branch
        %189 = sbr.rel (%p187) target = $region20
      $region19: #{tpu_custom_call.1} parent=11 // pred_region
        _
      $region20: #{tpu_custom_call.1} parent=11 // pred_fallthru
        _
      // Predicated region
      $region21: #{tpu_custom_call.1} parent=11 // pred_check
        %p190 = pneg %p101
      $region22: #{tpu_custom_call.1} parent=11 // pred_check_branch
        %192 = sbr.rel (%p190) target = $region24
      $region23: #{tpu_custom_call.1} parent=11 // pred_region
        _
      $region24: #{tpu_custom_call.1} parent=11 // pred_fallthru
        _
      // Predicated region
      $region25: #{tpu_custom_call.1} parent=11 // pred_check
        %p193 = pneg %p122
      $region26: #{tpu_custom_call.1} parent=11 // pred_check_branch
        %195 = sbr.rel (%p193) target = $region28
      $region27: #{tpu_custom_call.1} parent=11 // pred_region
        _
      $region28: #{tpu_custom_call.1} parent=11 // pred_fallthru
        _
      // Predicated region
      $region29: #{tpu_custom_call.1} parent=11 // pred_check
        %p196 = pneg %p143
      $region30: #{tpu_custom_call.1} parent=11 // pred_check_branch
        %198 = sbr.rel (%p196) target = $region32
      $region31: #{tpu_custom_call.1} parent=11 // pred_region
        _
      $region32: #{tpu_custom_call.1} parent=11 // pred_fallthru
        _
    $region12: #{tpu_custom_call.1} parent=5 // pred_fallthru
      _
    %p199 = scmp.lt.s32.totalorder %s12, 2
    // Predicated region
    $region33: #{tpu_custom_call.1} parent=5 // pred_check
      %p200 = pneg %p199
    $region34: #{tpu_custom_call.1} parent=5 // pred_check_branch
      %202 = sbr.rel (%p200) target = $region36
    $region35: #{tpu_custom_call.1} parent=5 // pred_region
      // Predicated region
      $region37: #{tpu_custom_call.1} parent=35 // pred_check
        %p203 = pneg %p32
      $region38: #{tpu_custom_call.1} parent=35 // pred_check_branch
        %205 = sbr.rel (%p203) target = $region40
      $region39: #{tpu_custom_call.1} parent=35 // pred_region
        %p206 = scmp.lt.s32.totalorder %s12, 1
        %s207 = scalar_select %p206, %s12, 1
        %s208 = smul.addr %s207, 32
        %s209 = smul.addr %s208, 8
        %s210 = scalar_lea.vmem %s0, %s209
      $region40: #{tpu_custom_call.1} parent=35 // pred_fallthru
        _
    $region36: #{tpu_custom_call.1} parent=5 // pred_fallthru
      _
    %p211 = scmp.le.s32.totalorder 1, %s12
    %p212 = scmp.lt.s32.totalorder %s12, 3
    %p213 = pnand %p211, %p212
    %p214 = pneg %p213
    // Predicated region
    $region41: #{tpu_custom_call.1} parent=5 // pred_check
      _
    $region42: #{tpu_custom_call.1} parent=5 // pred_check_branch
      %216 = sbr.rel (%p213) target = $region44
    $region43: #{tpu_custom_call.1} parent=5 // pred_region
      %s217 = ssub.s32 %s12, 1
      %p218 = scmp.lt.s32.totalorder %s17, 1
      %s219 = scalar_select %p218, %s17, 1
      %s220 = smul.addr %s219, 32
      %s221 = smul.addr %s220, 8
      %s222 = scalar_lea.vmem %s0, %s221
      %p223 = pneg %p38
      %p224 = pneg %p35
      %p225 = pneg %p59
      %p226 = pneg %p56
      %p227 = pneg %p80
      %p228 = pneg %p77
      %p229 = pneg %p101
      %p230 = pneg %p98
      %p231 = pneg %p122
      %p232 = pneg %p119
      %p233 = pneg %p143
      %p234 = pneg %p140
      %p235 = pneg %p169
      %p236 = pneg %p166
      %p237 = scmp.lt.s32.totalorder %s17, 1
      %s238 = scalar_select %p237, %s17, 1
      %s239 = smul.addr %s238, 32
      %s240 = smul.addr %s239, 8
      %s241 = scalar_lea.vmem %s6, %s240
      %p242 = scmp.lt.s32.totalorder %s17, 1
      %s243 = scalar_select %p242, %s17, 1
      %s244 = smul.addr %s243, 32
      %s245 = smul.addr %s244, 8
      %s246 = scalar_lea.vmem %s0, %s245
      %p247 = scmp.lt.s32.totalorder %s17, 1
      %s248 = scalar_select %p247, %s17, 1
      %s249 = smul.addr %s248, 32
      %s250 = smul.addr %s249, 8
      %s251 = scalar_lea.vmem %s6, %s250
      %v253 = vld [vmem:[%s246] sm:$0xff]
      %v254 = vld [vmem:[%s246 + $0x8] sm:$0xff]
      %v255 = vld [vmem:[%s246 + $0x10] sm:$0xff]
      %v256 = vld [vmem:[%s246 + $0x18] sm:$0xff]
      %v257 = vld [vmem:[%s246 + $0x20] sm:$0xff]
      %v258 = vld [vmem:[%s246 + $0x28] sm:$0xff]
      %v259 = vld [vmem:[%s246 + $0x30] sm:$0xff]
      %v260 = vld [vmem:[%s246 + $0x38] sm:$0xff]
      %v261 = vld [vmem:[%s246 + $0x40] sm:$0xff]
      %v262 = vld [vmem:[%s246 + $0x48] sm:$0xff]
      %v263 = vld [vmem:[%s246 + $0x50] sm:$0xff]
      %v264 = vld [vmem:[%s246 + $0x58] sm:$0xff]
      %v265 = vld [vmem:[%s246 + $0x60] sm:$0xff]
      %v266 = vld [vmem:[%s246 + $0x68] sm:$0xff]
      %v267 = vld [vmem:[%s246 + $0x70] sm:$0xff]
      %v268 = vld [vmem:[%s246 + $0x78] sm:$0xff]
      %v269 = vld [vmem:[%s246 + $0x80] sm:$0xff]
      %v270 = vld [vmem:[%s246 + $0x88] sm:$0xff]
      %v271 = vld [vmem:[%s246 + $0x90] sm:$0xff]
      %v272 = vld [vmem:[%s246 + $0x98] sm:$0xff]
      %v273 = vld [vmem:[%s246 + $0xa0] sm:$0xff]
      %v274 = vld [vmem:[%s246 + $0xa8] sm:$0xff]
      %v275 = vld [vmem:[%s246 + $0xb0] sm:$0xff]
      %v276 = vld [vmem:[%s246 + $0xb8] sm:$0xff]
      %v277 = vld [vmem:[%s246 + $0xc0] sm:$0xff]
      %v278 = vld [vmem:[%s246 + $0xc8] sm:$0xff]
      %v279 = vld [vmem:[%s246 + $0xd0] sm:$0xff]
      %v280 = vld [vmem:[%s246 + $0xd8] sm:$0xff]
      %v281 = vld [vmem:[%s246 + $0xe0] sm:$0xff]
      %v282 = vld [vmem:[%s246 + $0xe8] sm:$0xff]
      %v283 = vld [vmem:[%s246 + $0xf0] sm:$0xff]
      %v284 = vld [vmem:[%s246 + $0xf8] sm:$0xff]
      %vm316 = vcmask 1040384
      %v317 = vrot.slane 0.0, 7
      %v318 = vsel %vm316, %v317, %v317
      %v319 = vrot.slane %v253, 7
      %v320 = vrot.slane %v254, 7
      %v321 = vsel %vm316, %v319, %v320
      %v322 = vrot.slane %v255, 7
      %v323 = vrot.slane %v256, 7
      %v324 = vsel %vm316, %v322, %v323
      %v325 = vrot.slane %v257, 7
      %v326 = vrot.slane %v258, 7
      %v327 = vsel %vm316, %v325, %v326
      %v328 = vrot.slane %v259, 7
      %v329 = vrot.slane %v260, 7
      %v330 = vsel %vm316, %v328, %v329
      %v331 = vrot.slane %v261, 7
      %v332 = vrot.slane %v262, 7
      %v333 = vsel %vm316, %v331, %v332
      %v334 = vrot.slane %v263, 7
      %v335 = vrot.slane %v264, 7
      %v336 = vsel %vm316, %v334, %v335
      %v337 = vrot.slane %v265, 7
      %v338 = vrot.slane %v266, 7
      %v339 = vsel %vm316, %v337, %v338
      %v340 = vrot.slane %v267, 7
      %v341 = vrot.slane %v268, 7
      %v342 = vsel %vm316, %v340, %v341
      %v343 = vrot.slane %v269, 7
      %v344 = vrot.slane %v270, 7
      %v345 = vsel %vm316, %v343, %v344
      %v346 = vrot.slane %v271, 7
      %v347 = vrot.slane %v272, 7
      %v348 = vsel %vm316, %v346, %v347
      %v349 = vrot.slane %v273, 7
      %v350 = vrot.slane %v274, 7
      %v351 = vsel %vm316, %v349, %v350
      %v352 = vrot.slane %v275, 7
      %v353 = vrot.slane %v276, 7
      %v354 = vsel %vm316, %v352, %v353
      %v355 = vrot.slane %v277, 7
      %v356 = vrot.slane %v278, 7
      %v357 = vsel %vm316, %v355, %v356
      %v358 = vrot.slane %v279, 7
      %v359 = vrot.slane %v280, 7
      %v360 = vsel %vm316, %v358, %v359
      %v361 = vrot.slane %v281, 7
      %v362 = vrot.slane %v282, 7
      %v363 = vsel %vm316, %v361, %v362
      %v396 = vsel %vm316, 0.0, %v317
      %v397 = vsel %vm316, 0.0, %v319
      %v398 = vsel %vm316, 0.0, %v322
      %v399 = vsel %vm316, 0.0, %v325
      %v400 = vsel %vm316, 0.0, %v328
      %v401 = vsel %vm316, 0.0, %v331
      %v402 = vsel %vm316, 0.0, %v334
      %v403 = vsel %vm316, 0.0, %v337
      %v404 = vsel %vm316, 0.0, %v340
      %v405 = vsel %vm316, 0.0, %v343
      %v406 = vsel %vm316, 0.0, %v346
      %v407 = vsel %vm316, 0.0, %v349
      %v408 = vsel %vm316, 0.0, %v352
      %v409 = vsel %vm316, 0.0, %v355
      %v410 = vsel %vm316, 0.0, %v358
      %v411 = vsel %vm316, 0.0, %v361
      %vm412 = vcmask 1046528
      %v413 = vrot.slane 0.0, 1
      %v414 = vsel %vm412, %v413, %v413
      %v415 = vrot.slane %v253, 1
      %v416 = vrot.slane %v254, 1
      %v417 = vsel %vm412, %v415, %v416
      %v418 = vrot.slane %v255, 1
      %v419 = vrot.slane %v256, 1
      %v420 = vsel %vm412, %v418, %v419
      %v421 = vrot.slane %v257, 1
      %v422 = vrot.slane %v258, 1
      %v423 = vsel %vm412, %v421, %v422
      %v424 = vrot.slane %v259, 1
      %v425 = vrot.slane %v260, 1
      %v426 = vsel %vm412, %v424, %v425
      %v427 = vrot.slane %v261, 1
      %v428 = vrot.slane %v262, 1
      %v429 = vsel %vm412, %v427, %v428
      %v430 = vrot.slane %v263, 1
      %v431 = vrot.slane %v264, 1
      %v432 = vsel %vm412, %v430, %v431
      %v433 = vrot.slane %v265, 1
      %v434 = vrot.slane %v266, 1
      %v435 = vsel %vm412, %v433, %v434
      %v436 = vrot.slane %v267, 1
      %v437 = vrot.slane %v268, 1
      %v438 = vsel %vm412, %v436, %v437
      %v439 = vrot.slane %v269, 1
      %v440 = vrot.slane %v270, 1
      %v441 = vsel %vm412, %v439, %v440
      %v442 = vrot.slane %v271, 1
      %v443 = vrot.slane %v272, 1
      %v444 = vsel %vm412, %v442, %v443
      %v445 = vrot.slane %v273, 1
      %v446 = vrot.slane %v274, 1
      %v447 = vsel %vm412, %v445, %v446
      %v448 = vrot.slane %v275, 1
      %v449 = vrot.slane %v276, 1
      %v450 = vsel %vm412, %v448, %v449
      %v451 = vrot.slane %v277, 1
      %v452 = vrot.slane %v278, 1
      %v453 = vsel %vm412, %v451, %v452
      %v454 = vrot.slane %v279, 1
      %v455 = vrot.slane %v280, 1
      %v456 = vsel %vm412, %v454, %v455
      %v457 = vrot.slane %v281, 1
      %v458 = vrot.slane %v282, 1
      %v459 = vsel %vm412, %v457, %v458
      %v476 = vsel %vm412, %v413, 0.0
      %v477 = vsel %vm412, %v416, 0.0
      %v478 = vsel %vm412, %v419, 0.0
      %v479 = vsel %vm412, %v422, 0.0
      %v480 = vsel %vm412, %v425, 0.0
      %v481 = vsel %vm412, %v428, 0.0
      %v482 = vsel %vm412, %v431, 0.0
      %v483 = vsel %vm412, %v434, 0.0
      %v484 = vsel %vm412, %v437, 0.0
      %v485 = vsel %vm412, %v440, 0.0
      %v486 = vsel %vm412, %v443, 0.0
      %v487 = vsel %vm412, %v446, 0.0
      %v488 = vsel %vm412, %v449, 0.0
      %v489 = vsel %vm412, %v452, 0.0
      %v490 = vsel %vm412, %v455, 0.0
      %v491 = vsel %vm412, %v458, 0.0
      %v494 = vrot.slane %v283, 7
      %v495 = vrot.slane %v284, 7
      %v496 = vsel %vm316, %v494, %v495
      %v498 = vsel %vm316, 0.0, %v494
      %v499 = vrot.slane %v283, 1
      %v500 = vrot.slane %v284, 1
      %v501 = vsel %vm412, %v499, %v500
      %v503 = vsel %vm412, %v500, 0.0
      %504 = vrot.lane.b32.xlu0 0.0, 4
      %v505 = vpop.permute.xlu0 %504
      %506 = vrot.lane.b32.xlu0 %v253, 4
      %v507 = vpop.permute.xlu0 %506
      %508 = vrot.lane.b32.xlu0 %v254, 4
      %v509 = vpop.permute.xlu0 %508
      %510 = vrot.lane.b32.xlu0 %v255, 4
      %v511 = vpop.permute.xlu0 %510
      %512 = vrot.lane.b32.xlu0 %v256, 4
      %v513 = vpop.permute.xlu0 %512
      %514 = vrot.lane.b32.xlu0 %v257, 4
      %v515 = vpop.permute.xlu0 %514
      %516 = vrot.lane.b32.xlu0 %v258, 4
      %v517 = vpop.permute.xlu0 %516
      %518 = vrot.lane.b32.xlu0 %v259, 4
      %v519 = vpop.permute.xlu0 %518
      %520 = vrot.lane.b32.xlu0 %v260, 4
      %v521 = vpop.permute.xlu0 %520
      %522 = vrot.lane.b32.xlu0 %v261, 4
      %v523 = vpop.permute.xlu0 %522
      %524 = vrot.lane.b32.xlu0 %v262, 4
      %v525 = vpop.permute.xlu0 %524
      %526 = vrot.lane.b32.xlu0 %v263, 4
      %v527 = vpop.permute.xlu0 %526
      %528 = vrot.lane.b32.xlu0 %v264, 4
      %v529 = vpop.permute.xlu0 %528
      %530 = vrot.lane.b32.xlu0 %v265, 4
      %v531 = vpop.permute.xlu0 %530
      %532 = vrot.lane.b32.xlu0 %v266, 4
      %v533 = vpop.permute.xlu0 %532
      %534 = vrot.lane.b32.xlu0 %v267, 4
      %v535 = vpop.permute.xlu0 %534
      %536 = vrot.lane.b32.xlu0 %v268, 4
      %v537 = vpop.permute.xlu0 %536
      %538 = vrot.lane.b32.xlu0 %v269, 4
      %v539 = vpop.permute.xlu0 %538
      %540 = vrot.lane.b32.xlu0 %v270, 4
      %v541 = vpop.permute.xlu0 %540
      %542 = vrot.lane.b32.xlu0 %v271, 4
      %v543 = vpop.permute.xlu0 %542
      %544 = vrot.lane.b32.xlu0 %v272, 4
      %v545 = vpop.permute.xlu0 %544
      %546 = vrot.lane.b32.xlu0 %v273, 4
      %v547 = vpop.permute.xlu0 %546
      %548 = vrot.lane.b32.xlu0 %v274, 4
      %v549 = vpop.permute.xlu0 %548
      %550 = vrot.lane.b32.xlu0 %v275, 4
      %v551 = vpop.permute.xlu0 %550
      %552 = vrot.lane.b32.xlu0 %v276, 4
      %v553 = vpop.permute.xlu0 %552
      %554 = vrot.lane.b32.xlu0 %v277, 4
      %v555 = vpop.permute.xlu0 %554
      %556 = vrot.lane.b32.xlu0 %v278, 4
      %v557 = vpop.permute.xlu0 %556
      %558 = vrot.lane.b32.xlu0 %v279, 4
      %v559 = vpop.permute.xlu0 %558
      %560 = vrot.lane.b32.xlu0 %v280, 4
      %v561 = vpop.permute.xlu0 %560
      %562 = vrot.lane.b32.xlu0 %v281, 4
      %v563 = vpop.permute.xlu0 %562
      %564 = vrot.lane.b32.xlu0 %v282, 4
      %v565 = vpop.permute.xlu0 %564
      %613 = vrot.lane.b32.xlu0 %v414, 8
      %v614 = vpop.permute.xlu0 %613
      %615 = vrot.lane.b32.xlu0 %v476, 8
      %v616 = vpop.permute.xlu0 %615
      %617 = vrot.lane.b32.xlu0 %v417, 8
      %v618 = vpop.permute.xlu0 %617
      %619 = vrot.lane.b32.xlu0 %v477, 8
      %v620 = vpop.permute.xlu0 %619
      %621 = vrot.lane.b32.xlu0 %v420, 8
      %v622 = vpop.permute.xlu0 %621
      %623 = vrot.lane.b32.xlu0 %v478, 8
      %v624 = vpop.permute.xlu0 %623
      %625 = vrot.lane.b32.xlu0 %v423, 8
      %v626 = vpop.permute.xlu0 %625
      %627 = vrot.lane.b32.xlu0 %v479, 8
      %v628 = vpop.permute.xlu0 %627
      %629 = vrot.lane.b32.xlu0 %v426, 8
      %v630 = vpop.permute.xlu0 %629
      %631 = vrot.lane.b32.xlu0 %v480, 8
      %v632 = vpop.permute.xlu0 %631
      %633 = vrot.lane.b32.xlu0 %v429, 8
      %v634 = vpop.permute.xlu0 %633
      %635 = vrot.lane.b32.xlu0 %v481, 8
      %v636 = vpop.permute.xlu0 %635
      %637 = vrot.lane.b32.xlu0 %v432, 8
      %v638 = vpop.permute.xlu0 %637
      %639 = vrot.lane.b32.xlu0 %v482, 8
      %v640 = vpop.permute.xlu0 %639
      %641 = vrot.lane.b32.xlu0 %v435, 8
      %v642 = vpop.permute.xlu0 %641
      %643 = vrot.lane.b32.xlu0 %v483, 8
      %v644 = vpop.permute.xlu0 %643
      %645 = vrot.lane.b32.xlu0 %v438, 8
      %v646 = vpop.permute.xlu0 %645
      %647 = vrot.lane.b32.xlu0 %v484, 8
      %v648 = vpop.permute.xlu0 %647
      %649 = vrot.lane.b32.xlu0 %v441, 8
      %v650 = vpop.permute.xlu0 %649
      %651 = vrot.lane.b32.xlu0 %v485, 8
      %v652 = vpop.permute.xlu0 %651
      %653 = vrot.lane.b32.xlu0 %v444, 8
      %v654 = vpop.permute.xlu0 %653
      %655 = vrot.lane.b32.xlu0 %v486, 8
      %v656 = vpop.permute.xlu0 %655
      %657 = vrot.lane.b32.xlu0 %v447, 8
      %v658 = vpop.permute.xlu0 %657
      %659 = vrot.lane.b32.xlu0 %v487, 8
      %v660 = vpop.permute.xlu0 %659
      %661 = vrot.lane.b32.xlu0 %v450, 8
      %v662 = vpop.permute.xlu0 %661
      %663 = vrot.lane.b32.xlu0 %v488, 8
      %v664 = vpop.permute.xlu0 %663
      %665 = vrot.lane.b32.xlu0 %v453, 8
      %v666 = vpop.permute.xlu0 %665
      %667 = vrot.lane.b32.xlu0 %v489, 8
      %v668 = vpop.permute.xlu0 %667
      %669 = vrot.lane.b32.xlu0 %v456, 8
      %v670 = vpop.permute.xlu0 %669
      %671 = vrot.lane.b32.xlu0 %v490, 8
      %v672 = vpop.permute.xlu0 %671
      %673 = vrot.lane.b32.xlu0 %v459, 8
      %v674 = vpop.permute.xlu0 %673
      %675 = vrot.lane.b32.xlu0 %v491, 8
      %v676 = vpop.permute.xlu0 %675
      %725 = vrot.lane.b32.xlu0 %v397, 12
      %v726 = vpop.permute.xlu0 %725
      %727 = vrot.lane.b32.xlu0 %v321, 12
      %v728 = vpop.permute.xlu0 %727
      %729 = vrot.lane.b32.xlu0 %v398, 12
      %v730 = vpop.permute.xlu0 %729
      %731 = vrot.lane.b32.xlu0 %v324, 12
      %v732 = vpop.permute.xlu0 %731
      %733 = vrot.lane.b32.xlu0 %v399, 12
      %v734 = vpop.permute.xlu0 %733
      %735 = vrot.lane.b32.xlu0 %v327, 12
      %v736 = vpop.permute.xlu0 %735
      %737 = vrot.lane.b32.xlu0 %v400, 12
      %v738 = vpop.permute.xlu0 %737
      %739 = vrot.lane.b32.xlu0 %v330, 12
      %v740 = vpop.permute.xlu0 %739
      %741 = vrot.lane.b32.xlu0 %v401, 12
      %v742 = vpop.permute.xlu0 %741
      %743 = vrot.lane.b32.xlu0 %v333, 12
      %v744 = vpop.permute.xlu0 %743
      %745 = vrot.lane.b32.xlu0 %v402, 12
      %v746 = vpop.permute.xlu0 %745
      %747 = vrot.lane.b32.xlu0 %v336, 12
      %v748 = vpop.permute.xlu0 %747
      %749 = vrot.lane.b32.xlu0 %v403, 12
      %v750 = vpop.permute.xlu0 %749
      %751 = vrot.lane.b32.xlu0 %v339, 12
      %v752 = vpop.permute.xlu0 %751
      %753 = vrot.lane.b32.xlu0 %v404, 12
      %v754 = vpop.permute.xlu0 %753
      %755 = vrot.lane.b32.xlu0 %v342, 12
      %v756 = vpop.permute.xlu0 %755
      %757 = vrot.lane.b32.xlu0 %v405, 12
      %v758 = vpop.permute.xlu0 %757
      %759 = vrot.lane.b32.xlu0 %v345, 12
      %v760 = vpop.permute.xlu0 %759
      %761 = vrot.lane.b32.xlu0 %v406, 12
      %v762 = vpop.permute.xlu0 %761
      %763 = vrot.lane.b32.xlu0 %v348, 12
      %v764 = vpop.permute.xlu0 %763
      %765 = vrot.lane.b32.xlu0 %v407, 12
      %v766 = vpop.permute.xlu0 %765
      %767 = vrot.lane.b32.xlu0 %v351, 12
      %v768 = vpop.permute.xlu0 %767
      %769 = vrot.lane.b32.xlu0 %v408, 12
      %v770 = vpop.permute.xlu0 %769
      %771 = vrot.lane.b32.xlu0 %v354, 12
      %v772 = vpop.permute.xlu0 %771
      %773 = vrot.lane.b32.xlu0 %v409, 12
      %v774 = vpop.permute.xlu0 %773
      %775 = vrot.lane.b32.xlu0 %v357, 12
      %v776 = vpop.permute.xlu0 %775
      %777 = vrot.lane.b32.xlu0 %v410, 12
      %v778 = vpop.permute.xlu0 %777
      %779 = vrot.lane.b32.xlu0 %v360, 12
      %v780 = vpop.permute.xlu0 %779
      %781 = vrot.lane.b32.xlu0 %v411, 12
      %v782 = vpop.permute.xlu0 %781
      %783 = vrot.lane.b32.xlu0 %v363, 12
      %v784 = vpop.permute.xlu0 %783
      %785 = vrot.lane.b32.xlu0 %v498, 12
      %v786 = vpop.permute.xlu0 %785
      %787 = vrot.lane.b32.xlu0 %v496, 12
      %v788 = vpop.permute.xlu0 %787
      %821 = vrot.lane.b32.xlu0 %v253, 16
      %v822 = vpop.permute.xlu0 %821
      %823 = vrot.lane.b32.xlu0 %v254, 16
      %v824 = vpop.permute.xlu0 %823
      %825 = vrot.lane.b32.xlu0 %v255, 16
      %v826 = vpop.permute.xlu0 %825
      %827 = vrot.lane.b32.xlu0 %v256, 16
      %v828 = vpop.permute.xlu0 %827
      %829 = vrot.lane.b32.xlu0 %v257, 16
      %v830 = vpop.permute.xlu0 %829
      %831 = vrot.lane.b32.xlu0 %v258, 16
      %v832 = vpop.permute.xlu0 %831
      %833 = vrot.lane.b32.xlu0 %v259, 16
      %v834 = vpop.permute.xlu0 %833
      %835 = vrot.lane.b32.xlu0 %v260, 16
      %v836 = vpop.permute.xlu0 %835
      %837 = vrot.lane.b32.xlu0 %v261, 16
      %v838 = vpop.permute.xlu0 %837
      %839 = vrot.lane.b32.xlu0 %v262, 16
      %v840 = vpop.permute.xlu0 %839
      %841 = vrot.lane.b32.xlu0 %v263, 16
      %v842 = vpop.permute.xlu0 %841
      %843 = vrot.lane.b32.xlu0 %v264, 16
      %v844 = vpop.permute.xlu0 %843
      %845 = vrot.lane.b32.xlu0 %v265, 16
      %v846 = vpop.permute.xlu0 %845
      %847 = vrot.lane.b32.xlu0 %v266, 16
      %v848 = vpop.permute.xlu0 %847
      %849 = vrot.lane.b32.xlu0 %v267, 16
      %v850 = vpop.permute.xlu0 %849
      %851 = vrot.lane.b32.xlu0 %v268, 16
      %v852 = vpop.permute.xlu0 %851
      %853 = vrot.lane.b32.xlu0 %v269, 16
      %v854 = vpop.permute.xlu0 %853
      %855 = vrot.lane.b32.xlu0 %v270, 16
      %v856 = vpop.permute.xlu0 %855
      %857 = vrot.lane.b32.xlu0 %v271, 16
      %v858 = vpop.permute.xlu0 %857
      %859 = vrot.lane.b32.xlu0 %v272, 16
      %v860 = vpop.permute.xlu0 %859
      %861 = vrot.lane.b32.xlu0 %v273, 16
      %v862 = vpop.permute.xlu0 %861
      %863 = vrot.lane.b32.xlu0 %v274, 16
      %v864 = vpop.permute.xlu0 %863
      %865 = vrot.lane.b32.xlu0 %v275, 16
      %v866 = vpop.permute.xlu0 %865
      %867 = vrot.lane.b32.xlu0 %v276, 16
      %v868 = vpop.permute.xlu0 %867
      %869 = vrot.lane.b32.xlu0 %v277, 16
      %v870 = vpop.permute.xlu0 %869
      %871 = vrot.lane.b32.xlu0 %v278, 16
      %v872 = vpop.permute.xlu0 %871
      %873 = vrot.lane.b32.xlu0 %v279, 16
      %v874 = vpop.permute.xlu0 %873
      %875 = vrot.lane.b32.xlu0 %v280, 16
      %v876 = vpop.permute.xlu0 %875
      %877 = vrot.lane.b32.xlu0 %v281, 16
      %v878 = vpop.permute.xlu0 %877
      %879 = vrot.lane.b32.xlu0 %v282, 16
      %v880 = vpop.permute.xlu0 %879
      %881 = vrot.lane.b32.xlu0 %v283, 16
      %v882 = vpop.permute.xlu0 %881
      %883 = vrot.lane.b32.xlu0 %v284, 16
      %v884 = vpop.permute.xlu0 %883
      %918 = vrot.lane.b32.xlu0 %v417, 20
      %v919 = vpop.permute.xlu0 %918
      %920 = vrot.lane.b32.xlu0 %v477, 20
      %v921 = vpop.permute.xlu0 %920
      %922 = vrot.lane.b32.xlu0 %v420, 20
      %v923 = vpop.permute.xlu0 %922
      %924 = vrot.lane.b32.xlu0 %v478, 20
      %v925 = vpop.permute.xlu0 %924
      %926 = vrot.lane.b32.xlu0 %v423, 20
      %v927 = vpop.permute.xlu0 %926
      %928 = vrot.lane.b32.xlu0 %v479, 20
      %v929 = vpop.permute.xlu0 %928
      %930 = vrot.lane.b32.xlu0 %v426, 20
      %v931 = vpop.permute.xlu0 %930
      %932 = vrot.lane.b32.xlu0 %v480, 20
      %v933 = vpop.permute.xlu0 %932
      %934 = vrot.lane.b32.xlu0 %v429, 20
      %v935 = vpop.permute.xlu0 %934
      %936 = vrot.lane.b32.xlu0 %v481, 20
      %v937 = vpop.permute.xlu0 %936
      %938 = vrot.lane.b32.xlu0 %v432, 20
      %v939 = vpop.permute.xlu0 %938
      %940 = vrot.lane.b32.xlu0 %v482, 20
      %v941 = vpop.permute.xlu0 %940
      %942 = vrot.lane.b32.xlu0 %v435, 20
      %v943 = vpop.permute.xlu0 %942
      %944 = vrot.lane.b32.xlu0 %v483, 20
      %v945 = vpop.permute.xlu0 %944
      %946 = vrot.lane.b32.xlu0 %v438, 20
      %v947 = vpop.permute.xlu0 %946
      %948 = vrot.lane.b32.xlu0 %v484, 20
      %v949 = vpop.permute.xlu0 %948
      %950 = vrot.lane.b32.xlu0 %v441, 20
      %v951 = vpop.permute.xlu0 %950
      %952 = vrot.lane.b32.xlu0 %v485, 20
      %v953 = vpop.permute.xlu0 %952
      %954 = vrot.lane.b32.xlu0 %v444, 20
      %v955 = vpop.permute.xlu0 %954
      %956 = vrot.lane.b32.xlu0 %v486, 20
      %v957 = vpop.permute.xlu0 %956
      %958 = vrot.lane.b32.xlu0 %v447, 20
      %v959 = vpop.permute.xlu0 %958
      %960 = vrot.lane.b32.xlu0 %v487, 20
      %v961 = vpop.permute.xlu0 %960
      %962 = vrot.lane.b32.xlu0 %v450, 20
      %v963 = vpop.permute.xlu0 %962
      %964 = vrot.lane.b32.xlu0 %v488, 20
      %v965 = vpop.permute.xlu0 %964
      %966 = vrot.lane.b32.xlu0 %v453, 20
      %v967 = vpop.permute.xlu0 %966
      %968 = vrot.lane.b32.xlu0 %v489, 20
      %v969 = vpop.permute.xlu0 %968
      %970 = vrot.lane.b32.xlu0 %v456, 20
      %v971 = vpop.permute.xlu0 %970
      %972 = vrot.lane.b32.xlu0 %v490, 20
      %v973 = vpop.permute.xlu0 %972
      %974 = vrot.lane.b32.xlu0 %v459, 20
      %v975 = vpop.permute.xlu0 %974
      %976 = vrot.lane.b32.xlu0 %v491, 20
      %v977 = vpop.permute.xlu0 %976
      %978 = vrot.lane.b32.xlu0 %v501, 20
      %v979 = vpop.permute.xlu0 %978
      %980 = vrot.lane.b32.xlu0 %v503, 20
      %v981 = vpop.permute.xlu0 %980
      %1015 = vrot.lane.b32.xlu0 %v398, 24
      %v1016 = vpop.permute.xlu0 %1015
      %1017 = vrot.lane.b32.xlu0 %v324, 24
      %v1018 = vpop.permute.xlu0 %1017
      %1019 = vrot.lane.b32.xlu0 %v399, 24
      %v1020 = vpop.permute.xlu0 %1019
      %1021 = vrot.lane.b32.xlu0 %v327, 24
      %v1022 = vpop.permute.xlu0 %1021
      %1023 = vrot.lane.b32.xlu0 %v400, 24
      %v1024 = vpop.permute.xlu0 %1023
      %1025 = vrot.lane.b32.xlu0 %v330, 24
      %v1026 = vpop.permute.xlu0 %1025
      %1027 = vrot.lane.b32.xlu0 %v401, 24
      %v1028 = vpop.permute.xlu0 %1027
      %1029 = vrot.lane.b32.xlu0 %v333, 24
      %v1030 = vpop.permute.xlu0 %1029
      %1031 = vrot.lane.b32.xlu0 %v402, 24
      %v1032 = vpop.permute.xlu0 %1031
      %1033 = vrot.lane.b32.xlu0 %v336, 24
      %v1034 = vpop.permute.xlu0 %1033
      %1035 = vrot.lane.b32.xlu0 %v403, 24
      %v1036 = vpop.permute.xlu0 %1035
      %1037 = vrot.lane.b32.xlu0 %v339, 24
      %v1038 = vpop.permute.xlu0 %1037
      %1039 = vrot.lane.b32.xlu0 %v404, 24
      %v1040 = vpop.permute.xlu0 %1039
      %1041 = vrot.lane.b32.xlu0 %v342, 24
      %v1042 = vpop.permute.xlu0 %1041
      %1043 = vrot.lane.b32.xlu0 %v405, 24
      %v1044 = vpop.permute.xlu0 %1043
      %1045 = vrot.lane.b32.xlu0 %v345, 24
      %v1046 = vpop.permute.xlu0 %1045
      %1047 = vrot.lane.b32.xlu0 %v406, 24
      %v1048 = vpop.permute.xlu0 %1047
      %1049 = vrot.lane.b32.xlu0 %v348, 24
      %v1050 = vpop.permute.xlu0 %1049
      %1051 = vrot.lane.b32.xlu0 %v407, 24
      %v1052 = vpop.permute.xlu0 %1051
      %1053 = vrot.lane.b32.xlu0 %v351, 24
      %v1054 = vpop.permute.xlu0 %1053
      %1055 = vrot.lane.b32.xlu0 %v408, 24
      %v1056 = vpop.permute.xlu0 %1055
      %1057 = vrot.lane.b32.xlu0 %v354, 24
      %v1058 = vpop.permute.xlu0 %1057
      %1059 = vrot.lane.b32.xlu0 %v409, 24
      %v1060 = vpop.permute.xlu0 %1059
      %1061 = vrot.lane.b32.xlu0 %v357, 24
      %v1062 = vpop.permute.xlu0 %1061
      %1063 = vrot.lane.b32.xlu0 %v410, 24
      %v1064 = vpop.permute.xlu0 %1063
      %1065 = vrot.lane.b32.xlu0 %v360, 24
      %v1066 = vpop.permute.xlu0 %1065
      %1067 = vrot.lane.b32.xlu0 %v411, 24
      %v1068 = vpop.permute.xlu0 %1067
      %1069 = vrot.lane.b32.xlu0 %v363, 24
      %v1070 = vpop.permute.xlu0 %1069
      %1071 = vrot.lane.b32.xlu0 %v498, 24
      %v1072 = vpop.permute.xlu0 %1071
      %1073 = vrot.lane.b32.xlu0 %v496, 24
      %v1074 = vpop.permute.xlu0 %1073
      %1075 = vrot.lane.b32.xlu0 %v396, 24
      %v1076 = vpop.permute.xlu0 %1075
      %1077 = vrot.lane.b32.xlu0 %v318, 24
      %v1078 = vpop.permute.xlu0 %1077
      %1111 = vrot.lane.b32.xlu0 %v255, 28
      %v1112 = vpop.permute.xlu0 %1111
      %1113 = vrot.lane.b32.xlu0 %v256, 28
      %v1114 = vpop.permute.xlu0 %1113
      %1115 = vrot.lane.b32.xlu0 %v257, 28
      %v1116 = vpop.permute.xlu0 %1115
      %1117 = vrot.lane.b32.xlu0 %v258, 28
      %v1118 = vpop.permute.xlu0 %1117
      %1119 = vrot.lane.b32.xlu0 %v259, 28
      %v1120 = vpop.permute.xlu0 %1119
      %1121 = vrot.lane.b32.xlu0 %v260, 28
      %v1122 = vpop.permute.xlu0 %1121
      %1123 = vrot.lane.b32.xlu0 %v261, 28
      %v1124 = vpop.permute.xlu0 %1123
      %1125 = vrot.lane.b32.xlu0 %v262, 28
      %v1126 = vpop.permute.xlu0 %1125
      %1127 = vrot.lane.b32.xlu0 %v263, 28
      %v1128 = vpop.permute.xlu0 %1127
      %1129 = vrot.lane.b32.xlu0 %v264, 28
      %v1130 = vpop.permute.xlu0 %1129
      %1131 = vrot.lane.b32.xlu0 %v265, 28
      %v1132 = vpop.permute.xlu0 %1131
      %1133 = vrot.lane.b32.xlu0 %v266, 28
      %v1134 = vpop.permute.xlu0 %1133
      %1135 = vrot.lane.b32.xlu0 %v267, 28
      %v1136 = vpop.permute.xlu0 %1135
      %1137 = vrot.lane.b32.xlu0 %v268, 28
      %v1138 = vpop.permute.xlu0 %1137
      %1139 = vrot.lane.b32.xlu0 %v269, 28
      %v1140 = vpop.permute.xlu0 %1139
      %1141 = vrot.lane.b32.xlu0 %v270, 28
      %v1142 = vpop.permute.xlu0 %1141
      %1143 = vrot.lane.b32.xlu0 %v271, 28
      %v1144 = vpop.permute.xlu0 %1143
      %1145 = vrot.lane.b32.xlu0 %v272, 28
      %v1146 = vpop.permute.xlu0 %1145
      %1147 = vrot.lane.b32.xlu0 %v273, 28
      %v1148 = vpop.permute.xlu0 %1147
      %1149 = vrot.lane.b32.xlu0 %v274, 28
      %v1150 = vpop.permute.xlu0 %1149
      %1151 = vrot.lane.b32.xlu0 %v275, 28
      %v1152 = vpop.permute.xlu0 %1151
      %1153 = vrot.lane.b32.xlu0 %v276, 28
      %v1154 = vpop.permute.xlu0 %1153
      %1155 = vrot.lane.b32.xlu0 %v277, 28
      %v1156 = vpop.permute.xlu0 %1155
      %1157 = vrot.lane.b32.xlu0 %v278, 28
      %v1158 = vpop.permute.xlu0 %1157
      %1159 = vrot.lane.b32.xlu0 %v279, 28
      %v1160 = vpop.permute.xlu0 %1159
      %1161 = vrot.lane.b32.xlu0 %v280, 28
      %v1162 = vpop.permute.xlu0 %1161
      %1163 = vrot.lane.b32.xlu0 %v281, 28
      %v1164 = vpop.permute.xlu0 %1163
      %1165 = vrot.lane.b32.xlu0 %v282, 28
      %v1166 = vpop.permute.xlu0 %1165
      %1167 = vrot.lane.b32.xlu0 %v283, 28
      %v1168 = vpop.permute.xlu0 %1167
      %1169 = vrot.lane.b32.xlu0 %v284, 28
      %v1170 = vpop.permute.xlu0 %1169
      %1171 = vrot.lane.b32.xlu0 0.0, 28
      %v1172 = vpop.permute.xlu0 %1171
      %1204 = vrot.lane.b32.xlu0 %v420, 32
      %v1205 = vpop.permute.xlu0 %1204
      %1206 = vrot.lane.b32.xlu0 %v478, 32
      %v1207 = vpop.permute.xlu0 %1206
      %1208 = vrot.lane.b32.xlu0 %v423, 32
      %v1209 = vpop.permute.xlu0 %1208
      %1210 = vrot.lane.b32.xlu0 %v479, 32
      %v1211 = vpop.permute.xlu0 %1210
      %1212 = vrot.lane.b32.xlu0 %v426, 32
      %v1213 = vpop.permute.xlu0 %1212
      %1214 = vrot.lane.b32.xlu0 %v480, 32
      %v1215 = vpop.permute.xlu0 %1214
      %1216 = vrot.lane.b32.xlu0 %v429, 32
      %v1217 = vpop.permute.xlu0 %1216
      %1218 = vrot.lane.b32.xlu0 %v481, 32
      %v1219 = vpop.permute.xlu0 %1218
      %1220 = vrot.lane.b32.xlu0 %v432, 32
      %v1221 = vpop.permute.xlu0 %1220
      %1222 = vrot.lane.b32.xlu0 %v482, 32
      %v1223 = vpop.permute.xlu0 %1222
      %1224 = vrot.lane.b32.xlu0 %v435, 32
      %v1225 = vpop.permute.xlu0 %1224
      %1226 = vrot.lane.b32.xlu0 %v483, 32
      %v1227 = vpop.permute.xlu0 %1226
      %1228 = vrot.lane.b32.xlu0 %v438, 32
      %v1229 = vpop.permute.xlu0 %1228
      %1230 = vrot.lane.b32.xlu0 %v484, 32
      %v1231 = vpop.permute.xlu0 %1230
      %1232 = vrot.lane.b32.xlu0 %v441, 32
      %v1233 = vpop.permute.xlu0 %1232
      %1234 = vrot.lane.b32.xlu0 %v485, 32
      %v1235 = vpop.permute.xlu0 %1234
      %1236 = vrot.lane.b32.xlu0 %v444, 32
      %v1237 = vpop.permute.xlu0 %1236
      %1238 = vrot.lane.b32.xlu0 %v486, 32
      %v1239 = vpop.permute.xlu0 %1238
      %1240 = vrot.lane.b32.xlu0 %v447, 32
      %v1241 = vpop.permute.xlu0 %1240
      %1242 = vrot.lane.b32.xlu0 %v487, 32
      %v1243 = vpop.permute.xlu0 %1242
      %1244 = vrot.lane.b32.xlu0 %v450, 32
      %v1245 = vpop.permute.xlu0 %1244
      %1246 = vrot.lane.b32.xlu0 %v488, 32
      %v1247 = vpop.permute.xlu0 %1246
      %1248 = vrot.lane.b32.xlu0 %v453, 32
      %v1249 = vpop.permute.xlu0 %1248
      %1250 = vrot.lane.b32.xlu0 %v489, 32
      %v1251 = vpop.permute.xlu0 %1250
      %1252 = vrot.lane.b32.xlu0 %v456, 32
      %v1253 = vpop.permute.xlu0 %1252
      %1254 = vrot.lane.b32.xlu0 %v490, 32
      %v1255 = vpop.permute.xlu0 %1254
      %1256 = vrot.lane.b32.xlu0 %v459, 32
      %v1257 = vpop.permute.xlu0 %1256
      %1258 = vrot.lane.b32.xlu0 %v491, 32
      %v1259 = vpop.permute.xlu0 %1258
      %1260 = vrot.lane.b32.xlu0 %v501, 32
      %v1261 = vpop.permute.xlu0 %1260
      %1262 = vrot.lane.b32.xlu0 %v503, 32
      %v1263 = vpop.permute.xlu0 %1262
      %1264 = vrot.lane.b32.xlu0 %v414, 32
      %v1265 = vpop.permute.xlu0 %1264
      %1266 = vrot.lane.b32.xlu0 %v476, 32
      %v1267 = vpop.permute.xlu0 %1266
      %vm1300 = vcmask 31744
      %v1301 = vsel %vm1300, %v396, %v505
      %v1302 = vsel %vm1300, %v318, %v505
      %v1303 = vsel %vm1300, %v397, %v507
      %v1304 = vsel %vm1300, %v321, %v509
      %v1305 = vsel %vm1300, %v398, %v511
      %v1306 = vsel %vm1300, %v324, %v513
      %v1307 = vsel %vm1300, %v399, %v515
      %v1308 = vsel %vm1300, %v327, %v517
      %v1309 = vsel %vm1300, %v400, %v519
      %v1310 = vsel %vm1300, %v330, %v521
      %v1311 = vsel %vm1300, %v401, %v523
      %v1312 = vsel %vm1300, %v333, %v525
      %v1313 = vsel %vm1300, %v402, %v527
      %v1314 = vsel %vm1300, %v336, %v529
      %v1315 = vsel %vm1300, %v403, %v531
      %v1316 = vsel %vm1300, %v339, %v533
      %v1317 = vsel %vm1300, %v404, %v535
      %v1318 = vsel %vm1300, %v342, %v537
      %v1319 = vsel %vm1300, %v405, %v539
      %v1320 = vsel %vm1300, %v345, %v541
      %v1321 = vsel %vm1300, %v406, %v543
      %v1322 = vsel %vm1300, %v348, %v545
      %v1323 = vsel %vm1300, %v407, %v547
      %v1324 = vsel %vm1300, %v351, %v549
      %v1325 = vsel %vm1300, %v408, %v551
      %v1326 = vsel %vm1300, %v354, %v553
      %v1327 = vsel %vm1300, %v409, %v555
      %v1328 = vsel %vm1300, %v357, %v557
      %v1329 = vsel %vm1300, %v410, %v559
      %v1330 = vsel %vm1300, %v360, %v561
      %v1331 = vsel %vm1300, %v411, %v563
      %v1332 = vsel %vm1300, %v363, %v565
      %vm1333 = vcmask 64512
      %v1334 = vsel %vm1333, %v1301, %v614
      %v1335 = vsel %vm1333, %v1302, %v616
      %v1336 = vsel %vm1333, %v1303, %v618
      %v1337 = vsel %vm1333, %v1304, %v620
      %v1338 = vsel %vm1333, %v1305, %v622
      %v1339 = vsel %vm1333, %v1306, %v624
      %v1340 = vsel %vm1333, %v1307, %v626
      %v1341 = vsel %vm1333, %v1308, %v628
      %v1342 = vsel %vm1333, %v1309, %v630
      %v1343 = vsel %vm1333, %v1310, %v632
      %v1344 = vsel %vm1333, %v1311, %v634
      %v1345 = vsel %vm1333, %v1312, %v636
      %v1346 = vsel %vm1333, %v1313, %v638
      %v1347 = vsel %vm1333, %v1314, %v640
      %v1348 = vsel %vm1333, %v1315, %v642
      %v1349 = vsel %vm1333, %v1316, %v644
      %v1350 = vsel %vm1333, %v1317, %v646
      %v1351 = vsel %vm1333, %v1318, %v648
      %v1352 = vsel %vm1333, %v1319, %v650
      %v1353 = vsel %vm1333, %v1320, %v652
      %v1354 = vsel %vm1333, %v1321, %v654
      %v1355 = vsel %vm1333, %v1322, %v656
      %v1356 = vsel %vm1333, %v1323, %v658
      %v1357 = vsel %vm1333, %v1324, %v660
      %v1358 = vsel %vm1333, %v1325, %v662
      %v1359 = vsel %vm1333, %v1326, %v664
      %v1360 = vsel %vm1333, %v1327, %v666
      %v1361 = vsel %vm1333, %v1328, %v668
      %v1362 = vsel %vm1333, %v1329, %v670
      %v1363 = vsel %vm1333, %v1330, %v672
      %v1364 = vsel %vm1333, %v1331, %v674
      %v1365 = vsel %vm1333, %v1332, %v676
      %vm1366 = vcmask 97280
      %v1367 = vsel %vm1366, %v1334, %v726
      %v1368 = vsel %vm1366, %v1335, %v728
      %v1369 = vsel %vm1366, %v1336, %v730
      %v1370 = vsel %vm1366, %v1337, %v732
      %v1371 = vsel %vm1366, %v1338, %v734
      %v1372 = vsel %vm1366, %v1339, %v736
      %v1373 = vsel %vm1366, %v1340, %v738
      %v1374 = vsel %vm1366, %v1341, %v740
      %v1375 = vsel %vm1366, %v1342, %v742
      %v1376 = vsel %vm1366, %v1343, %v744
      %v1377 = vsel %vm1366, %v1344, %v746
      %v1378 = vsel %vm1366, %v1345, %v748
      %v1379 = vsel %vm1366, %v1346, %v750
      %v1380 = vsel %vm1366, %v1347, %v752
      %v1381 = vsel %vm1366, %v1348, %v754
      %v1382 = vsel %vm1366, %v1349, %v756
      %v1383 = vsel %vm1366, %v1350, %v758
      %v1384 = vsel %vm1366, %v1351, %v760
      %v1385 = vsel %vm1366, %v1352, %v762
      %v1386 = vsel %vm1366, %v1353, %v764
      %v1387 = vsel %vm1366, %v1354, %v766
      %v1388 = vsel %vm1366, %v1355, %v768
      %v1389 = vsel %vm1366, %v1356, %v770
      %v1390 = vsel %vm1366, %v1357, %v772
      %v1391 = vsel %vm1366, %v1358, %v774
      %v1392 = vsel %vm1366, %v1359, %v776
      %v1393 = vsel %vm1366, %v1360, %v778
      %v1394 = vsel %vm1366, %v1361, %v780
      %v1395 = vsel %vm1366, %v1362, %v782
      %v1396 = vsel %vm1366, %v1363, %v784
      %v1397 = vsel %vm1366, %v1364, %v786
      %v1398 = vsel %vm1366, %v1365, %v788
      %vm1399 = vcmask 130048
      %v1400 = vsel %vm1399, %v1367, %v822
      %v1401 = vsel %vm1399, %v1368, %v824
      %v1402 = vsel %vm1399, %v1369, %v826
      %v1403 = vsel %vm1399, %v1370, %v828
      %v1404 = vsel %vm1399, %v1371, %v830
      %v1405 = vsel %vm1399, %v1372, %v832
      %v1406 = vsel %vm1399, %v1373, %v834
      %v1407 = vsel %vm1399, %v1374, %v836
      %v1408 = vsel %vm1399, %v1375, %v838
      %v1409 = vsel %vm1399, %v1376, %v840
      %v1410 = vsel %vm1399, %v1377, %v842
      %v1411 = vsel %vm1399, %v1378, %v844
      %v1412 = vsel %vm1399, %v1379, %v846
      %v1413 = vsel %vm1399, %v1380, %v848
      %v1414 = vsel %vm1399, %v1381, %v850
      %v1415 = vsel %vm1399, %v1382, %v852
      %v1416 = vsel %vm1399, %v1383, %v854
      %v1417 = vsel %vm1399, %v1384, %v856
      %v1418 = vsel %vm1399, %v1385, %v858
      %v1419 = vsel %vm1399, %v1386, %v860
      %v1420 = vsel %vm1399, %v1387, %v862
      %v1421 = vsel %vm1399, %v1388, %v864
      %v1422 = vsel %vm1399, %v1389, %v866
      %v1423 = vsel %vm1399, %v1390, %v868
      %v1424 = vsel %vm1399, %v1391, %v870
      %v1425 = vsel %vm1399, %v1392, %v872
      %v1426 = vsel %vm1399, %v1393, %v874
      %v1427 = vsel %vm1399, %v1394, %v876
      %v1428 = vsel %vm1399, %v1395, %v878
      %v1429 = vsel %vm1399, %v1396, %v880
      %v1430 = vsel %vm1399, %v1397, %v882
      %v1431 = vsel %vm1399, %v1398, %v884
      %vm1432 = vcmask 162816
      %v1433 = vsel %vm1432, %v1400, %v919
      %v1434 = vsel %vm1432, %v1401, %v921
      %v1435 = vsel %vm1432, %v1402, %v923
      %v1436 = vsel %vm1432, %v1403, %v925
      %v1437 = vsel %vm1432, %v1404, %v927
      %v1438 = vsel %vm1432, %v1405, %v929
      %v1439 = vsel %vm1432, %v1406, %v931
      %v1440 = vsel %vm1432, %v1407, %v933
      %v1441 = vsel %vm1432, %v1408, %v935
      %v1442 = vsel %vm1432, %v1409, %v937
      %v1443 = vsel %vm1432, %v1410, %v939
      %v1444 = vsel %vm1432, %v1411, %v941
      %v1445 = vsel %vm1432, %v1412, %v943
      %v1446 = vsel %vm1432, %v1413, %v945
      %v1447 = vsel %vm1432, %v1414, %v947
      %v1448 = vsel %vm1432, %v1415, %v949
      %v1449 = vsel %vm1432, %v1416, %v951
      %v1450 = vsel %vm1432, %v1417, %v953
      %v1451 = vsel %vm1432, %v1418, %v955
      %v1452 = vsel %vm1432, %v1419, %v957
      %v1453 = vsel %vm1432, %v1420, %v959
      %v1454 = vsel %vm1432, %v1421, %v961
      %v1455 = vsel %vm1432, %v1422, %v963
      %v1456 = vsel %vm1432, %v1423, %v965
      %v1457 = vsel %vm1432, %v1424, %v967
      %v1458 = vsel %vm1432, %v1425, %v969
      %v1459 = vsel %vm1432, %v1426, %v971
      %v1460 = vsel %vm1432, %v1427, %v973
      %v1461 = vsel %vm1432, %v1428, %v975
      %v1462 = vsel %vm1432, %v1429, %v977
      %v1463 = vsel %vm1432, %v1430, %v979
      %v1464 = vsel %vm1432, %v1431, %v981
      %vm1465 = vcmask 195584
      %v1466 = vsel %vm1465, %v1433, %v1016
      %v1467 = vsel %vm1465, %v1434, %v1018
      %v1468 = vsel %vm1465, %v1435, %v1020
      %v1469 = vsel %vm1465, %v1436, %v1022
      %v1470 = vsel %vm1465, %v1437, %v1024
      %v1471 = vsel %vm1465, %v1438, %v1026
      %v1472 = vsel %vm1465, %v1439, %v1028
      %v1473 = vsel %vm1465, %v1440, %v1030
      %v1474 = vsel %vm1465, %v1441, %v1032
      %v1475 = vsel %vm1465, %v1442, %v1034
      %v1476 = vsel %vm1465, %v1443, %v1036
      %v1477 = vsel %vm1465, %v1444, %v1038
      %v1478 = vsel %vm1465, %v1445, %v1040
      %v1479 = vsel %vm1465, %v1446, %v1042
      %v1480 = vsel %vm1465, %v1447, %v1044
      %v1481 = vsel %vm1465, %v1448, %v1046
      %v1482 = vsel %vm1465, %v1449, %v1048
      %v1483 = vsel %vm1465, %v1450, %v1050
      %v1484 = vsel %vm1465, %v1451, %v1052
      %v1485 = vsel %vm1465, %v1452, %v1054
      %v1486 = vsel %vm1465, %v1453, %v1056
      %v1487 = vsel %vm1465, %v1454, %v1058
      %v1488 = vsel %vm1465, %v1455, %v1060
      %v1489 = vsel %vm1465, %v1456, %v1062
      %v1490 = vsel %vm1465, %v1457, %v1064
      %v1491 = vsel %vm1465, %v1458, %v1066
      %v1492 = vsel %vm1465, %v1459, %v1068
      %v1493 = vsel %vm1465, %v1460, %v1070
      %v1494 = vsel %vm1465, %v1461, %v1072
      %v1495 = vsel %vm1465, %v1462, %v1074
      %v1496 = vsel %vm1465, %v1463, %v1076
      %v1497 = vsel %vm1465, %v1464, %v1078
      %vm1498 = vcmask 228352
      %v1499 = vsel %vm1498, %v1466, %v1112
      %v1500 = vsel %vm1498, %v1467, %v1114
      %v1501 = vsel %vm1498, %v1468, %v1116
      %v1502 = vsel %vm1498, %v1469, %v1118
      %v1503 = vsel %vm1498, %v1470, %v1120
      %v1504 = vsel %vm1498, %v1471, %v1122
      %v1505 = vsel %vm1498, %v1472, %v1124
      %v1506 = vsel %vm1498, %v1473, %v1126
      %v1507 = vsel %vm1498, %v1474, %v1128
      %v1508 = vsel %vm1498, %v1475, %v1130
      %v1509 = vsel %vm1498, %v1476, %v1132
      %v1510 = vsel %vm1498, %v1477, %v1134
      %v1511 = vsel %vm1498, %v1478, %v1136
      %v1512 = vsel %vm1498, %v1479, %v1138
      %v1513 = vsel %vm1498, %v1480, %v1140
      %v1514 = vsel %vm1498, %v1481, %v1142
      %v1515 = vsel %vm1498, %v1482, %v1144
      %v1516 = vsel %vm1498, %v1483, %v1146
      %v1517 = vsel %vm1498, %v1484, %v1148
      %v1518 = vsel %vm1498, %v1485, %v1150
      %v1519 = vsel %vm1498, %v1486, %v1152
      %v1520 = vsel %vm1498, %v1487, %v1154
      %v1521 = vsel %vm1498, %v1488, %v1156
      %v1522 = vsel %vm1498, %v1489, %v1158
      %v1523 = vsel %vm1498, %v1490, %v1160
      %v1524 = vsel %vm1498, %v1491, %v1162
      %v1525 = vsel %vm1498, %v1492, %v1164
      %v1526 = vsel %vm1498, %v1493, %v1166
      %v1527 = vsel %vm1498, %v1494, %v1168
      %v1528 = vsel %vm1498, %v1495, %v1170
      %v1529 = vsel %vm1498, %v1496, %v1172
      %v1530 = vsel %vm1498, %v1497, %v1172
      %vm1531 = vcmask 261120
      %v1532 = vsel %vm1531, %v1499, %v1205
      %v1533 = vsel %vm1531, %v1500, %v1207
      %v1534 = vsel %vm1531, %v1501, %v1209
      %v1535 = vsel %vm1531, %v1502, %v1211
      %v1536 = vsel %vm1531, %v1503, %v1213
      %v1537 = vsel %vm1531, %v1504, %v1215
      %v1538 = vsel %vm1531, %v1505, %v1217
      %v1539 = vsel %vm1531, %v1506, %v1219
      %v1540 = vsel %vm1531, %v1507, %v1221
      %v1541 = vsel %vm1531, %v1508, %v1223
      %v1542 = vsel %vm1531, %v1509, %v1225
      %v1543 = vsel %vm1531, %v1510, %v1227
      %v1544 = vsel %vm1531, %v1511, %v1229
      %v1545 = vsel %vm1531, %v1512, %v1231
      %v1546 = vsel %vm1531, %v1513, %v1233
      %v1547 = vsel %vm1531, %v1514, %v1235
      %v1548 = vsel %vm1531, %v1515, %v1237
      %v1549 = vsel %vm1531, %v1516, %v1239
      %v1550 = vsel %vm1531, %v1517, %v1241
      %v1551 = vsel %vm1531, %v1518, %v1243
      %v1552 = vsel %vm1531, %v1519, %v1245
      %v1553 = vsel %vm1531, %v1520, %v1247
      %v1554 = vsel %vm1531, %v1521, %v1249
      %v1555 = vsel %vm1531, %v1522, %v1251
      %v1556 = vsel %vm1531, %v1523, %v1253
      %v1557 = vsel %vm1531, %v1524, %v1255
      %v1558 = vsel %vm1531, %v1525, %v1257
      %v1559 = vsel %vm1531, %v1526, %v1259
      %v1560 = vsel %vm1531, %v1527, %v1261
      %v1561 = vsel %vm1531, %v1528, %v1263
      %v1562 = vsel %vm1531, %v1529, %v1265
      %v1563 = vsel %vm1531, %v1530, %v1267
      %v1564 = vpack.c.bf16 %v1533, %v1532
      %v1565 = vpack.c.bf16 %v1535, %v1534
      %v1566 = vpack.c.bf16 %v1537, %v1536
      %v1567 = vpack.c.bf16 %v1539, %v1538
      %v1568 = vpack.c.bf16 %v1541, %v1540
      %v1569 = vpack.c.bf16 %v1543, %v1542
      %v1570 = vpack.c.bf16 %v1545, %v1544
      %v1571 = vpack.c.bf16 %v1547, %v1546
      %v1572 = vpack.c.bf16 %v1549, %v1548
      %v1573 = vpack.c.bf16 %v1551, %v1550
      %v1574 = vpack.c.bf16 %v1553, %v1552
      %v1575 = vpack.c.bf16 %v1555, %v1554
      %v1576 = vpack.c.bf16 %v1557, %v1556
      %v1577 = vpack.c.bf16 %v1559, %v1558
      %v1578 = vpack.c.bf16 %v1561, %v1560
      %v1579 = vpack.c.bf16 %v1563, %v1562
      %v1580 = vld [vmem:[%s1] sm:$0xff]
      %v1581 = vld [vmem:[%s1 + $0x8] sm:$0xff]
      %v1582 = vld [vmem:[%s1 + $0x10] sm:$0xf]
      %v1583 = vld [vmem:[%s1 + $0x14] sm:$0xff]
      %v1584 = vld [vmem:[%s1 + $0x1c] sm:$0xff]
      %v1585 = vld [vmem:[%s1 + $0x24] sm:$0xf]
      %v1586 = vld [vmem:[%s1 + $0x28] sm:$0xff]
      %v1587 = vld [vmem:[%s1 + $0x30] sm:$0xff]
      %v1588 = vld [vmem:[%s1 + $0x38] sm:$0xf]
      %v1589 = vld [vmem:[%s1 + $0x3c] sm:$0xff]
      %v1590 = vld [vmem:[%s1 + $0x44] sm:$0xff]
      %v1591 = vld [vmem:[%s1 + $0x4c] sm:$0xf]
      %v1592 = vld [vmem:[%s1 + $0x50] sm:$0x33]
      %v1593 = vld [vmem:[%s1 + $0x58] sm:$0x33]
      %v1594 = vld [vmem:[%s1 + $0x60] sm:$0x3]
      %v1610 = vunpack.c.l.b16 %v1580
      %v1611 = vunpack.c.h.b16 %v1580
      %v1612 = vunpack.c.l.b16 %v1581
      %v1613 = vunpack.c.h.b16 %v1581
      %v1614 = vunpack.c.l.b16 %v1582
      %v1615 = vunpack.c.l.b16 %v1583
      %v1616 = vunpack.c.h.b16 %v1583
      %v1617 = vunpack.c.l.b16 %v1584
      %v1618 = vunpack.c.h.b16 %v1584
      %v1619 = vunpack.c.l.b16 %v1585
      %v1620 = vunpack.c.l.b16 %v1586
      %v1621 = vunpack.c.h.b16 %v1586
      %v1622 = vunpack.c.l.b16 %v1587
      %v1623 = vunpack.c.h.b16 %v1587
      %v1624 = vunpack.c.l.b16 %v1588
      %v1625 = vunpack.c.l.b16 %v1589
      %v1626 = vunpack.c.h.b16 %v1589
      %v1627 = vunpack.c.l.b16 %v1590
      %v1628 = vunpack.c.h.b16 %v1590
      %v1629 = vunpack.c.l.b16 %v1591
      %v1630 = vunpack.c.l.b16 %v1592
      %v1631 = vunpack.c.h.b16 %v1592
      %v1632 = vunpack.c.l.b16 %v1593
      %v1633 = vunpack.c.h.b16 %v1593
      %v1634 = vunpack.c.l.b16 %v1594
      %v1635 = vpack.c.b16 %v1615, %v1610
      %v1636 = vpack.c.b16 %v1616, %v1611
      %v1637 = vpack.c.b16 %v1617, %v1612
      %v1638 = vpack.c.b16 %v1618, %v1613
      %v1639 = vpack.c.b16 %v1619, %v1614
      %v1640 = vpack.c.b16 %v1625, %v1620
      %v1641 = vpack.c.b16 %v1626, %v1621
      %v1642 = vpack.c.b16 %v1627, %v1622
      %v1643 = vpack.c.b16 %v1628, %v1623
      %v1644 = vpack.c.b16 %v1629, %v1624
      %v1645 = vpack.c.b16 %v1630, %v1630
      %v1646 = vpack.c.b16 %v1631, %v1631
      %v1647 = vpack.c.b16 %v1632, %v1632
      %v1648 = vpack.c.b16 %v1633, %v1633
      %v1649 = vpack.c.b16 %v1634, %v1634
      %vm1660 = vcmask 293888
      %v1662 = vsel %vm1660, %v1564, 0
      %v1665 = vsel %vm1660, %v1565, 0
      %v1668 = vsel %vm1660, %v1566, 0
      %v1671 = vsel %vm1660, %v1567, 0
      %v1674 = vsel %vm1660, %v1568, 0
      %v1677 = vsel %vm1660, %v1569, 0
      %v1680 = vsel %vm1660, %v1570, 0
      %v1683 = vsel %vm1660, %v1571, 0
      %v1686 = vsel %vm1660, %v1572, 0
      %v1689 = vsel %vm1660, %v1573, 0
      %v1692 = vsel %vm1660, %v1574, 0
      %v1695 = vsel %vm1660, %v1575, 0
      %v1698 = vsel %vm1660, %v1576, 0
      %v1701 = vsel %vm1660, %v1577, 0
      %v1704 = vsel %vm1660, %v1578, 0
      %v1707 = vsel %vm1660, %v1579, 0
      %vm1709 = vcmask 1041408
      %v1711 = vsel %vm1709, %v1645, 0
      %v1714 = vsel %vm1709, %v1646, 0
      %v1717 = vsel %vm1709, %v1647, 0
      %v1720 = vsel %vm1709, %v1648, 0
      %v1723 = vsel %vm1709, %v1649, 0
      %1725 = vmatprep.subr.bf16.mxu0 %v1636
      %1726 = vmatpush1.bf16.msra.mxu0 %v1635
      %1727 = vmatprep.subr.bf16.mxu0 %v1641
      %1728 = vmatpush1.bf16.msra.mxu0 %v1640
      %1729 = vmatprep.subr.bf16.mxu0 %v1714
      %1730 = vmatpush1.bf16.msra.mxu0 %v1711
      %1731 = vmatprep.subr.bf16.mxu0 0
      %1732 = vmatpush1.bf16.msra.mxu0 0
      %1733 = vmatprep.subr.bf16.mxu0 0
      %1734 = vmatpush1.bf16.msra.mxu0 0
      %1735 = vmatprep.subr.bf16.mxu0 0
      %1736 = vmatpush1.bf16.msra.mxu0 0
      %1737 = vmatprep.subr.bf16.mxu0 0
      %1738 = vmatpush1.bf16.msra.mxu0 0
      %1739 = vmatprep.subr.bf16.mxu0 0
      %1740 = vmatpush1.bf16.msra.mxu0 0
      %1741 = vmatprep.subr.bf16.mxu0 0
      %1742 = vmatpush1.bf16.msra.mxu0 0
      %1743 = vmatprep.subr.bf16.mxu0 0
      %1744 = vmatpush1.bf16.msra.mxu0 0
      %1745 = vmatprep.subr.bf16.mxu0 0
      %1746 = vmatpush1.bf16.msra.mxu0 0
      %1747 = vmatprep.subr.bf16.mxu0 0
      %1748 = vmatpush1.bf16.msra.mxu0 0
      %1749 = vmatprep.subr.bf16.mxu0 0
      %1750 = vmatpush1.bf16.msra.mxu0 0
      %1751 = vmatprep.subr.bf16.mxu0 0
      %1752 = vmatpush1.bf16.msra.mxu0 0
      %1753 = vmatprep.subr.bf16.mxu0 0
      %1754 = vmatpush1.bf16.msra.mxu0 0
      %1755 = vmatprep.subr.bf16.mxu0 0
      %1756 = vmatpush1.bf16.msra.mxu0 0
      %1757 = vmatprep.mubr.bf16.mxu0 0
      %1758 = vmatmul.mubr.bf16.gmra.mrb[0].mxu0 %v1662
      %v1759 = vpop.f32.mrb[0].mxu0
      %v1760 = vadd.f32 0.0, %v1759
      %v1761 = vpop.f32.mrb[0].mxu0
      %v1762 = vadd.f32 0.0, %v1761
      %v1763 = vpop.f32.mrb[0].mxu0
      %v1764 = vadd.f32 0.0, %v1763
      %v1765 = vpop.f32.mrb[0].mxu0
      %v1766 = vadd.f32 0.0, %v1765
      %1767 = vmatprep.mubr.bf16.mxu0 0
      %1768 = vmatmul.mubr.bf16.gmra.mrb[0].mxu0 %v1665
      %v1769 = vpop.f32.mrb[0].mxu0
      %v1770 = vadd.f32 0.0, %v1769
      %v1771 = vpop.f32.mrb[0].mxu0
      %v1772 = vadd.f32 0.0, %v1771
      %v1773 = vpop.f32.mrb[0].mxu0
      %v1774 = vadd.f32 0.0, %v1773
      %v1775 = vpop.f32.mrb[0].mxu0
      %v1776 = vadd.f32 0.0, %v1775
      %1777 = vmatprep.mubr.bf16.mxu0 0
      %1778 = vmatmul.mubr.bf16.gmra.mrb[0].mxu0 %v1668
      %v1779 = vpop.f32.mrb[0].mxu0
      %v1780 = vadd.f32 0.0, %v1779
      %v1781 = vpop.f32.mrb[0].mxu0
      %v1782 = vadd.f32 0.0, %v1781
      %v1783 = vpop.f32.mrb[0].mxu0
      %v1784 = vadd.f32 0.0, %v1783
      %v1785 = vpop.f32.mrb[0].mxu0
      %v1786 = vadd.f32 0.0, %v1785
      %1787 = vmatprep.mubr.bf16.mxu0 0
      %1788 = vmatmul.mubr.bf16.gmra.mrb[0].mxu0 %v1671
      %v1789 = vpop.f32.mrb[0].mxu0
      %v1790 = vadd.f32 0.0, %v1789
      %v1791 = vpop.f32.mrb[0].mxu0
      %v1792 = vadd.f32 0.0, %v1791
      %v1793 = vpop.f32.mrb[0].mxu0
      %v1794 = vadd.f32 0.0, %v1793
      %v1795 = vpop.f32.mrb[0].mxu0
      %v1796 = vadd.f32 0.0, %v1795
      %1797 = vmatprep.mubr.bf16.mxu0 0
      %1798 = vmatmul.mubr.bf16.gmra.mrb[0].mxu0 %v1674
      %v1799 = vpop.f32.mrb[0].mxu0
      %v1800 = vadd.f32 0.0, %v1799
      %v1801 = vpop.f32.mrb[0].mxu0
      %v1802 = vadd.f32 0.0, %v1801
      %v1803 = vpop.f32.mrb[0].mxu0
      %v1804 = vadd.f32 0.0, %v1803
      %v1805 = vpop.f32.mrb[0].mxu0
      %v1806 = vadd.f32 0.0, %v1805
      %1807 = vmatprep.mubr.bf16.mxu0 0
      %1808 = vmatmul.mubr.bf16.gmra.mrb[0].mxu0 %v1677
      %v1809 = vpop.f32.mrb[0].mxu0
      %v1810 = vadd.f32 0.0, %v1809
      %v1811 = vpop.f32.mrb[0].mxu0
      %v1812 = vadd.f32 0.0, %v1811
      %v1813 = vpop.f32.mrb[0].mxu0
      %v1814 = vadd.f32 0.0, %v1813
      %v1815 = vpop.f32.mrb[0].mxu0
      %v1816 = vadd.f32 0.0, %v1815
      %1817 = vmatprep.mubr.bf16.mxu0 0
      %1818 = vmatmul.mubr.bf16.gmra.mrb[0].mxu0 %v1680
      %v1819 = vpop.f32.mrb[0].mxu0
      %v1820 = vadd.f32 0.0, %v1819
      %v1821 = vpop.f32.mrb[0].mxu0
      %v1822 = vadd.f32 0.0, %v1821
      %v1823 = vpop.f32.mrb[0].mxu0
      %v1824 = vadd.f32 0.0, %v1823
      %v1825 = vpop.f32.mrb[0].mxu0
      %v1826 = vadd.f32 0.0, %v1825
      %1827 = vmatprep.mubr.bf16.mxu0 0
      %1828 = vmatmul.mubr.bf16.gmra.mrb[0].mxu0 %v1683
      %v1829 = vpop.f32.mrb[0].mxu0
      %v1830 = vadd.f32 0.0, %v1829
      %v1831 = vpop.f32.mrb[0].mxu0
      %v1832 = vadd.f32 0.0, %v1831
      %v1833 = vpop.f32.mrb[0].mxu0
      %v1834 = vadd.f32 0.0, %v1833
      %v1835 = vpop.f32.mrb[0].mxu0
      %v1836 = vadd.f32 0.0, %v1835
      %1837 = vmatprep.mubr.bf16.mxu0 0
      %1838 = vmatmul.mubr.bf16.gmra.mrb[0].mxu0 %v1686
      %v1839 = vpop.f32.mrb[0].mxu0
      %v1840 = vadd.f32 0.0, %v1839
      %v1841 = vpop.f32.mrb[0].mxu0
      %v1842 = vadd.f32 0.0, %v1841
      %v1843 = vpop.f32.mrb[0].mxu0
      %v1844 = vadd.f32 0.0, %v1843
      %v1845 = vpop.f32.mrb[0].mxu0
      %v1846 = vadd.f32 0.0, %v1845
      %1847 = vmatprep.mubr.bf16.mxu0 0
      %1848 = vmatmul.mubr.bf16.gmra.mrb[0].mxu0 %v1689
      %v1849 = vpop.f32.mrb[0].mxu0
      %v1850 = vadd.f32 0.0, %v1849
      %v1851 = vpop.f32.mrb[0].mxu0
      %v1852 = vadd.f32 0.0, %v1851
      %v1853 = vpop.f32.mrb[0].mxu0
      %v1854 = vadd.f32 0.0, %v1853
      %v1855 = vpop.f32.mrb[0].mxu0
      %v1856 = vadd.f32 0.0, %v1855
      %1857 = vmatprep.mubr.bf16.mxu0 0
      %1858 = vmatmul.mubr.bf16.gmra.mrb[0].mxu0 %v1692
      %v1859 = vpop.f32.mrb[0].mxu0
      %v1860 = vadd.f32 0.0, %v1859
      %v1861 = vpop.f32.mrb[0].mxu0
      %v1862 = vadd.f32 0.0, %v1861
      %v1863 = vpop.f32.mrb[0].mxu0
      %v1864 = vadd.f32 0.0, %v1863
      %v1865 = vpop.f32.mrb[0].mxu0
      %v1866 = vadd.f32 0.0, %v1865
      %1867 = vmatprep.mubr.bf16.mxu0 0
      %1868 = vmatmul.mubr.bf16.gmra.mrb[0].mxu0 %v1695
      %v1869 = vpop.f32.mrb[0].mxu0
      %v1870 = vadd.f32 0.0, %v1869
      %v1871 = vpop.f32.mrb[0].mxu0
      %v1872 = vadd.f32 0.0, %v1871
      %v1873 = vpop.f32.mrb[0].mxu0
      %v1874 = vadd.f32 0.0, %v1873
      %v1875 = vpop.f32.mrb[0].mxu0
      %v1876 = vadd.f32 0.0, %v1875
      %1877 = vmatprep.mubr.bf16.mxu0 0
      %1878 = vmatmul.mubr.bf16.gmra.mrb[0].mxu0 %v1698
      %v1879 = vpop.f32.mrb[0].mxu0
      %v1880 = vadd.f32 0.0, %v1879
      %v1881 = vpop.f32.mrb[0].mxu0
      %v1882 = vadd.f32 0.0, %v1881
      %v1883 = vpop.f32.mrb[0].mxu0
      %v1884 = vadd.f32 0.0, %v1883
      %v1885 = vpop.f32.mrb[0].mxu0
      %v1886 = vadd.f32 0.0, %v1885
      %1887 = vmatprep.mubr.bf16.mxu0 0
      %1888 = vmatmul.mubr.bf16.gmra.mrb[0].mxu0 %v1701
      %v1889 = vpop.f32.mrb[0].mxu0
      %v1890 = vadd.f32 0.0, %v1889
      %v1891 = vpop.f32.mrb[0].mxu0
      %v1892 = vadd.f32 0.0, %v1891
      %v1893 = vpop.f32.mrb[0].mxu0
      %v1894 = vadd.f32 0.0, %v1893
      %v1895 = vpop.f32.mrb[0].mxu0
      %v1896 = vadd.f32 0.0, %v1895
      %1897 = vmatprep.mubr.bf16.mxu0 0
      %1898 = vmatmul.mubr.bf16.gmra.mrb[0].mxu0 %v1704
      %v1899 = vpop.f32.mrb[0].mxu0
      %v1900 = vadd.f32 0.0, %v1899
      %v1901 = vpop.f32.mrb[0].mxu0
      %v1902 = vadd.f32 0.0, %v1901
      %v1903 = vpop.f32.mrb[0].mxu0
      %v1904 = vadd.f32 0.0, %v1903
      %v1905 = vpop.f32.mrb[0].mxu0
      %v1906 = vadd.f32 0.0, %v1905
      %1907 = vmatprep.mubr.bf16.mxu0 0
      %1908 = vmatmul.mubr.bf16.gmra.mrb[0].mxu0 %v1707
      %v1909 = vpop.f32.mrb[0].mxu0
      %v1910 = vadd.f32 0.0, %v1909
      %v1911 = vpop.f32.mrb[0].mxu0
      %v1912 = vadd.f32 0.0, %v1911
      %v1913 = vpop.f32.mrb[0].mxu0
      %v1914 = vadd.f32 0.0, %v1913
      %v1915 = vpop.f32.mrb[0].mxu0
      %v1916 = vadd.f32 0.0, %v1915
      %1917 = vdwg.mxu0
      %1918 = vmatprep.subr.bf16.mxu0 %v1638
      %1919 = vmatpush1.bf16.msra.mxu0 %v1637
      %1920 = vmatprep.subr.bf16.mxu0 %v1643
      %1921 = vmatpush1.bf16.msra.mxu0 %v1642
      %1922 = vmatprep.subr.bf16.mxu0 %v1720
      %1923 = vmatpush1.bf16.msra.mxu0 %v1717
      %1924 = vmatprep.subr.bf16.mxu0 0
      %1925 = vmatpush1.bf16.msra.mxu0 0
      %1926 = vmatprep.subr.bf16.mxu0 0
      %1927 = vmatpush1.bf16.msra.mxu0 0
      %1928 = vmatprep.subr.bf16.mxu0 0
      %1929 = vmatpush1.bf16.msra.mxu0 0
      %1930 = vmatprep.subr.bf16.mxu0 0
      %1931 = vmatpush1.bf16.msra.mxu0 0
      %1932 = vmatprep.subr.bf16.mxu0 0
      %1933 = vmatpush1.bf16.msra.mxu0 0
      %1934 = vmatprep.subr.bf16.mxu0 0
      %1935 = vmatpush1.bf16.msra.mxu0 0
      %1936 = vmatprep.subr.bf16.mxu0 0
      %1937 = vmatpush1.bf16.msra.mxu0 0
      %1938 = vmatprep.subr.bf16.mxu0 0
      %1939 = vmatpush1.bf16.msra.mxu0 0
      %1940 = vmatprep.subr.bf16.mxu0 0
      %1941 = vmatpush1.bf16.msra.mxu0 0
      %1942 = vmatprep.subr.bf16.mxu0 0
      %1943 = vmatpush1.bf16.msra.mxu0 0
      %1944 = vmatprep.subr.bf16.mxu0 0
      %1945 = vmatpush1.bf16.msra.mxu0 0
      %1946 = vmatprep.subr.bf16.mxu0 0
      %1947 = vmatpush1.bf16.msra.mxu0 0
      %1948 = vmatprep.subr.bf16.mxu0 0
      %1949 = vmatpush1.bf16.msra.mxu0 0
      %1950 = vmatprep.mubr.bf16.mxu0 0
      %1951 = vmatmul.mubr.bf16.gmra.mrb[0].mxu0 %v1662
      %v1952 = vpop.f32.mrb[0].mxu0
      %v1953 = vadd.f32 0.0, %v1952
      %v1954 = vpop.f32.mrb[0].mxu0
      %v1955 = vadd.f32 0.0, %v1954
      %v1956 = vpop.f32.mrb[0].mxu0
      %v1957 = vadd.f32 0.0, %v1956
      %v1958 = vpop.f32.mrb[0].mxu0
      %v1959 = vadd.f32 0.0, %v1958
      %1960 = vmatprep.mubr.bf16.mxu0 0
      %1961 = vmatmul.mubr.bf16.gmra.mrb[0].mxu0 %v1665
      %v1962 = vpop.f32.mrb[0].mxu0
      %v1963 = vadd.f32 0.0, %v1962
      %v1964 = vpop.f32.mrb[0].mxu0
      %v1965 = vadd.f32 0.0, %v1964
      %v1966 = vpop.f32.mrb[0].mxu0
      %v1967 = vadd.f32 0.0, %v1966
      %v1968 = vpop.f32.mrb[0].mxu0
      %v1969 = vadd.f32 0.0, %v1968
      %1970 = vmatprep.mubr.bf16.mxu0 0
      %1971 = vmatmul.mubr.bf16.gmra.mrb[0].mxu0 %v1668
      %v1972 = vpop.f32.mrb[0].mxu0
      %v1973 = vadd.f32 0.0, %v1972
      %v1974 = vpop.f32.mrb[0].mxu0
      %v1975 = vadd.f32 0.0, %v1974
      %v1976 = vpop.f32.mrb[0].mxu0
      %v1977 = vadd.f32 0.0, %v1976
      %v1978 = vpop.f32.mrb[0].mxu0
      %v1979 = vadd.f32 0.0, %v1978
      %1980 = vmatprep.mubr.bf16.mxu0 0
      %1981 = vmatmul.mubr.bf16.gmra.mrb[0].mxu0 %v1671
      %v1982 = vpop.f32.mrb[0].mxu0
      %v1983 = vadd.f32 0.0, %v1982
      %v1984 = vpop.f32.mrb[0].mxu0
      %v1985 = vadd.f32 0.0, %v1984
      %v1986 = vpop.f32.mrb[0].mxu0
      %v1987 = vadd.f32 0.0, %v1986
      %v1988 = vpop.f32.mrb[0].mxu0
      %v1989 = vadd.f32 0.0, %v1988
      %1990 = vmatprep.mubr.bf16.mxu0 0
      %1991 = vmatmul.mubr.bf16.gmra.mrb[0].mxu0 %v1674
      %v1992 = vpop.f32.mrb[0].mxu0
      %v1993 = vadd.f32 0.0, %v1992
      %v1994 = vpop.f32.mrb[0].mxu0
      %v1995 = vadd.f32 0.0, %v1994
      %v1996 = vpop.f32.mrb[0].mxu0
      %v1997 = vadd.f32 0.0, %v1996
      %v1998 = vpop.f32.mrb[0].mxu0
      %v1999 = vadd.f32 0.0, %v1998
      %2000 = vmatprep.mubr.bf16.mxu0 0
      %2001 = vmatmul.mubr.bf16.gmra.mrb[0].mxu0 %v1677
      %v2002 = vpop.f32.mrb[0].mxu0
      %v2003 = vadd.f32 0.0, %v2002
      %v2004 = vpop.f32.mrb[0].mxu0
      %v2005 = vadd.f32 0.0, %v2004
      %v2006 = vpop.f32.mrb[0].mxu0
      %v2007 = vadd.f32 0.0, %v2006
      %v2008 = vpop.f32.mrb[0].mxu0
      %v2009 = vadd.f32 0.0, %v2008
      %2010 = vmatprep.mubr.bf16.mxu0 0
      %2011 = vmatmul.mubr.bf16.gmra.mrb[0].mxu0 %v1680
      %v2012 = vpop.f32.mrb[0].mxu0
      %v2013 = vadd.f32 0.0, %v2012
      %v2014 = vpop.f32.mrb[0].mxu0
      %v2015 = vadd.f32 0.0, %v2014
      %v2016 = vpop.f32.mrb[0].mxu0
      %v2017 = vadd.f32 0.0, %v2016
      %v2018 = vpop.f32.mrb[0].mxu0
      %v2019 = vadd.f32 0.0, %v2018
      %2020 = vmatprep.mubr.bf16.mxu0 0
      %2021 = vmatmul.mubr.bf16.gmra.mrb[0].mxu0 %v1683
      %v2022 = vpop.f32.mrb[0].mxu0
      %v2023 = vadd.f32 0.0, %v2022
      %v2024 = vpop.f32.mrb[0].mxu0
      %v2025 = vadd.f32 0.0, %v2024
      %v2026 = vpop.f32.mrb[0].mxu0
      %v2027 = vadd.f32 0.0, %v2026
      %v2028 = vpop.f32.mrb[0].mxu0
      %v2029 = vadd.f32 0.0, %v2028
      %2030 = vmatprep.mubr.bf16.mxu0 0
      %2031 = vmatmul.mubr.bf16.gmra.mrb[0].mxu0 %v1686
      %v2032 = vpop.f32.mrb[0].mxu0
      %v2033 = vadd.f32 0.0, %v2032
      %v2034 = vpop.f32.mrb[0].mxu0
      %v2035 = vadd.f32 0.0, %v2034
      %v2036 = vpop.f32.mrb[0].mxu0
      %v2037 = vadd.f32 0.0, %v2036
      %v2038 = vpop.f32.mrb[0].mxu0
      %v2039 = vadd.f32 0.0, %v2038
      %2040 = vmatprep.mubr.bf16.mxu0 0
      %2041 = vmatmul.mubr.bf16.gmra.mrb[0].mxu0 %v1689
      %v2042 = vpop.f32.mrb[0].mxu0
      %v2043 = vadd.f32 0.0, %v2042
      %v2044 = vpop.f32.mrb[0].mxu0
      %v2045 = vadd.f32 0.0, %v2044
      %v2046 = vpop.f32.mrb[0].mxu0
      %v2047 = vadd.f32 0.0, %v2046
      %v2048 = vpop.f32.mrb[0].mxu0
      %v2049 = vadd.f32 0.0, %v2048
      %2050 = vmatprep.mubr.bf16.mxu0 0
      %2051 = vmatmul.mubr.bf16.gmra.mrb[0].mxu0 %v1692
      %v2052 = vpop.f32.mrb[0].mxu0
      %v2053 = vadd.f32 0.0, %v2052
      %v2054 = vpop.f32.mrb[0].mxu0
      %v2055 = vadd.f32 0.0, %v2054
      %v2056 = vpop.f32.mrb[0].mxu0
      %v2057 = vadd.f32 0.0, %v2056
      %v2058 = vpop.f32.mrb[0].mxu0
      %v2059 = vadd.f32 0.0, %v2058
      %2060 = vmatprep.mubr.bf16.mxu0 0
      %2061 = vmatmul.mubr.bf16.gmra.mrb[0].mxu0 %v1695
      %v2062 = vpop.f32.mrb[0].mxu0
      %v2063 = vadd.f32 0.0, %v2062
      %v2064 = vpop.f32.mrb[0].mxu0
      %v2065 = vadd.f32 0.0, %v2064
      %v2066 = vpop.f32.mrb[0].mxu0
      %v2067 = vadd.f32 0.0, %v2066
      %v2068 = vpop.f32.mrb[0].mxu0
      %v2069 = vadd.f32 0.0, %v2068
      %2070 = vmatprep.mubr.bf16.mxu0 0
      %2071 = vmatmul.mubr.bf16.gmra.mrb[0].mxu0 %v1698
      %v2072 = vpop.f32.mrb[0].mxu0
      %v2073 = vadd.f32 0.0, %v2072
      %v2074 = vpop.f32.mrb[0].mxu0
      %v2075 = vadd.f32 0.0, %v2074
      %v2076 = vpop.f32.mrb[0].mxu0
      %v2077 = vadd.f32 0.0, %v2076
      %v2078 = vpop.f32.mrb[0].mxu0
      %v2079 = vadd.f32 0.0, %v2078
      %2080 = vmatprep.mubr.bf16.mxu0 0
      %2081 = vmatmul.mubr.bf16.gmra.mrb[0].mxu0 %v1701
      %v2082 = vpop.f32.mrb[0].mxu0
      %v2083 = vadd.f32 0.0, %v2082
      %v2084 = vpop.f32.mrb[0].mxu0
      %v2085 = vadd.f32 0.0, %v2084
      %v2086 = vpop.f32.mrb[0].mxu0
      %v2087 = vadd.f32 0.0, %v2086
      %v2088 = vpop.f32.mrb[0].mxu0
      %v2089 = vadd.f32 0.0, %v2088
      %2090 = vmatprep.mubr.bf16.mxu0 0
      %2091 = vmatmul.mubr.bf16.gmra.mrb[0].mxu0 %v1704
      %v2092 = vpop.f32.mrb[0].mxu0
      %v2093 = vadd.f32 0.0, %v2092
      %v2094 = vpop.f32.mrb[0].mxu0
      %v2095 = vadd.f32 0.0, %v2094
      %v2096 = vpop.f32.mrb[0].mxu0
      %v2097 = vadd.f32 0.0, %v2096
      %v2098 = vpop.f32.mrb[0].mxu0
      %v2099 = vadd.f32 0.0, %v2098
      %2100 = vmatprep.mubr.bf16.mxu0 0
      %2101 = vmatmul.mubr.bf16.gmra.mrb[0].mxu0 %v1707
      %v2102 = vpop.f32.mrb[0].mxu0
      %v2103 = vadd.f32 0.0, %v2102
      %v2104 = vpop.f32.mrb[0].mxu0
      %v2105 = vadd.f32 0.0, %v2104
      %v2106 = vpop.f32.mrb[0].mxu0
      %v2107 = vadd.f32 0.0, %v2106
      %v2108 = vpop.f32.mrb[0].mxu0
      %v2109 = vadd.f32 0.0, %v2108
      %2110 = vdwg.mxu0
      %2111 = vmatprep.subr.bf16.mxu0 0
      %2112 = vmatpush1.bf16.msra.mxu0 %v1639
      %2113 = vmatprep.subr.bf16.mxu0 0
      %2114 = vmatpush1.bf16.msra.mxu0 %v1644
      %2115 = vmatprep.subr.bf16.mxu0 0
      %2116 = vmatpush1.bf16.msra.mxu0 %v1723
      %2117 = vmatprep.subr.bf16.mxu0 0
      %2118 = vmatpush1.bf16.msra.mxu0 0
      %2119 = vmatprep.subr.bf16.mxu0 0
      %2120 = vmatpush1.bf16.msra.mxu0 0
      %2121 = vmatprep.subr.bf16.mxu0 0
      %2122 = vmatpush1.bf16.msra.mxu0 0
      %2123 = vmatprep.subr.bf16.mxu0 0
      %2124 = vmatpush1.bf16.msra.mxu0 0
      %2125 = vmatprep.subr.bf16.mxu0 0
      %2126 = vmatpush1.bf16.msra.mxu0 0
      %2127 = vmatprep.subr.bf16.mxu0 0
      %2128 = vmatpush1.bf16.msra.mxu0 0
      %2129 = vmatprep.subr.bf16.mxu0 0
      %2130 = vmatpush1.bf16.msra.mxu0 0
      %2131 = vmatprep.subr.bf16.mxu0 0
      %2132 = vmatpush1.bf16.msra.mxu0 0
      %2133 = vmatprep.subr.bf16.mxu0 0
      %2134 = vmatpush1.bf16.msra.mxu0 0
      %2135 = vmatprep.subr.bf16.mxu0 0
      %2136 = vmatpush1.bf16.msra.mxu0 0
      %2137 = vmatprep.subr.bf16.mxu0 0
      %2138 = vmatpush1.bf16.msra.mxu0 0
      %2139 = vmatprep.subr.bf16.mxu0 0
      %2140 = vmatpush1.bf16.msra.mxu0 0
      %2141 = vmatprep.subr.bf16.mxu0 0
      %2142 = vmatpush1.bf16.msra.mxu0 0
      %2143 = vmatprep.mubr.bf16.mxu0 0
      %2144 = vmatmul.mubr.bf16.gmra.mrb[0].mxu0 %v1662
      %v2145 = vpop.f32.mrb[0].mxu0
      %v2146 = vadd.f32 0.0, %v2145
      %v2147 = vpop.f32.mrb[0].mxu0
      %v2148 = vpop.f32.mrb[0].mxu0
      %v2149 = vadd.f32 0.0, %v2148
      %v2150 = vpop.f32.mrb[0].mxu0
      %2151 = vmatprep.mubr.bf16.mxu0 0
      %2152 = vmatmul.mubr.bf16.gmra.mrb[0].mxu0 %v1665
      %v2153 = vpop.f32.mrb[0].mxu0
      %v2154 = vadd.f32 0.0, %v2153
      %v2155 = vpop.f32.mrb[0].mxu0
      %v2156 = vpop.f32.mrb[0].mxu0
      %v2157 = vadd.f32 0.0, %v2156
      %v2158 = vpop.f32.mrb[0].mxu0
      %2159 = vmatprep.mubr.bf16.mxu0 0
      %2160 = vmatmul.mubr.bf16.gmra.mrb[0].mxu0 %v1668
      %v2161 = vpop.f32.mrb[0].mxu0
      %v2162 = vadd.f32 0.0, %v2161
      %v2163 = vpop.f32.mrb[0].mxu0
      %v2164 = vpop.f32.mrb[0].mxu0
      %v2165 = vadd.f32 0.0, %v2164
      %v2166 = vpop.f32.mrb[0].mxu0
      %2167 = vmatprep.mubr.bf16.mxu0 0
      %2168 = vmatmul.mubr.bf16.gmra.mrb[0].mxu0 %v1671
      %v2169 = vpop.f32.mrb[0].mxu0
      %v2170 = vadd.f32 0.0, %v2169
      %v2171 = vpop.f32.mrb[0].mxu0
      %v2172 = vpop.f32.mrb[0].mxu0
      %v2173 = vadd.f32 0.0, %v2172
      %v2174 = vpop.f32.mrb[0].mxu0
      %2175 = vmatprep.mubr.bf16.mxu0 0
      %2176 = vmatmul.mubr.bf16.gmra.mrb[0].mxu0 %v1674
      %v2177 = vpop.f32.mrb[0].mxu0
      %v2178 = vadd.f32 0.0, %v2177
      %v2179 = vpop.f32.mrb[0].mxu0
      %v2180 = vpop.f32.mrb[0].mxu0
      %v2181 = vadd.f32 0.0, %v2180
      %v2182 = vpop.f32.mrb[0].mxu0
      %2183 = vmatprep.mubr.bf16.mxu0 0
      %2184 = vmatmul.mubr.bf16.gmra.mrb[0].mxu0 %v1677
      %v2185 = vpop.f32.mrb[0].mxu0
      %v2186 = vadd.f32 0.0, %v2185
      %v2187 = vpop.f32.mrb[0].mxu0
      %v2188 = vpop.f32.mrb[0].mxu0
      %v2189 = vadd.f32 0.0, %v2188
      %v2190 = vpop.f32.mrb[0].mxu0
      %2191 = vmatprep.mubr.bf16.mxu0 0
      %2192 = vmatmul.mubr.bf16.gmra.mrb[0].mxu0 %v1680
      %v2193 = vpop.f32.mrb[0].mxu0
      %v2194 = vadd.f32 0.0, %v2193
      %v2195 = vpop.f32.mrb[0].mxu0
      %v2196 = vpop.f32.mrb[0].mxu0
      %v2197 = vadd.f32 0.0, %v2196
      %v2198 = vpop.f32.mrb[0].mxu0
      %2199 = vmatprep.mubr.bf16.mxu0 0
      %2200 = vmatmul.mubr.bf16.gmra.mrb[0].mxu0 %v1683
      %v2201 = vpop.f32.mrb[0].mxu0
      %v2202 = vadd.f32 0.0, %v2201
      %v2203 = vpop.f32.mrb[0].mxu0
      %v2204 = vpop.f32.mrb[0].mxu0
      %v2205 = vadd.f32 0.0, %v2204
      %v2206 = vpop.f32.mrb[0].mxu0
      %2207 = vmatprep.mubr.bf16.mxu0 0
      %2208 = vmatmul.mubr.bf16.gmra.mrb[0].mxu0 %v1686
      %v2209 = vpop.f32.mrb[0].mxu0
      %v2210 = vadd.f32 0.0, %v2209
      %v2211 = vpop.f32.mrb[0].mxu0
      %v2212 = vpop.f32.mrb[0].mxu0
      %v2213 = vadd.f32 0.0, %v2212
      %v2214 = vpop.f32.mrb[0].mxu0
      %2215 = vmatprep.mubr.bf16.mxu0 0
      %2216 = vmatmul.mubr.bf16.gmra.mrb[0].mxu0 %v1689
      %v2217 = vpop.f32.mrb[0].mxu0
      %v2218 = vadd.f32 0.0, %v2217
      %v2219 = vpop.f32.mrb[0].mxu0
      %v2220 = vpop.f32.mrb[0].mxu0
      %v2221 = vadd.f32 0.0, %v2220
      %v2222 = vpop.f32.mrb[0].mxu0
      %2223 = vmatprep.mubr.bf16.mxu0 0
      %2224 = vmatmul.mubr.bf16.gmra.mrb[0].mxu0 %v1692
      %v2225 = vpop.f32.mrb[0].mxu0
      %v2226 = vadd.f32 0.0, %v2225
      %v2227 = vpop.f32.mrb[0].mxu0
      %v2228 = vpop.f32.mrb[0].mxu0
      %v2229 = vadd.f32 0.0, %v2228
      %v2230 = vpop.f32.mrb[0].mxu0
      %2231 = vmatprep.mubr.bf16.mxu0 0
      %2232 = vmatmul.mubr.bf16.gmra.mrb[0].mxu0 %v1695
      %v2233 = vpop.f32.mrb[0].mxu0
      %v2234 = vadd.f32 0.0, %v2233
      %v2235 = vpop.f32.mrb[0].mxu0
      %v2236 = vpop.f32.mrb[0].mxu0
      %v2237 = vadd.f32 0.0, %v2236
      %v2238 = vpop.f32.mrb[0].mxu0
      %2239 = vmatprep.mubr.bf16.mxu0 0
      %2240 = vmatmul.mubr.bf16.gmra.mrb[0].mxu0 %v1698
      %v2241 = vpop.f32.mrb[0].mxu0
      %v2242 = vadd.f32 0.0, %v2241
      %v2243 = vpop.f32.mrb[0].mxu0
      %v2244 = vpop.f32.mrb[0].mxu0
      %v2245 = vadd.f32 0.0, %v2244
      %v2246 = vpop.f32.mrb[0].mxu0
      %2247 = vmatprep.mubr.bf16.mxu0 0
      %2248 = vmatmul.mubr.bf16.gmra.mrb[0].mxu0 %v1701
      %v2249 = vpop.f32.mrb[0].mxu0
      %v2250 = vadd.f32 0.0, %v2249
      %v2251 = vpop.f32.mrb[0].mxu0
      %v2252 = vpop.f32.mrb[0].mxu0
      %v2253 = vadd.f32 0.0, %v2252
      %v2254 = vpop.f32.mrb[0].mxu0
      %2255 = vmatprep.mubr.bf16.mxu0 0
      %2256 = vmatmul.mubr.bf16.gmra.mrb[0].mxu0 %v1704
      %v2257 = vpop.f32.mrb[0].mxu0
      %v2258 = vadd.f32 0.0, %v2257
      %v2259 = vpop.f32.mrb[0].mxu0
      %v2260 = vpop.f32.mrb[0].mxu0
      %v2261 = vadd.f32 0.0, %v2260
      %v2262 = vpop.f32.mrb[0].mxu0
      %2263 = vmatprep.mubr.bf16.mxu0 0
      %2264 = vmatmul.mubr.bf16.gmra.mrb[0].mxu0 %v1707
      %v2265 = vpop.f32.mrb[0].mxu0
      %v2266 = vadd.f32 0.0, %v2265
      %v2267 = vpop.f32.mrb[0].mxu0
      %v2268 = vpop.f32.mrb[0].mxu0
      %v2269 = vadd.f32 0.0, %v2268
      %v2270 = vpop.f32.mrb[0].mxu0
      %2271 = vdwg.mxu0
      %v2272 = vld [vmem:[%s2] ss:$2 sm:$0x1f]
      %v2274 = vlaneseq
      %v2275 = vshrl.u32 %v2274, 7
      %v2276 = vsub.s32 0, %v2275
      %v2277 = vrot.slane %v2272, %v2276
      %v2278 = vlaneseq
      %v2279 = vshrl.u32 %v2278, 7
      %v2280 = vsub.s32 1, %v2279
      %v2281 = vrot.slane %v2272, %v2280
      %v2282 = vlaneseq
      %v2283 = vshrl.u32 %v2282, 7
      %v2284 = vsub.s32 2, %v2283
      %v2285 = vrot.slane %v2272, %v2284
      %v2286 = vlaneseq
      %v2287 = vshrl.u32 %v2286, 7
      %v2288 = vsub.s32 3, %v2287
      %v2289 = vrot.slane %v2272, %v2288
      %v2290 = vlaneseq
      %v2291 = vshrl.u32 %v2290, 7
      %v2292 = vsub.s32 4, %v2291
      %v2293 = vrot.slane %v2272, %v2292
      %v2299 = vmul.f32 %v1760, %v2277
      %v2300 = vmul.f32 %v1762, %v2281
      %v2301 = vmul.f32 %v1953, %v2285
      %v2302 = vmul.f32 %v1955, %v2289
      %v2303 = vmul.f32 %v2146, %v2293
      %v2304 = vmul.f32 %v1764, %v2277
      %v2305 = vmul.f32 %v1766, %v2281
      %v2306 = vmul.f32 %v1957, %v2285
      %v2307 = vmul.f32 %v1959, %v2289
      %v2308 = vmul.f32 %v2149, %v2293
      %v2309 = vmul.f32 %v1770, %v2277
      %v2310 = vmul.f32 %v1772, %v2281
      %v2311 = vmul.f32 %v1963, %v2285
      %v2312 = vmul.f32 %v1965, %v2289
      %v2313 = vmul.f32 %v2154, %v2293
      %v2314 = vmul.f32 %v1774, %v2277
      %v2315 = vmul.f32 %v1776, %v2281
      %v2316 = vmul.f32 %v1967, %v2285
      %v2317 = vmul.f32 %v1969, %v2289
      %v2318 = vmul.f32 %v2157, %v2293
      %v2319 = vmul.f32 %v1780, %v2277
      %v2320 = vmul.f32 %v1782, %v2281
      %v2321 = vmul.f32 %v1973, %v2285
      %v2322 = vmul.f32 %v1975, %v2289
      %v2323 = vmul.f32 %v2162, %v2293
      %v2324 = vmul.f32 %v1784, %v2277
      %v2325 = vmul.f32 %v1786, %v2281
      %v2326 = vmul.f32 %v1977, %v2285
      %v2327 = vmul.f32 %v1979, %v2289
      %v2328 = vmul.f32 %v2165, %v2293
      %v2329 = vmul.f32 %v1790, %v2277
      %v2330 = vmul.f32 %v1792, %v2281
      %v2331 = vmul.f32 %v1983, %v2285
      %v2332 = vmul.f32 %v1985, %v2289
      %v2333 = vmul.f32 %v2170, %v2293
      %v2334 = vmul.f32 %v1794, %v2277
      %v2335 = vmul.f32 %v1796, %v2281
      %v2336 = vmul.f32 %v1987, %v2285
      %v2337 = vmul.f32 %v1989, %v2289
      %v2338 = vmul.f32 %v2173, %v2293
      %v2339 = vmul.f32 %v1800, %v2277
      %v2340 = vmul.f32 %v1802, %v2281
      %v2341 = vmul.f32 %v1993, %v2285
      %v2342 = vmul.f32 %v1995, %v2289
      %v2343 = vmul.f32 %v2178, %v2293
      %v2344 = vmul.f32 %v1804, %v2277
      %v2345 = vmul.f32 %v1806, %v2281
      %v2346 = vmul.f32 %v1997, %v2285
      %v2347 = vmul.f32 %v1999, %v2289
      %v2348 = vmul.f32 %v2181, %v2293
      %v2349 = vmul.f32 %v1810, %v2277
      %v2350 = vmul.f32 %v1812, %v2281
      %v2351 = vmul.f32 %v2003, %v2285
      %v2352 = vmul.f32 %v2005, %v2289
      %v2353 = vmul.f32 %v2186, %v2293
      %v2354 = vmul.f32 %v1814, %v2277
      %v2355 = vmul.f32 %v1816, %v2281
      %v2356 = vmul.f32 %v2007, %v2285
      %v2357 = vmul.f32 %v2009, %v2289
      %v2358 = vmul.f32 %v2189, %v2293
      %v2359 = vmul.f32 %v1820, %v2277
      %v2360 = vmul.f32 %v1822, %v2281
      %v2361 = vmul.f32 %v2013, %v2285
      %v2362 = vmul.f32 %v2015, %v2289
      %v2363 = vmul.f32 %v2194, %v2293
      %v2364 = vmul.f32 %v1824, %v2277
      %v2365 = vmul.f32 %v1826, %v2281
      %v2366 = vmul.f32 %v2017, %v2285
      %v2367 = vmul.f32 %v2019, %v2289
      %v2368 = vmul.f32 %v2197, %v2293
      %v2369 = vmul.f32 %v1830, %v2277
      %v2370 = vmul.f32 %v1832, %v2281
      %v2371 = vmul.f32 %v2023, %v2285
      %v2372 = vmul.f32 %v2025, %v2289
      %v2373 = vmul.f32 %v2202, %v2293
      %v2374 = vmul.f32 %v1834, %v2277
      %v2375 = vmul.f32 %v1836, %v2281
      %v2376 = vmul.f32 %v2027, %v2285
      %v2377 = vmul.f32 %v2029, %v2289
      %v2378 = vmul.f32 %v2205, %v2293
      %v2379 = vmul.f32 %v1840, %v2277
      %v2380 = vmul.f32 %v1842, %v2281
      %v2381 = vmul.f32 %v2033, %v2285
      %v2382 = vmul.f32 %v2035, %v2289
      %v2383 = vmul.f32 %v2210, %v2293
      %v2384 = vmul.f32 %v1844, %v2277
      %v2385 = vmul.f32 %v1846, %v2281
      %v2386 = vmul.f32 %v2037, %v2285
      %v2387 = vmul.f32 %v2039, %v2289
      %v2388 = vmul.f32 %v2213, %v2293
      %v2389 = vmul.f32 %v1850, %v2277
      %v2390 = vmul.f32 %v1852, %v2281
      %v2391 = vmul.f32 %v2043, %v2285
      %v2392 = vmul.f32 %v2045, %v2289
      %v2393 = vmul.f32 %v2218, %v2293
      %v2394 = vmul.f32 %v1854, %v2277
      %v2395 = vmul.f32 %v1856, %v2281
      %v2396 = vmul.f32 %v2047, %v2285
      %v2397 = vmul.f32 %v2049, %v2289
      %v2398 = vmul.f32 %v2221, %v2293
      %v2399 = vmul.f32 %v1860, %v2277
      %v2400 = vmul.f32 %v1862, %v2281
      %v2401 = vmul.f32 %v2053, %v2285
      %v2402 = vmul.f32 %v2055, %v2289
      %v2403 = vmul.f32 %v2226, %v2293
      %v2404 = vmul.f32 %v1864, %v2277
      %v2405 = vmul.f32 %v1866, %v2281
      %v2406 = vmul.f32 %v2057, %v2285
      %v2407 = vmul.f32 %v2059, %v2289
      %v2408 = vmul.f32 %v2229, %v2293
      %v2409 = vmul.f32 %v1870, %v2277
      %v2410 = vmul.f32 %v1872, %v2281
      %v2411 = vmul.f32 %v2063, %v2285
      %v2412 = vmul.f32 %v2065, %v2289
      %v2413 = vmul.f32 %v2234, %v2293
      %v2414 = vmul.f32 %v1874, %v2277
      %v2415 = vmul.f32 %v1876, %v2281
      %v2416 = vmul.f32 %v2067, %v2285
      %v2417 = vmul.f32 %v2069, %v2289
      %v2418 = vmul.f32 %v2237, %v2293
      %v2419 = vmul.f32 %v1880, %v2277
      %v2420 = vmul.f32 %v1882, %v2281
      %v2421 = vmul.f32 %v2073, %v2285
      %v2422 = vmul.f32 %v2075, %v2289
      %v2423 = vmul.f32 %v2242, %v2293
      %v2424 = vmul.f32 %v1884, %v2277
      %v2425 = vmul.f32 %v1886, %v2281
      %v2426 = vmul.f32 %v2077, %v2285
      %v2427 = vmul.f32 %v2079, %v2289
      %v2428 = vmul.f32 %v2245, %v2293
      %v2429 = vmul.f32 %v1890, %v2277
      %v2430 = vmul.f32 %v1892, %v2281
      %v2431 = vmul.f32 %v2083, %v2285
      %v2432 = vmul.f32 %v2085, %v2289
      %v2433 = vmul.f32 %v2250, %v2293
      %v2434 = vmul.f32 %v1894, %v2277
      %v2435 = vmul.f32 %v1896, %v2281
      %v2436 = vmul.f32 %v2087, %v2285
      %v2437 = vmul.f32 %v2089, %v2289
      %v2438 = vmul.f32 %v2253, %v2293
      %v2439 = vmul.f32 %v1900, %v2277
      %v2440 = vmul.f32 %v1902, %v2281
      %v2441 = vmul.f32 %v2093, %v2285
      %v2442 = vmul.f32 %v2095, %v2289
      %v2443 = vmul.f32 %v2258, %v2293
      %v2444 = vmul.f32 %v1904, %v2277
      %v2445 = vmul.f32 %v1906, %v2281
      %v2446 = vmul.f32 %v2097, %v2285
      %v2447 = vmul.f32 %v2099, %v2289
      %v2448 = vmul.f32 %v2261, %v2293
      %v2449 = vmul.f32 %v1910, %v2277
      %v2450 = vmul.f32 %v1912, %v2281
      %v2451 = vmul.f32 %v2103, %v2285
      %v2452 = vmul.f32 %v2105, %v2289
      %v2453 = vmul.f32 %v2266, %v2293
      %v2454 = vmul.f32 %v1914, %v2277
      %v2455 = vmul.f32 %v1916, %v2281
      %v2456 = vmul.f32 %v2107, %v2285
      %v2457 = vmul.f32 %v2109, %v2289
      %v2458 = vmul.f32 %v2269, %v2293
      %s2459 = scalar_lea.vmem %s2, 1
      %v2460 = vld [vmem:[%s2459] ss:$2 sm:$0x1f]
      %v2462 = vlaneseq
      %v2463 = vshrl.u32 %v2462, 7
      %v2464 = vsub.s32 0, %v2463
      %v2465 = vrot.slane %v2460, %v2464
      %v2466 = vlaneseq
      %v2467 = vshrl.u32 %v2466, 7
      %v2468 = vsub.s32 1, %v2467
      %v2469 = vrot.slane %v2460, %v2468
      %v2470 = vlaneseq
      %v2471 = vshrl.u32 %v2470, 7
      %v2472 = vsub.s32 2, %v2471
      %v2473 = vrot.slane %v2460, %v2472
      %v2474 = vlaneseq
      %v2475 = vshrl.u32 %v2474, 7
      %v2476 = vsub.s32 3, %v2475
      %v2477 = vrot.slane %v2460, %v2476
      %v2478 = vlaneseq
      %v2479 = vshrl.u32 %v2478, 7
      %v2480 = vsub.s32 4, %v2479
      %v2481 = vrot.slane %v2460, %v2480
      %v2487 = vadd.f32 %v2299, %v2465
      %v2488 = vadd.f32 %v2300, %v2469
      %v2489 = vadd.f32 %v2301, %v2473
      %v2490 = vadd.f32 %v2302, %v2477
      %v2491 = vadd.f32 %v2303, %v2481
      %v2492 = vadd.f32 %v2304, %v2465
      %v2493 = vadd.f32 %v2305, %v2469
      %v2494 = vadd.f32 %v2306, %v2473
      %v2495 = vadd.f32 %v2307, %v2477
      %v2496 = vadd.f32 %v2308, %v2481
      %v2497 = vadd.f32 %v2309, %v2465
      %v2498 = vadd.f32 %v2310, %v2469
      %v2499 = vadd.f32 %v2311, %v2473
      %v2500 = vadd.f32 %v2312, %v2477
      %v2501 = vadd.f32 %v2313, %v2481
      %v2502 = vadd.f32 %v2314, %v2465
      %v2503 = vadd.f32 %v2315, %v2469
      %v2504 = vadd.f32 %v2316, %v2473
      %v2505 = vadd.f32 %v2317, %v2477
      %v2506 = vadd.f32 %v2318, %v2481
      %v2507 = vadd.f32 %v2319, %v2465
      %v2508 = vadd.f32 %v2320, %v2469
      %v2509 = vadd.f32 %v2321, %v2473
      %v2510 = vadd.f32 %v2322, %v2477
      %v2511 = vadd.f32 %v2323, %v2481
      %v2512 = vadd.f32 %v2324, %v2465
      %v2513 = vadd.f32 %v2325, %v2469
      %v2514 = vadd.f32 %v2326, %v2473
      %v2515 = vadd.f32 %v2327, %v2477
      %v2516 = vadd.f32 %v2328, %v2481
      %v2517 = vadd.f32 %v2329, %v2465
      %v2518 = vadd.f32 %v2330, %v2469
      %v2519 = vadd.f32 %v2331, %v2473
      %v2520 = vadd.f32 %v2332, %v2477
      %v2521 = vadd.f32 %v2333, %v2481
      %v2522 = vadd.f32 %v2334, %v2465
      %v2523 = vadd.f32 %v2335, %v2469
      %v2524 = vadd.f32 %v2336, %v2473
      %v2525 = vadd.f32 %v2337, %v2477
      %v2526 = vadd.f32 %v2338, %v2481
      %v2527 = vadd.f32 %v2339, %v2465
      %v2528 = vadd.f32 %v2340, %v2469
      %v2529 = vadd.f32 %v2341, %v2473
      %v2530 = vadd.f32 %v2342, %v2477
      %v2531 = vadd.f32 %v2343, %v2481
      %v2532 = vadd.f32 %v2344, %v2465
      %v2533 = vadd.f32 %v2345, %v2469
      %v2534 = vadd.f32 %v2346, %v2473
      %v2535 = vadd.f32 %v2347, %v2477
      %v2536 = vadd.f32 %v2348, %v2481
      %v2537 = vadd.f32 %v2349, %v2465
      %v2538 = vadd.f32 %v2350, %v2469
      %v2539 = vadd.f32 %v2351, %v2473
      %v2540 = vadd.f32 %v2352, %v2477
      %v2541 = vadd.f32 %v2353, %v2481
      %v2542 = vadd.f32 %v2354, %v2465
      %v2543 = vadd.f32 %v2355, %v2469
      %v2544 = vadd.f32 %v2356, %v2473
      %v2545 = vadd.f32 %v2357, %v2477
      %v2546 = vadd.f32 %v2358, %v2481
      %v2547 = vadd.f32 %v2359, %v2465
      %v2548 = vadd.f32 %v2360, %v2469
      %v2549 = vadd.f32 %v2361, %v2473
      %v2550 = vadd.f32 %v2362, %v2477
      %v2551 = vadd.f32 %v2363, %v2481
      %v2552 = vadd.f32 %v2364, %v2465
      %v2553 = vadd.f32 %v2365, %v2469
      %v2554 = vadd.f32 %v2366, %v2473
      %v2555 = vadd.f32 %v2367, %v2477
      %v2556 = vadd.f32 %v2368, %v2481
      %v2557 = vadd.f32 %v2369, %v2465
      %v2558 = vadd.f32 %v2370, %v2469
      %v2559 = vadd.f32 %v2371, %v2473
      %v2560 = vadd.f32 %v2372, %v2477
      %v2561 = vadd.f32 %v2373, %v2481
      %v2562 = vadd.f32 %v2374, %v2465
      %v2563 = vadd.f32 %v2375, %v2469
      %v2564 = vadd.f32 %v2376, %v2473
      %v2565 = vadd.f32 %v2377, %v2477
      %v2566 = vadd.f32 %v2378, %v2481
      %v2567 = vadd.f32 %v2379, %v2465
      %v2568 = vadd.f32 %v2380, %v2469
      %v2569 = vadd.f32 %v2381, %v2473
      %v2570 = vadd.f32 %v2382, %v2477
      %v2571 = vadd.f32 %v2383, %v2481
      %v2572 = vadd.f32 %v2384, %v2465
      %v2573 = vadd.f32 %v2385, %v2469
      %v2574 = vadd.f32 %v2386, %v2473
      %v2575 = vadd.f32 %v2387, %v2477
      %v2576 = vadd.f32 %v2388, %v2481
      %v2577 = vadd.f32 %v2389, %v2465
      %v2578 = vadd.f32 %v2390, %v2469
      %v2579 = vadd.f32 %v2391, %v2473
      %v2580 = vadd.f32 %v2392, %v2477
      %v2581 = vadd.f32 %v2393, %v2481
      %v2582 = vadd.f32 %v2394, %v2465
      %v2583 = vadd.f32 %v2395, %v2469
      %v2584 = vadd.f32 %v2396, %v2473
      %v2585 = vadd.f32 %v2397, %v2477
      %v2586 = vadd.f32 %v2398, %v2481
      %v2587 = vadd.f32 %v2399, %v2465
      %v2588 = vadd.f32 %v2400, %v2469
      %v2589 = vadd.f32 %v2401, %v2473
      %v2590 = vadd.f32 %v2402, %v2477
      %v2591 = vadd.f32 %v2403, %v2481
      %v2592 = vadd.f32 %v2404, %v2465
      %v2593 = vadd.f32 %v2405, %v2469
      %v2594 = vadd.f32 %v2406, %v2473
      %v2595 = vadd.f32 %v2407, %v2477
      %v2596 = vadd.f32 %v2408, %v2481
      %v2597 = vadd.f32 %v2409, %v2465
      %v2598 = vadd.f32 %v2410, %v2469
      %v2599 = vadd.f32 %v2411, %v2473
      %v2600 = vadd.f32 %v2412, %v2477
      %v2601 = vadd.f32 %v2413, %v2481
      %v2602 = vadd.f32 %v2414, %v2465
      %v2603 = vadd.f32 %v2415, %v2469
      %v2604 = vadd.f32 %v2416, %v2473
      %v2605 = vadd.f32 %v2417, %v2477
      %v2606 = vadd.f32 %v2418, %v2481
      %v2607 = vadd.f32 %v2419, %v2465
      %v2608 = vadd.f32 %v2420, %v2469
      %v2609 = vadd.f32 %v2421, %v2473
      %v2610 = vadd.f32 %v2422, %v2477
      %v2611 = vadd.f32 %v2423, %v2481
      %v2612 = vadd.f32 %v2424, %v2465
      %v2613 = vadd.f32 %v2425, %v2469
      %v2614 = vadd.f32 %v2426, %v2473
      %v2615 = vadd.f32 %v2427, %v2477
      %v2616 = vadd.f32 %v2428, %v2481
      %v2617 = vadd.f32 %v2429, %v2465
      %v2618 = vadd.f32 %v2430, %v2469
      %v2619 = vadd.f32 %v2431, %v2473
      %v2620 = vadd.f32 %v2432, %v2477
      %v2621 = vadd.f32 %v2433, %v2481
      %v2622 = vadd.f32 %v2434, %v2465
      %v2623 = vadd.f32 %v2435, %v2469
      %v2624 = vadd.f32 %v2436, %v2473
      %v2625 = vadd.f32 %v2437, %v2477
      %v2626 = vadd.f32 %v2438, %v2481
      %v2627 = vadd.f32 %v2439, %v2465
      %v2628 = vadd.f32 %v2440, %v2469
      %v2629 = vadd.f32 %v2441, %v2473
      %v2630 = vadd.f32 %v2442, %v2477
      %v2631 = vadd.f32 %v2443, %v2481
      %v2632 = vadd.f32 %v2444, %v2465
      %v2633 = vadd.f32 %v2445, %v2469
      %v2634 = vadd.f32 %v2446, %v2473
      %v2635 = vadd.f32 %v2447, %v2477
      %v2636 = vadd.f32 %v2448, %v2481
      %v2637 = vadd.f32 %v2449, %v2465
      %v2638 = vadd.f32 %v2450, %v2469
      %v2639 = vadd.f32 %v2451, %v2473
      %v2640 = vadd.f32 %v2452, %v2477
      %v2641 = vadd.f32 %v2453, %v2481
      %v2642 = vadd.f32 %v2454, %v2465
      %v2643 = vadd.f32 %v2455, %v2469
      %v2644 = vadd.f32 %v2456, %v2473
      %v2645 = vadd.f32 %v2457, %v2477
      %v2646 = vadd.f32 %v2458, %v2481
      %v2647 = vmax.f32 %v2487, 0.0
      %v2648 = vmax.f32 %v2488, 0.0
      %v2649 = vmax.f32 %v2489, 0.0
      %v2650 = vmax.f32 %v2490, 0.0
      %v2651 = vmax.f32 %v2492, 0.0
      %v2652 = vmax.f32 %v2493, 0.0
      %v2653 = vmax.f32 %v2494, 0.0
      %v2654 = vmax.f32 %v2495, 0.0
      %v2655 = vmax.f32 %v2497, 0.0
      %v2656 = vmax.f32 %v2498, 0.0
      %v2657 = vmax.f32 %v2499, 0.0
      %v2658 = vmax.f32 %v2500, 0.0
      %v2659 = vmax.f32 %v2502, 0.0
      %v2660 = vmax.f32 %v2503, 0.0
      %v2661 = vmax.f32 %v2504, 0.0
      %v2662 = vmax.f32 %v2505, 0.0
      %v2663 = vmax.f32 %v2507, 0.0
      %v2664 = vmax.f32 %v2508, 0.0
      %v2665 = vmax.f32 %v2509, 0.0
      %v2666 = vmax.f32 %v2510, 0.0
      %v2667 = vmax.f32 %v2512, 0.0
      %v2668 = vmax.f32 %v2513, 0.0
      %v2669 = vmax.f32 %v2514, 0.0
      %v2670 = vmax.f32 %v2515, 0.0
      %v2671 = vmax.f32 %v2517, 0.0
      %v2672 = vmax.f32 %v2518, 0.0
      %v2673 = vmax.f32 %v2519, 0.0
      %v2674 = vmax.f32 %v2520, 0.0
      %v2675 = vmax.f32 %v2522, 0.0
      %v2676 = vmax.f32 %v2523, 0.0
      %v2677 = vmax.f32 %v2524, 0.0
      %v2678 = vmax.f32 %v2525, 0.0
      %v2679 = vmax.f32 %v2527, 0.0
      %v2680 = vmax.f32 %v2528, 0.0
      %v2681 = vmax.f32 %v2529, 0.0
      %v2682 = vmax.f32 %v2530, 0.0
      %v2683 = vmax.f32 %v2532, 0.0
      %v2684 = vmax.f32 %v2533, 0.0
      %v2685 = vmax.f32 %v2534, 0.0
      %v2686 = vmax.f32 %v2535, 0.0
      %v2687 = vmax.f32 %v2537, 0.0
      %v2688 = vmax.f32 %v2538, 0.0
      %v2689 = vmax.f32 %v2539, 0.0
      %v2690 = vmax.f32 %v2540, 0.0
      %v2691 = vmax.f32 %v2542, 0.0
      %v2692 = vmax.f32 %v2543, 0.0
      %v2693 = vmax.f32 %v2544, 0.0
      %v2694 = vmax.f32 %v2545, 0.0
      %v2695 = vmax.f32 %v2547, 0.0
      %v2696 = vmax.f32 %v2548, 0.0
      %v2697 = vmax.f32 %v2549, 0.0
      %v2698 = vmax.f32 %v2550, 0.0
      %v2699 = vmax.f32 %v2552, 0.0
      %v2700 = vmax.f32 %v2553, 0.0
      %v2701 = vmax.f32 %v2554, 0.0
      %v2702 = vmax.f32 %v2555, 0.0
      %v2703 = vmax.f32 %v2557, 0.0
      %v2704 = vmax.f32 %v2558, 0.0
      %v2705 = vmax.f32 %v2559, 0.0
      %v2706 = vmax.f32 %v2560, 0.0
      %v2707 = vmax.f32 %v2562, 0.0
      %v2708 = vmax.f32 %v2563, 0.0
      %v2709 = vmax.f32 %v2564, 0.0
      %v2710 = vmax.f32 %v2565, 0.0
      %v2711 = vmax.f32 %v2567, 0.0
      %v2712 = vmax.f32 %v2568, 0.0
      %v2713 = vmax.f32 %v2569, 0.0
      %v2714 = vmax.f32 %v2570, 0.0
      %v2715 = vmax.f32 %v2572, 0.0
      %v2716 = vmax.f32 %v2573, 0.0
      %v2717 = vmax.f32 %v2574, 0.0
      %v2718 = vmax.f32 %v2575, 0.0
      %v2719 = vmax.f32 %v2577, 0.0
      %v2720 = vmax.f32 %v2578, 0.0
      %v2721 = vmax.f32 %v2579, 0.0
      %v2722 = vmax.f32 %v2580, 0.0
      %v2723 = vmax.f32 %v2582, 0.0
      %v2724 = vmax.f32 %v2583, 0.0
      %v2725 = vmax.f32 %v2584, 0.0
      %v2726 = vmax.f32 %v2585, 0.0
      %v2727 = vmax.f32 %v2587, 0.0
      %v2728 = vmax.f32 %v2588, 0.0
      %v2729 = vmax.f32 %v2589, 0.0
      %v2730 = vmax.f32 %v2590, 0.0
      %v2731 = vmax.f32 %v2592, 0.0
      %v2732 = vmax.f32 %v2593, 0.0
      %v2733 = vmax.f32 %v2594, 0.0
      %v2734 = vmax.f32 %v2595, 0.0
      %v2735 = vmax.f32 %v2597, 0.0
      %v2736 = vmax.f32 %v2598, 0.0
      %v2737 = vmax.f32 %v2599, 0.0
      %v2738 = vmax.f32 %v2600, 0.0
      %v2739 = vmax.f32 %v2602, 0.0
      %v2740 = vmax.f32 %v2603, 0.0
      %v2741 = vmax.f32 %v2604, 0.0
      %v2742 = vmax.f32 %v2605, 0.0
      %v2743 = vmax.f32 %v2607, 0.0
      %v2744 = vmax.f32 %v2608, 0.0
      %v2745 = vmax.f32 %v2609, 0.0
      %v2746 = vmax.f32 %v2610, 0.0
      %v2747 = vmax.f32 %v2612, 0.0
      %v2748 = vmax.f32 %v2613, 0.0
      %v2749 = vmax.f32 %v2614, 0.0
      %v2750 = vmax.f32 %v2615, 0.0
      %v2751 = vmax.f32 %v2617, 0.0
      %v2752 = vmax.f32 %v2618, 0.0
      %v2753 = vmax.f32 %v2619, 0.0
      %v2754 = vmax.f32 %v2620, 0.0
      %v2755 = vmax.f32 %v2622, 0.0
      %v2756 = vmax.f32 %v2623, 0.0
      %v2757 = vmax.f32 %v2624, 0.0
      %v2758 = vmax.f32 %v2625, 0.0
      %v2759 = vmax.f32 %v2627, 0.0
      %v2760 = vmax.f32 %v2628, 0.0
      %v2761 = vmax.f32 %v2629, 0.0
      %v2762 = vmax.f32 %v2630, 0.0
      %v2763 = vmax.f32 %v2632, 0.0
      %v2764 = vmax.f32 %v2633, 0.0
      %v2765 = vmax.f32 %v2634, 0.0
      %v2766 = vmax.f32 %v2635, 0.0
      %v2767 = vmax.f32 %v2637, 0.0
      %v2768 = vmax.f32 %v2638, 0.0
      %v2769 = vmax.f32 %v2639, 0.0
      %v2770 = vmax.f32 %v2640, 0.0
      %v2771 = vmax.f32 %v2642, 0.0
      %v2772 = vmax.f32 %v2643, 0.0
      %v2773 = vmax.f32 %v2644, 0.0
      %v2774 = vmax.f32 %v2645, 0.0
      %v2775 = vmax.f32 %v2647, %v2655
      %v2776 = vmax.f32 %v2648, %v2656
      %v2777 = vmax.f32 %v2651, %v2659
      %v2778 = vmax.f32 %v2652, %v2660
      %v2779 = vmax.f32 %v2655, %v2663
      %v2780 = vmax.f32 %v2656, %v2664
      %v2781 = vmax.f32 %v2659, %v2667
      %v2782 = vmax.f32 %v2660, %v2668
      %v2783 = vmax.f32 %v2663, %v2671
      %v2784 = vmax.f32 %v2664, %v2672
      %v2785 = vmax.f32 %v2667, %v2675
      %v2786 = vmax.f32 %v2668, %v2676
      %v2787 = vmax.f32 %v2671, %v2679
      %v2788 = vmax.f32 %v2672, %v2680
      %v2789 = vmax.f32 %v2675, %v2683
      %v2790 = vmax.f32 %v2676, %v2684
      %v2791 = vmax.f32 %v2679, %v2687
      %v2792 = vmax.f32 %v2680, %v2688
      %v2793 = vmax.f32 %v2683, %v2691
      %v2794 = vmax.f32 %v2684, %v2692
      %v2795 = vmax.f32 %v2687, %v2695
      %v2796 = vmax.f32 %v2688, %v2696
      %v2797 = vmax.f32 %v2691, %v2699
      %v2798 = vmax.f32 %v2692, %v2700
      %v2799 = vmax.f32 %v2695, %v2703
      %v2800 = vmax.f32 %v2696, %v2704
      %v2801 = vmax.f32 %v2699, %v2707
      %v2802 = vmax.f32 %v2700, %v2708
      %v2803 = vmax.f32 %v2703, %v2711
      %v2804 = vmax.f32 %v2704, %v2712
      %v2805 = vmax.f32 %v2707, %v2715
      %v2806 = vmax.f32 %v2708, %v2716
      %v2807 = vmax.f32 %v2711, %v2719
      %v2808 = vmax.f32 %v2712, %v2720
      %v2809 = vmax.f32 %v2715, %v2723
      %v2810 = vmax.f32 %v2716, %v2724
      %v2811 = vmax.f32 %v2719, %v2727
      %v2812 = vmax.f32 %v2720, %v2728
      %v2813 = vmax.f32 %v2723, %v2731
      %v2814 = vmax.f32 %v2724, %v2732
      %v2815 = vmax.f32 %v2727, %v2735
      %v2816 = vmax.f32 %v2728, %v2736
      %v2817 = vmax.f32 %v2731, %v2739
      %v2818 = vmax.f32 %v2732, %v2740
      %v2819 = vmax.f32 %v2735, %v2743
      %v2820 = vmax.f32 %v2736, %v2744
      %v2821 = vmax.f32 %v2739, %v2747
      %v2822 = vmax.f32 %v2740, %v2748
      %v2823 = vmax.f32 %v2743, %v2751
      %v2824 = vmax.f32 %v2744, %v2752
      %v2825 = vmax.f32 %v2747, %v2755
      %v2826 = vmax.f32 %v2748, %v2756
      %v2827 = vmax.f32 %v2751, %v2759
      %v2828 = vmax.f32 %v2752, %v2760
      %v2829 = vmax.f32 %v2755, %v2763
      %v2830 = vmax.f32 %v2756, %v2764
      %v2831 = vmax.f32 %v2759, %v2767
      %v2832 = vmax.f32 %v2760, %v2768
      %v2833 = vmax.f32 %v2763, %v2771
      %v2834 = vmax.f32 %v2764, %v2772
      %v2835 = vmax.f32 %v2775, %v2783
      %v2836 = vmax.f32 %v2776, %v2784
      %v2837 = vmax.f32 %v2777, %v2785
      %v2838 = vmax.f32 %v2778, %v2786
      %v2839 = vmax.f32 %v2779, %v2787
      %v2840 = vmax.f32 %v2780, %v2788
      %v2841 = vmax.f32 %v2781, %v2789
      %v2842 = vmax.f32 %v2782, %v2790
      %v2843 = vmax.f32 %v2783, %v2791
      %v2844 = vmax.f32 %v2784, %v2792
      %v2845 = vmax.f32 %v2785, %v2793
      %v2846 = vmax.f32 %v2786, %v2794
      %v2847 = vmax.f32 %v2787, %v2795
      %v2848 = vmax.f32 %v2788, %v2796
      %v2849 = vmax.f32 %v2789, %v2797
      %v2850 = vmax.f32 %v2790, %v2798
      %v2851 = vmax.f32 %v2791, %v2799
      %v2852 = vmax.f32 %v2792, %v2800
      %v2853 = vmax.f32 %v2793, %v2801
      %v2854 = vmax.f32 %v2794, %v2802
      %v2855 = vmax.f32 %v2795, %v2803
      %v2856 = vmax.f32 %v2796, %v2804
      %v2857 = vmax.f32 %v2797, %v2805
      %v2858 = vmax.f32 %v2798, %v2806
      %v2859 = vmax.f32 %v2799, %v2807
      %v2860 = vmax.f32 %v2800, %v2808
      %v2861 = vmax.f32 %v2801, %v2809
      %v2862 = vmax.f32 %v2802, %v2810
      %v2863 = vmax.f32 %v2803, %v2811
      %v2864 = vmax.f32 %v2804, %v2812
      %v2865 = vmax.f32 %v2805, %v2813
      %v2866 = vmax.f32 %v2806, %v2814
      %v2867 = vmax.f32 %v2807, %v2815
      %v2868 = vmax.f32 %v2808, %v2816
      %v2869 = vmax.f32 %v2809, %v2817
      %v2870 = vmax.f32 %v2810, %v2818
      %v2871 = vmax.f32 %v2811, %v2819
      %v2872 = vmax.f32 %v2812, %v2820
      %v2873 = vmax.f32 %v2813, %v2821
      %v2874 = vmax.f32 %v2814, %v2822
      %v2875 = vmax.f32 %v2815, %v2823
      %v2876 = vmax.f32 %v2816, %v2824
      %v2877 = vmax.f32 %v2817, %v2825
      %v2878 = vmax.f32 %v2818, %v2826
      %v2879 = vmax.f32 %v2819, %v2827
      %v2880 = vmax.f32 %v2820, %v2828
      %v2881 = vmax.f32 %v2821, %v2829
      %v2882 = vmax.f32 %v2822, %v2830
      %v2883 = vmax.f32 %v2823, %v2831
      %v2884 = vmax.f32 %v2824, %v2832
      %v2885 = vmax.f32 %v2825, %v2833
      %v2886 = vmax.f32 %v2826, %v2834
      %v2887 = vmax.f32 %v2827, %v2767
      %v2888 = vmax.f32 %v2828, %v2768
      %v2889 = vmax.f32 %v2829, %v2771
      %v2890 = vmax.f32 %v2830, %v2772
      %v2891 = vmax.f32 %v2835, %v2851
      %v2892 = vmax.f32 %v2836, %v2852
      %v2893 = vmax.f32 %v2837, %v2853
      %v2894 = vmax.f32 %v2838, %v2854
      %v2895 = vmax.f32 %v2839, %v2855
      %v2896 = vmax.f32 %v2840, %v2856
      %v2897 = vmax.f32 %v2841, %v2857
      %v2898 = vmax.f32 %v2842, %v2858
      %v2899 = vmax.f32 %v2843, %v2859
      %v2900 = vmax.f32 %v2844, %v2860
      %v2901 = vmax.f32 %v2845, %v2861
      %v2902 = vmax.f32 %v2846, %v2862
      %v2903 = vmax.f32 %v2847, %v2863
      %v2904 = vmax.f32 %v2848, %v2864
      %v2905 = vmax.f32 %v2849, %v2865
      %v2906 = vmax.f32 %v2850, %v2866
      %v2907 = vmax.f32 %v2851, %v2867
      %v2908 = vmax.f32 %v2852, %v2868
      %v2909 = vmax.f32 %v2853, %v2869
      %v2910 = vmax.f32 %v2854, %v2870
      %v2911 = vmax.f32 %v2855, %v2871
      %v2912 = vmax.f32 %v2856, %v2872
      %v2913 = vmax.f32 %v2857, %v2873
      %v2914 = vmax.f32 %v2858, %v2874
      %v2915 = vmax.f32 %v2859, %v2875
      %v2916 = vmax.f32 %v2860, %v2876
      %v2917 = vmax.f32 %v2861, %v2877
      %v2918 = vmax.f32 %v2862, %v2878
      %v2919 = vmax.f32 %v2863, %v2879
      %v2920 = vmax.f32 %v2864, %v2880
      %v2921 = vmax.f32 %v2865, %v2881
      %v2922 = vmax.f32 %v2866, %v2882
      %v2923 = vmax.f32 %v2867, %v2883
      %v2924 = vmax.f32 %v2868, %v2884
      %v2925 = vmax.f32 %v2869, %v2885
      %v2926 = vmax.f32 %v2870, %v2886
      %v2927 = vmax.f32 %v2871, %v2887
      %v2928 = vmax.f32 %v2872, %v2888
      %v2929 = vmax.f32 %v2873, %v2889
      %v2930 = vmax.f32 %v2874, %v2890
      %v2931 = vmax.f32 %v2875, %v2831
      %v2932 = vmax.f32 %v2876, %v2832
      %v2933 = vmax.f32 %v2877, %v2833
      %v2934 = vmax.f32 %v2878, %v2834
      %v2935 = vmax.f32 %v2879, %v2767
      %v2936 = vmax.f32 %v2880, %v2768
      %v2937 = vmax.f32 %v2881, %v2771
      %v2938 = vmax.f32 %v2882, %v2772
      %v2939 = vmax.f32 %v2891, %v2923
      %v2940 = vmax.f32 %v2892, %v2924
      %v2941 = vmax.f32 %v2893, %v2925
      %v2942 = vmax.f32 %v2894, %v2926
      %v2943 = vmax.f32 %v2895, %v2927
      %v2944 = vmax.f32 %v2896, %v2928
      %v2945 = vmax.f32 %v2897, %v2929
      %v2946 = vmax.f32 %v2898, %v2930
      %v2947 = vmax.f32 %v2899, %v2931
      %v2948 = vmax.f32 %v2900, %v2932
      %v2949 = vmax.f32 %v2901, %v2933
      %v2950 = vmax.f32 %v2902, %v2934
      %v2951 = vmax.f32 %v2903, %v2935
      %v2952 = vmax.f32 %v2904, %v2936
      %v2953 = vmax.f32 %v2905, %v2937
      %v2954 = vmax.f32 %v2906, %v2938
      %v2955 = vmax.f32 %v2907, %v2883
      %v2956 = vmax.f32 %v2908, %v2884
      %v2957 = vmax.f32 %v2909, %v2885
      %v2958 = vmax.f32 %v2910, %v2886
      %v2959 = vmax.f32 %v2911, %v2887
      %v2960 = vmax.f32 %v2912, %v2888
      %v2961 = vmax.f32 %v2913, %v2889
      %v2962 = vmax.f32 %v2914, %v2890
      %v2963 = vmax.f32 %v2915, %v2831
      %v2964 = vmax.f32 %v2916, %v2832
      %v2965 = vmax.f32 %v2917, %v2833
      %v2966 = vmax.f32 %v2918, %v2834
      %v2967 = vmax.f32 %v2919, %v2767
      %v2968 = vmax.f32 %v2920, %v2768
      %v2969 = vmax.f32 %v2921, %v2771
      %v2970 = vmax.f32 %v2922, %v2772
      %v3035 = vrot.slane %v2649, 1
      %v3036 = vrot.slane %v2653, 1
      %v3037 = vsel %vm412, %v3035, %v3036
      %v3038 = vrot.slane %v2650, 1
      %v3039 = vrot.slane %v2654, 1
      %v3040 = vsel %vm412, %v3038, %v3039
      %v3041 = vrot.slane %v2657, 1
      %v3042 = vrot.slane %v2661, 1
      %v3043 = vsel %vm412, %v3041, %v3042
      %v3044 = vrot.slane %v2658, 1
      %v3045 = vrot.slane %v2662, 1
      %v3046 = vsel %vm412, %v3044, %v3045
      %v3047 = vrot.slane %v2665, 1
      %v3048 = vrot.slane %v2669, 1
      %v3049 = vsel %vm412, %v3047, %v3048
      %v3050 = vrot.slane %v2666, 1
      %v3051 = vrot.slane %v2670, 1
      %v3052 = vsel %vm412, %v3050, %v3051
      %v3053 = vrot.slane %v2673, 1
      %v3054 = vrot.slane %v2677, 1
      %v3055 = vsel %vm412, %v3053, %v3054
      %v3056 = vrot.slane %v2674, 1
      %v3057 = vrot.slane %v2678, 1
      %v3058 = vsel %vm412, %v3056, %v3057
      %v3059 = vrot.slane %v2681, 1
      %v3060 = vrot.slane %v2685, 1
      %v3061 = vsel %vm412, %v3059, %v3060
      %v3062 = vrot.slane %v2682, 1
      %v3063 = vrot.slane %v2686, 1
      %v3064 = vsel %vm412, %v3062, %v3063
      %v3065 = vrot.slane %v2689, 1
      %v3066 = vrot.slane %v2693, 1
      %v3067 = vsel %vm412, %v3065, %v3066
      %v3068 = vrot.slane %v2690, 1
      %v3069 = vrot.slane %v2694, 1
      %v3070 = vsel %vm412, %v3068, %v3069
      %v3071 = vrot.slane %v2697, 1
      %v3072 = vrot.slane %v2701, 1
      %v3073 = vsel %vm412, %v3071, %v3072
      %v3074 = vrot.slane %v2698, 1
      %v3075 = vrot.slane %v2702, 1
      %v3076 = vsel %vm412, %v3074, %v3075
      %v3077 = vrot.slane %v2705, 1
      %v3078 = vrot.slane %v2709, 1
      %v3079 = vsel %vm412, %v3077, %v3078
      %v3080 = vrot.slane %v2706, 1
      %v3081 = vrot.slane %v2710, 1
      %v3082 = vsel %vm412, %v3080, %v3081
      %v3083 = vrot.slane %v2713, 1
      %v3084 = vrot.slane %v2717, 1
      %v3085 = vsel %vm412, %v3083, %v3084
      %v3086 = vrot.slane %v2714, 1
      %v3087 = vrot.slane %v2718, 1
      %v3088 = vsel %vm412, %v3086, %v3087
      %v3089 = vrot.slane %v2721, 1
      %v3090 = vrot.slane %v2725, 1
      %v3091 = vsel %vm412, %v3089, %v3090
      %v3092 = vrot.slane %v2722, 1
      %v3093 = vrot.slane %v2726, 1
      %v3094 = vsel %vm412, %v3092, %v3093
      %v3095 = vrot.slane %v2729, 1
      %v3096 = vrot.slane %v2733, 1
      %v3097 = vsel %vm412, %v3095, %v3096
      %v3098 = vrot.slane %v2730, 1
      %v3099 = vrot.slane %v2734, 1
      %v3100 = vsel %vm412, %v3098, %v3099
      %v3101 = vrot.slane %v2737, 1
      %v3102 = vrot.slane %v2741, 1
      %v3103 = vsel %vm412, %v3101, %v3102
      %v3104 = vrot.slane %v2738, 1
      %v3105 = vrot.slane %v2742, 1
      %v3106 = vsel %vm412, %v3104, %v3105
      %v3107 = vrot.slane %v2745, 1
      %v3108 = vrot.slane %v2749, 1
      %v3109 = vsel %vm412, %v3107, %v3108
      %v3110 = vrot.slane %v2746, 1
      %v3111 = vrot.slane %v2750, 1
      %v3112 = vsel %vm412, %v3110, %v3111
      %v3113 = vrot.slane %v2753, 1
      %v3114 = vrot.slane %v2757, 1
      %v3115 = vsel %vm412, %v3113, %v3114
      %v3116 = vrot.slane %v2754, 1
      %v3117 = vrot.slane %v2758, 1
      %v3118 = vsel %vm412, %v3116, %v3117
      %v3119 = vrot.slane %v2761, 1
      %v3120 = vrot.slane %v2765, 1
      %v3121 = vsel %vm412, %v3119, %v3120
      %v3122 = vrot.slane %v2762, 1
      %v3123 = vrot.slane %v2766, 1
      %v3124 = vsel %vm412, %v3122, %v3123
      %v3125 = vrot.slane %v2769, 1
      %v3126 = vrot.slane %v2773, 1
      %v3127 = vsel %vm412, %v3125, %v3126
      %v3128 = vrot.slane %v2770, 1
      %v3129 = vrot.slane %v2774, 1
      %v3130 = vsel %vm412, %v3128, %v3129
      %v3195 = vsel %vm412, %v3036, -inf
      %v3196 = vsel %vm412, %v3039, -inf
      %v3197 = vsel %vm412, %v3042, -inf
      %v3198 = vsel %vm412, %v3045, -inf
      %v3199 = vsel %vm412, %v3048, -inf
      %v3200 = vsel %vm412, %v3051, -inf
      %v3201 = vsel %vm412, %v3054, -inf
      %v3202 = vsel %vm412, %v3057, -inf
      %v3203 = vsel %vm412, %v3060, -inf
      %v3204 = vsel %vm412, %v3063, -inf
      %v3205 = vsel %vm412, %v3066, -inf
      %v3206 = vsel %vm412, %v3069, -inf
      %v3207 = vsel %vm412, %v3072, -inf
      %v3208 = vsel %vm412, %v3075, -inf
      %v3209 = vsel %vm412, %v3078, -inf
      %v3210 = vsel %vm412, %v3081, -inf
      %v3211 = vsel %vm412, %v3084, -inf
      %v3212 = vsel %vm412, %v3087, -inf
      %v3213 = vsel %vm412, %v3090, -inf
      %v3214 = vsel %vm412, %v3093, -inf
      %v3215 = vsel %vm412, %v3096, -inf
      %v3216 = vsel %vm412, %v3099, -inf
      %v3217 = vsel %vm412, %v3102, -inf
      %v3218 = vsel %vm412, %v3105, -inf
      %v3219 = vsel %vm412, %v3108, -inf
      %v3220 = vsel %vm412, %v3111, -inf
      %v3221 = vsel %vm412, %v3114, -inf
      %v3222 = vsel %vm412, %v3117, -inf
      %v3223 = vsel %vm412, %v3120, -inf
      %v3224 = vsel %vm412, %v3123, -inf
      %v3225 = vsel %vm412, %v3126, -inf
      %v3226 = vsel %vm412, %v3129, -inf
      %v3227 = vmax.f32 %v2649, %v3037
      %v3228 = vmax.f32 %v2650, %v3040
      %v3229 = vmax.f32 %v2653, %v3195
      %v3230 = vmax.f32 %v2654, %v3196
      %v3231 = vmax.f32 %v2657, %v3043
      %v3232 = vmax.f32 %v2658, %v3046
      %v3233 = vmax.f32 %v2661, %v3197
      %v3234 = vmax.f32 %v2662, %v3198
      %v3235 = vmax.f32 %v2665, %v3049
      %v3236 = vmax.f32 %v2666, %v3052
      %v3237 = vmax.f32 %v2669, %v3199
      %v3238 = vmax.f32 %v2670, %v3200
      %v3239 = vmax.f32 %v2673, %v3055
      %v3240 = vmax.f32 %v2674, %v3058
      %v3241 = vmax.f32 %v2677, %v3201
      %v3242 = vmax.f32 %v2678, %v3202
      %v3243 = vmax.f32 %v2681, %v3061
      %v3244 = vmax.f32 %v2682, %v3064
      %v3245 = vmax.f32 %v2685, %v3203
      %v3246 = vmax.f32 %v2686, %v3204
      %v3247 = vmax.f32 %v2689, %v3067
      %v3248 = vmax.f32 %v2690, %v3070
      %v3249 = vmax.f32 %v2693, %v3205
      %v3250 = vmax.f32 %v2694, %v3206
      %v3251 = vmax.f32 %v2697, %v3073
      %v3252 = vmax.f32 %v2698, %v3076
      %v3253 = vmax.f32 %v2701, %v3207
      %v3254 = vmax.f32 %v2702, %v3208
      %v3255 = vmax.f32 %v2705, %v3079
      %v3256 = vmax.f32 %v2706, %v3082
      %v3257 = vmax.f32 %v2709, %v3209
      %v3258 = vmax.f32 %v2710, %v3210
      %v3259 = vmax.f32 %v2713, %v3085
      %v3260 = vmax.f32 %v2714, %v3088
      %v3261 = vmax.f32 %v2717, %v3211
      %v3262 = vmax.f32 %v2718, %v3212
      %v3263 = vmax.f32 %v2721, %v3091
      %v3264 = vmax.f32 %v2722, %v3094
      %v3265 = vmax.f32 %v2725, %v3213
      %v3266 = vmax.f32 %v2726, %v3214
      %v3267 = vmax.f32 %v2729, %v3097
      %v3268 = vmax.f32 %v2730, %v3100
      %v3269 = vmax.f32 %v2733, %v3215
      %v3270 = vmax.f32 %v2734, %v3216
      %v3271 = vmax.f32 %v2737, %v3103
      %v3272 = vmax.f32 %v2738, %v3106
      %v3273 = vmax.f32 %v2741, %v3217
      %v3274 = vmax.f32 %v2742, %v3218
      %v3275 = vmax.f32 %v2745, %v3109
      %v3276 = vmax.f32 %v2746, %v3112
      %v3277 = vmax.f32 %v2749, %v3219
      %v3278 = vmax.f32 %v2750, %v3220
      %v3279 = vmax.f32 %v2753, %v3115
      %v3280 = vmax.f32 %v2754, %v3118
      %v3281 = vmax.f32 %v2757, %v3221
      %v3282 = vmax.f32 %v2758, %v3222
      %v3283 = vmax.f32 %v2761, %v3121
      %v3284 = vmax.f32 %v2762, %v3124
      %v3285 = vmax.f32 %v2765, %v3223
      %v3286 = vmax.f32 %v2766, %v3224
      %v3287 = vmax.f32 %v2769, %v3127
      %v3288 = vmax.f32 %v2770, %v3130
      %v3289 = vmax.f32 %v2773, %v3225
      %v3290 = vmax.f32 %v2774, %v3226
      %vm3355 = vcmask 1045504
      %v3356 = vrot.slane %v3227, 2
      %v3357 = vrot.slane %v3229, 2
      %v3358 = vsel %vm3355, %v3356, %v3357
      %v3359 = vrot.slane %v3228, 2
      %v3360 = vrot.slane %v3230, 2
      %v3361 = vsel %vm3355, %v3359, %v3360
      %v3362 = vrot.slane %v3231, 2
      %v3363 = vrot.slane %v3233, 2
      %v3364 = vsel %vm3355, %v3362, %v3363
      %v3365 = vrot.slane %v3232, 2
      %v3366 = vrot.slane %v3234, 2
      %v3367 = vsel %vm3355, %v3365, %v3366
      %v3368 = vrot.slane %v3235, 2
      %v3369 = vrot.slane %v3237, 2
      %v3370 = vsel %vm3355, %v3368, %v3369
      %v3371 = vrot.slane %v3236, 2
      %v3372 = vrot.slane %v3238, 2
      %v3373 = vsel %vm3355, %v3371, %v3372
      %v3374 = vrot.slane %v3239, 2
      %v3375 = vrot.slane %v3241, 2
      %v3376 = vsel %vm3355, %v3374, %v3375
      %v3377 = vrot.slane %v3240, 2
      %v3378 = vrot.slane %v3242, 2
      %v3379 = vsel %vm3355, %v3377, %v3378
      %v3380 = vrot.slane %v3243, 2
      %v3381 = vrot.slane %v3245, 2
      %v3382 = vsel %vm3355, %v3380, %v3381
      %v3383 = vrot.slane %v3244, 2
      %v3384 = vrot.slane %v3246, 2
      %v3385 = vsel %vm3355, %v3383, %v3384
      %v3386 = vrot.slane %v3247, 2
      %v3387 = vrot.slane %v3249, 2
      %v3388 = vsel %vm3355, %v3386, %v3387
      %v3389 = vrot.slane %v3248, 2
      %v3390 = vrot.slane %v3250, 2
      %v3391 = vsel %vm3355, %v3389, %v3390
      %v3392 = vrot.slane %v3251, 2
      %v3393 = vrot.slane %v3253, 2
      %v3394 = vsel %vm3355, %v3392, %v3393
      %v3395 = vrot.slane %v3252, 2
      %v3396 = vrot.slane %v3254, 2
      %v3397 = vsel %vm3355, %v3395, %v3396
      %v3398 = vrot.slane %v3255, 2
      %v3399 = vrot.slane %v3257, 2
      %v3400 = vsel %vm3355, %v3398, %v3399
      %v3401 = vrot.slane %v3256, 2
      %v3402 = vrot.slane %v3258, 2
      %v3403 = vsel %vm3355, %v3401, %v3402
      %v3404 = vrot.slane %v3259, 2
      %v3405 = vrot.slane %v3261, 2
      %v3406 = vsel %vm3355, %v3404, %v3405
      %v3407 = vrot.slane %v3260, 2
      %v3408 = vrot.slane %v3262, 2
      %v3409 = vsel %vm3355, %v3407, %v3408
      %v3410 = vrot.slane %v3263, 2
      %v3411 = vrot.slane %v3265, 2
      %v3412 = vsel %vm3355, %v3410, %v3411
      %v3413 = vrot.slane %v3264, 2
      %v3414 = vrot.slane %v3266, 2
      %v3415 = vsel %vm3355, %v3413, %v3414
      %v3416 = vrot.slane %v3267, 2
      %v3417 = vrot.slane %v3269, 2
      %v3418 = vsel %vm3355, %v3416, %v3417
      %v3419 = vrot.slane %v3268, 2
      %v3420 = vrot.slane %v3270, 2
      %v3421 = vsel %vm3355, %v3419, %v3420
      %v3422 = vrot.slane %v3271, 2
      %v3423 = vrot.slane %v3273, 2
      %v3424 = vsel %vm3355, %v3422, %v3423
      %v3425 = vrot.slane %v3272, 2
      %v3426 = vrot.slane %v3274, 2
      %v3427 = vsel %vm3355, %v3425, %v3426
      %v3428 = vrot.slane %v3275, 2
      %v3429 = vrot.slane %v3277, 2
      %v3430 = vsel %vm3355, %v3428, %v3429
      %v3431 = vrot.slane %v3276, 2
      %v3432 = vrot.slane %v3278, 2
      %v3433 = vsel %vm3355, %v3431, %v3432
      %v3434 = vrot.slane %v3279, 2
      %v3435 = vrot.slane %v3281, 2
      %v3436 = vsel %vm3355, %v3434, %v3435
      %v3437 = vrot.slane %v3280, 2
      %v3438 = vrot.slane %v3282, 2
      %v3439 = vsel %vm3355, %v3437, %v3438
      %v3440 = vrot.slane %v3283, 2
      %v3441 = vrot.slane %v3285, 2
      %v3442 = vsel %vm3355, %v3440, %v3441
      %v3443 = vrot.slane %v3284, 2
      %v3444 = vrot.slane %v3286, 2
      %v3445 = vsel %vm3355, %v3443, %v3444
      %v3446 = vrot.slane %v3287, 2
      %v3447 = vrot.slane %v3289, 2
      %v3448 = vsel %vm3355, %v3446, %v3447
      %v3449 = vrot.slane %v3288, 2
      %v3450 = vrot.slane %v3290, 2
      %v3451 = vsel %vm3355, %v3449, %v3450
      %v3516 = vsel %vm3355, %v3357, -inf
      %v3517 = vsel %vm3355, %v3360, -inf
      %v3518 = vsel %vm3355, %v3363, -inf
      %v3519 = vsel %vm3355, %v3366, -inf
      %v3520 = vsel %vm3355, %v3369, -inf
      %v3521 = vsel %vm3355, %v3372, -inf
      %v3522 = vsel %vm3355, %v3375, -inf
      %v3523 = vsel %vm3355, %v3378, -inf
      %v3524 = vsel %vm3355, %v3381, -inf
      %v3525 = vsel %vm3355, %v3384, -inf
      %v3526 = vsel %vm3355, %v3387, -inf
      %v3527 = vsel %vm3355, %v3390, -inf
      %v3528 = vsel %vm3355, %v3393, -inf
      %v3529 = vsel %vm3355, %v3396, -inf
      %v3530 = vsel %vm3355, %v3399, -inf
      %v3531 = vsel %vm3355, %v3402, -inf
      %v3532 = vsel %vm3355, %v3405, -inf
      %v3533 = vsel %vm3355, %v3408, -inf
      %v3534 = vsel %vm3355, %v3411, -inf
      %v3535 = vsel %vm3355, %v3414, -inf
      %v3536 = vsel %vm3355, %v3417, -inf
      %v3537 = vsel %vm3355, %v3420, -inf
      %v3538 = vsel %vm3355, %v3423, -inf
      %v3539 = vsel %vm3355, %v3426, -inf
      %v3540 = vsel %vm3355, %v3429, -inf
      %v3541 = vsel %vm3355, %v3432, -inf
      %v3542 = vsel %vm3355, %v3435, -inf
      %v3543 = vsel %vm3355, %v3438, -inf
      %v3544 = vsel %vm3355, %v3441, -inf
      %v3545 = vsel %vm3355, %v3444, -inf
      %v3546 = vsel %vm3355, %v3447, -inf
      %v3547 = vsel %vm3355, %v3450, -inf
      %v3548 = vmax.f32 %v3227, %v3358
      %v3549 = vmax.f32 %v3228, %v3361
      %v3550 = vmax.f32 %v3229, %v3516
      %v3551 = vmax.f32 %v3230, %v3517
      %v3552 = vmax.f32 %v3231, %v3364
      %v3553 = vmax.f32 %v3232, %v3367
      %v3554 = vmax.f32 %v3233, %v3518
      %v3555 = vmax.f32 %v3234, %v3519
      %v3556 = vmax.f32 %v3235, %v3370
      %v3557 = vmax.f32 %v3236, %v3373
      %v3558 = vmax.f32 %v3237, %v3520
      %v3559 = vmax.f32 %v3238, %v3521
      %v3560 = vmax.f32 %v3239, %v3376
      %v3561 = vmax.f32 %v3240, %v3379
      %v3562 = vmax.f32 %v3241, %v3522
      %v3563 = vmax.f32 %v3242, %v3523
      %v3564 = vmax.f32 %v3243, %v3382
      %v3565 = vmax.f32 %v3244, %v3385
      %v3566 = vmax.f32 %v3245, %v3524
      %v3567 = vmax.f32 %v3246, %v3525
      %v3568 = vmax.f32 %v3247, %v3388
      %v3569 = vmax.f32 %v3248, %v3391
      %v3570 = vmax.f32 %v3249, %v3526
      %v3571 = vmax.f32 %v3250, %v3527
      %v3572 = vmax.f32 %v3251, %v3394
      %v3573 = vmax.f32 %v3252, %v3397
      %v3574 = vmax.f32 %v3253, %v3528
      %v3575 = vmax.f32 %v3254, %v3529
      %v3576 = vmax.f32 %v3255, %v3400
      %v3577 = vmax.f32 %v3256, %v3403
      %v3578 = vmax.f32 %v3257, %v3530
      %v3579 = vmax.f32 %v3258, %v3531
      %v3580 = vmax.f32 %v3259, %v3406
      %v3581 = vmax.f32 %v3260, %v3409
      %v3582 = vmax.f32 %v3261, %v3532
      %v3583 = vmax.f32 %v3262, %v3533
      %v3584 = vmax.f32 %v3263, %v3412
      %v3585 = vmax.f32 %v3264, %v3415
      %v3586 = vmax.f32 %v3265, %v3534
      %v3587 = vmax.f32 %v3266, %v3535
      %v3588 = vmax.f32 %v3267, %v3418
      %v3589 = vmax.f32 %v3268, %v3421
      %v3590 = vmax.f32 %v3269, %v3536
      %v3591 = vmax.f32 %v3270, %v3537
      %v3592 = vmax.f32 %v3271, %v3424
      %v3593 = vmax.f32 %v3272, %v3427
      %v3594 = vmax.f32 %v3273, %v3538
      %v3595 = vmax.f32 %v3274, %v3539
      %v3596 = vmax.f32 %v3275, %v3430
      %v3597 = vmax.f32 %v3276, %v3433
      %v3598 = vmax.f32 %v3277, %v3540
      %v3599 = vmax.f32 %v3278, %v3541
      %v3600 = vmax.f32 %v3279, %v3436
      %v3601 = vmax.f32 %v3280, %v3439
      %v3602 = vmax.f32 %v3281, %v3542
      %v3603 = vmax.f32 %v3282, %v3543
      %v3604 = vmax.f32 %v3283, %v3442
      %v3605 = vmax.f32 %v3284, %v3445
      %v3606 = vmax.f32 %v3285, %v3544
      %v3607 = vmax.f32 %v3286, %v3545
      %v3608 = vmax.f32 %v3287, %v3448
      %v3609 = vmax.f32 %v3288, %v3451
      %v3610 = vmax.f32 %v3289, %v3546
      %v3611 = vmax.f32 %v3290, %v3547
      %vm3676 = vcmask 1043456
      %v3677 = vrot.slane %v3548, 4
      %v3678 = vrot.slane %v3550, 4
      %v3679 = vsel %vm3676, %v3677, %v3678
      %v3680 = vrot.slane %v3549, 4
      %v3681 = vrot.slane %v3551, 4
      %v3682 = vsel %vm3676, %v3680, %v3681
      %v3683 = vrot.slane %v3552, 4
      %v3684 = vrot.slane %v3554, 4
      %v3685 = vsel %vm3676, %v3683, %v3684
      %v3686 = vrot.slane %v3553, 4
      %v3687 = vrot.slane %v3555, 4
      %v3688 = vsel %vm3676, %v3686, %v3687
      %v3689 = vrot.slane %v3556, 4
      %v3690 = vrot.slane %v3558, 4
      %v3691 = vsel %vm3676, %v3689, %v3690
      %v3692 = vrot.slane %v3557, 4
      %v3693 = vrot.slane %v3559, 4
      %v3694 = vsel %vm3676, %v3692, %v3693
      %v3695 = vrot.slane %v3560, 4
      %v3696 = vrot.slane %v3562, 4
      %v3697 = vsel %vm3676, %v3695, %v3696
      %v3698 = vrot.slane %v3561, 4
      %v3699 = vrot.slane %v3563, 4
      %v3700 = vsel %vm3676, %v3698, %v3699
      %v3701 = vrot.slane %v3564, 4
      %v3702 = vrot.slane %v3566, 4
      %v3703 = vsel %vm3676, %v3701, %v3702
      %v3704 = vrot.slane %v3565, 4
      %v3705 = vrot.slane %v3567, 4
      %v3706 = vsel %vm3676, %v3704, %v3705
      %v3707 = vrot.slane %v3568, 4
      %v3708 = vrot.slane %v3570, 4
      %v3709 = vsel %vm3676, %v3707, %v3708
      %v3710 = vrot.slane %v3569, 4
      %v3711 = vrot.slane %v3571, 4
      %v3712 = vsel %vm3676, %v3710, %v3711
      %v3713 = vrot.slane %v3572, 4
      %v3714 = vrot.slane %v3574, 4
      %v3715 = vsel %vm3676, %v3713, %v3714
      %v3716 = vrot.slane %v3573, 4
      %v3717 = vrot.slane %v3575, 4
      %v3718 = vsel %vm3676, %v3716, %v3717
      %v3719 = vrot.slane %v3576, 4
      %v3720 = vrot.slane %v3578, 4
      %v3721 = vsel %vm3676, %v3719, %v3720
      %v3722 = vrot.slane %v3577, 4
      %v3723 = vrot.slane %v3579, 4
      %v3724 = vsel %vm3676, %v3722, %v3723
      %v3725 = vrot.slane %v3580, 4
      %v3726 = vrot.slane %v3582, 4
      %v3727 = vsel %vm3676, %v3725, %v3726
      %v3728 = vrot.slane %v3581, 4
      %v3729 = vrot.slane %v3583, 4
      %v3730 = vsel %vm3676, %v3728, %v3729
      %v3731 = vrot.slane %v3584, 4
      %v3732 = vrot.slane %v3586, 4
      %v3733 = vsel %vm3676, %v3731, %v3732
      %v3734 = vrot.slane %v3585, 4
      %v3735 = vrot.slane %v3587, 4
      %v3736 = vsel %vm3676, %v3734, %v3735
      %v3737 = vrot.slane %v3588, 4
      %v3738 = vrot.slane %v3590, 4
      %v3739 = vsel %vm3676, %v3737, %v3738
      %v3740 = vrot.slane %v3589, 4
      %v3741 = vrot.slane %v3591, 4
      %v3742 = vsel %vm3676, %v3740, %v3741
      %v3743 = vrot.slane %v3592, 4
      %v3744 = vrot.slane %v3594, 4
      %v3745 = vsel %vm3676, %v3743, %v3744
      %v3746 = vrot.slane %v3593, 4
      %v3747 = vrot.slane %v3595, 4
      %v3748 = vsel %vm3676, %v3746, %v3747
      %v3749 = vrot.slane %v3596, 4
      %v3750 = vrot.slane %v3598, 4
      %v3751 = vsel %vm3676, %v3749, %v3750
      %v3752 = vrot.slane %v3597, 4
      %v3753 = vrot.slane %v3599, 4
      %v3754 = vsel %vm3676, %v3752, %v3753
      %v3755 = vrot.slane %v3600, 4
      %v3756 = vrot.slane %v3602, 4
      %v3757 = vsel %vm3676, %v3755, %v3756
      %v3758 = vrot.slane %v3601, 4
      %v3759 = vrot.slane %v3603, 4
      %v3760 = vsel %vm3676, %v3758, %v3759
      %v3761 = vrot.slane %v3604, 4
      %v3762 = vrot.slane %v3606, 4
      %v3763 = vsel %vm3676, %v3761, %v3762
      %v3764 = vrot.slane %v3605, 4
      %v3765 = vrot.slane %v3607, 4
      %v3766 = vsel %vm3676, %v3764, %v3765
      %v3767 = vrot.slane %v3608, 4
      %v3768 = vrot.slane %v3610, 4
      %v3769 = vsel %vm3676, %v3767, %v3768
      %v3770 = vrot.slane %v3609, 4
      %v3771 = vrot.slane %v3611, 4
      %v3772 = vsel %vm3676, %v3770, %v3771
      %v3837 = vsel %vm3676, %v3678, -inf
      %v3838 = vsel %vm3676, %v3681, -inf
      %v3839 = vsel %vm3676, %v3684, -inf
      %v3840 = vsel %vm3676, %v3687, -inf
      %v3841 = vsel %vm3676, %v3690, -inf
      %v3842 = vsel %vm3676, %v3693, -inf
      %v3843 = vsel %vm3676, %v3696, -inf
      %v3844 = vsel %vm3676, %v3699, -inf
      %v3845 = vsel %vm3676, %v3702, -inf
      %v3846 = vsel %vm3676, %v3705, -inf
      %v3847 = vsel %vm3676, %v3708, -inf
      %v3848 = vsel %vm3676, %v3711, -inf
      %v3849 = vsel %vm3676, %v3714, -inf
      %v3850 = vsel %vm3676, %v3717, -inf
      %v3851 = vsel %vm3676, %v3720, -inf
      %v3852 = vsel %vm3676, %v3723, -inf
      %v3853 = vsel %vm3676, %v3726, -inf
      %v3854 = vsel %vm3676, %v3729, -inf
      %v3855 = vsel %vm3676, %v3732, -inf
      %v3856 = vsel %vm3676, %v3735, -inf
      %v3857 = vsel %vm3676, %v3738, -inf
      %v3858 = vsel %vm3676, %v3741, -inf
      %v3859 = vsel %vm3676, %v3744, -inf
      %v3860 = vsel %vm3676, %v3747, -inf
      %v3861 = vsel %vm3676, %v3750, -inf
      %v3862 = vsel %vm3676, %v3753, -inf
      %v3863 = vsel %vm3676, %v3756, -inf
      %v3864 = vsel %vm3676, %v3759, -inf
      %v3865 = vsel %vm3676, %v3762, -inf
      %v3866 = vsel %vm3676, %v3765, -inf
      %v3867 = vsel %vm3676, %v3768, -inf
      %v3868 = vsel %vm3676, %v3771, -inf
      %v3869 = vmax.f32 %v3548, %v3679
      %v3870 = vmax.f32 %v3549, %v3682
      %v3871 = vmax.f32 %v3550, %v3837
      %v3872 = vmax.f32 %v3551, %v3838
      %v3873 = vmax.f32 %v3552, %v3685
      %v3874 = vmax.f32 %v3553, %v3688
      %v3875 = vmax.f32 %v3554, %v3839
      %v3876 = vmax.f32 %v3555, %v3840
      %v3877 = vmax.f32 %v3556, %v3691
      %v3878 = vmax.f32 %v3557, %v3694
      %v3879 = vmax.f32 %v3558, %v3841
      %v3880 = vmax.f32 %v3559, %v3842
      %v3881 = vmax.f32 %v3560, %v3697
      %v3882 = vmax.f32 %v3561, %v3700
      %v3883 = vmax.f32 %v3562, %v3843
      %v3884 = vmax.f32 %v3563, %v3844
      %v3885 = vmax.f32 %v3564, %v3703
      %v3886 = vmax.f32 %v3565, %v3706
      %v3887 = vmax.f32 %v3566, %v3845
      %v3888 = vmax.f32 %v3567, %v3846
      %v3889 = vmax.f32 %v3568, %v3709
      %v3890 = vmax.f32 %v3569, %v3712
      %v3891 = vmax.f32 %v3570, %v3847
      %v3892 = vmax.f32 %v3571, %v3848
      %v3893 = vmax.f32 %v3572, %v3715
      %v3894 = vmax.f32 %v3573, %v3718
      %v3895 = vmax.f32 %v3574, %v3849
      %v3896 = vmax.f32 %v3575, %v3850
      %v3897 = vmax.f32 %v3576, %v3721
      %v3898 = vmax.f32 %v3577, %v3724
      %v3899 = vmax.f32 %v3578, %v3851
      %v3900 = vmax.f32 %v3579, %v3852
      %v3901 = vmax.f32 %v3580, %v3727
      %v3902 = vmax.f32 %v3581, %v3730
      %v3903 = vmax.f32 %v3582, %v3853
      %v3904 = vmax.f32 %v3583, %v3854
      %v3905 = vmax.f32 %v3584, %v3733
      %v3906 = vmax.f32 %v3585, %v3736
      %v3907 = vmax.f32 %v3586, %v3855
      %v3908 = vmax.f32 %v3587, %v3856
      %v3909 = vmax.f32 %v3588, %v3739
      %v3910 = vmax.f32 %v3589, %v3742
      %v3911 = vmax.f32 %v3590, %v3857
      %v3912 = vmax.f32 %v3591, %v3858
      %v3913 = vmax.f32 %v3592, %v3745
      %v3914 = vmax.f32 %v3593, %v3748
      %v3915 = vmax.f32 %v3594, %v3859
      %v3916 = vmax.f32 %v3595, %v3860
      %v3917 = vmax.f32 %v3596, %v3751
      %v3918 = vmax.f32 %v3597, %v3754
      %v3919 = vmax.f32 %v3598, %v3861
      %v3920 = vmax.f32 %v3599, %v3862
      %v3921 = vmax.f32 %v3600, %v3757
      %v3922 = vmax.f32 %v3601, %v3760
      %v3923 = vmax.f32 %v3602, %v3863
      %v3924 = vmax.f32 %v3603, %v3864
      %v3925 = vmax.f32 %v3604, %v3763
      %v3926 = vmax.f32 %v3605, %v3766
      %v3927 = vmax.f32 %v3606, %v3865
      %v3928 = vmax.f32 %v3607, %v3866
      %v3929 = vmax.f32 %v3608, %v3769
      %v3930 = vmax.f32 %v3609, %v3772
      %v3931 = vmax.f32 %v3610, %v3867
      %v3932 = vmax.f32 %v3611, %v3868
      %v3933 = vmax.f32 %v3869, %v3871
      %v3934 = vmax.f32 %v3870, %v3872
      %v3935 = vmax.f32 %v3873, %v3875
      %v3936 = vmax.f32 %v3874, %v3876
      %v3937 = vmax.f32 %v3877, %v3879
      %v3938 = vmax.f32 %v3878, %v3880
      %v3939 = vmax.f32 %v3881, %v3883
      %v3940 = vmax.f32 %v3882, %v3884
      %v3941 = vmax.f32 %v3885, %v3887
      %v3942 = vmax.f32 %v3886, %v3888
      %v3943 = vmax.f32 %v3889, %v3891
      %v3944 = vmax.f32 %v3890, %v3892
      %v3945 = vmax.f32 %v3893, %v3895
      %v3946 = vmax.f32 %v3894, %v3896
      %v3947 = vmax.f32 %v3897, %v3899
      %v3948 = vmax.f32 %v3898, %v3900
      %v3949 = vmax.f32 %v3901, %v3903
      %v3950 = vmax.f32 %v3902, %v3904
      %v3951 = vmax.f32 %v3905, %v3907
      %v3952 = vmax.f32 %v3906, %v3908
      %v3953 = vmax.f32 %v3909, %v3911
      %v3954 = vmax.f32 %v3910, %v3912
      %v3955 = vmax.f32 %v3913, %v3915
      %v3956 = vmax.f32 %v3914, %v3916
      %v3957 = vmax.f32 %v3917, %v3919
      %v3958 = vmax.f32 %v3918, %v3920
      %v3959 = vmax.f32 %v3921, %v3923
      %v3960 = vmax.f32 %v3922, %v3924
      %v3961 = vmax.f32 %v3925, %v3927
      %v3962 = vmax.f32 %v3926, %v3928
      %v3963 = vmax.f32 %v3929, %v3931
      %v3964 = vmax.f32 %v3930, %v3932
      %v3965 = vadd.f32 %v2939, %v2940
      %v3966 = vadd.f32 %v2941, %v2942
      %v3967 = vadd.f32 %v2943, %v2944
      %v3968 = vadd.f32 %v2945, %v2946
      %v3969 = vadd.f32 %v2947, %v2948
      %v3970 = vadd.f32 %v2949, %v2950
      %v3971 = vadd.f32 %v2951, %v2952
      %v3972 = vadd.f32 %v2953, %v2954
      %v3973 = vadd.f32 %v2955, %v2956
      %v3974 = vadd.f32 %v2957, %v2958
      %v3975 = vadd.f32 %v2959, %v2960
      %v3976 = vadd.f32 %v2961, %v2962
      %v3977 = vadd.f32 %v2963, %v2964
      %v3978 = vadd.f32 %v2965, %v2966
      %v3979 = vadd.f32 %v2967, %v2968
      %v3980 = vadd.f32 %v2969, %v2970
      %v3981 = vadd.f32 %v2923, %v2924
      %v3982 = vadd.f32 %v2925, %v2926
      %v3983 = vadd.f32 %v2927, %v2928
      %v3984 = vadd.f32 %v2929, %v2930
      %v3985 = vadd.f32 %v2931, %v2932
      %v3986 = vadd.f32 %v2933, %v2934
      %v3987 = vadd.f32 %v2935, %v2936
      %v3988 = vadd.f32 %v2937, %v2938
      %v3989 = vadd.f32 %v2883, %v2884
      %v3990 = vadd.f32 %v2885, %v2886
      %v3991 = vadd.f32 %v2887, %v2888
      %v3992 = vadd.f32 %v2889, %v2890
      %v3993 = vadd.f32 %v2831, %v2832
      %v3994 = vadd.f32 %v2833, %v2834
      %v3995 = vadd.f32 %v2767, %v2768
      %v3996 = vadd.f32 %v2771, %v2772
      %v3997 = vadd.f32 %v3965, %v3933
      %v3998 = vadd.f32 %v3966, %v3871
      %v3999 = vadd.f32 %v3967, %v3935
      %v4000 = vadd.f32 %v3968, %v3875
      %v4001 = vadd.f32 %v3969, %v3937
      %v4002 = vadd.f32 %v3970, %v3879
      %v4003 = vadd.f32 %v3971, %v3939
      %v4004 = vadd.f32 %v3972, %v3883
      %v4005 = vadd.f32 %v3973, %v3941
      %v4006 = vadd.f32 %v3974, %v3887
      %v4007 = vadd.f32 %v3975, %v3943
      %v4008 = vadd.f32 %v3976, %v3891
      %v4009 = vadd.f32 %v3977, %v3945
      %v4010 = vadd.f32 %v3978, %v3895
      %v4011 = vadd.f32 %v3979, %v3947
      %v4012 = vadd.f32 %v3980, %v3899
      %v4013 = vadd.f32 %v3981, %v3949
      %v4014 = vadd.f32 %v3982, %v3903
      %v4015 = vadd.f32 %v3983, %v3951
      %v4016 = vadd.f32 %v3984, %v3907
      %v4017 = vadd.f32 %v3985, %v3953
      %v4018 = vadd.f32 %v3986, %v3911
      %v4019 = vadd.f32 %v3987, %v3955
      %v4020 = vadd.f32 %v3988, %v3915
      %v4021 = vadd.f32 %v3989, %v3957
      %v4022 = vadd.f32 %v3990, %v3919
      %v4023 = vadd.f32 %v3991, %v3959
      %v4024 = vadd.f32 %v3992, %v3923
      %v4025 = vadd.f32 %v3993, %v3961
      %v4026 = vadd.f32 %v3994, %v3927
      %v4027 = vadd.f32 %v3995, %v3963
      %v4028 = vadd.f32 %v3996, %v3931
      %v4029 = vadd.f32 %v3997, %v3934
      %v4030 = vadd.f32 %v3998, %v3872
      %v4031 = vadd.f32 %v3999, %v3936
      %v4032 = vadd.f32 %v4000, %v3876
      %v4033 = vadd.f32 %v4001, %v3938
      %v4034 = vadd.f32 %v4002, %v3880
      %v4035 = vadd.f32 %v4003, %v3940
      %v4036 = vadd.f32 %v4004, %v3884
      %v4037 = vadd.f32 %v4005, %v3942
      %v4038 = vadd.f32 %v4006, %v3888
      %v4039 = vadd.f32 %v4007, %v3944
      %v4040 = vadd.f32 %v4008, %v3892
      %v4041 = vadd.f32 %v4009, %v3946
      %v4042 = vadd.f32 %v4010, %v3896
      %v4043 = vadd.f32 %v4011, %v3948
      %v4044 = vadd.f32 %v4012, %v3900
      %v4045 = vadd.f32 %v4013, %v3950
      %v4046 = vadd.f32 %v4014, %v3904
      %v4047 = vadd.f32 %v4015, %v3952
      %v4048 = vadd.f32 %v4016, %v3908
      %v4049 = vadd.f32 %v4017, %v3954
      %v4050 = vadd.f32 %v4018, %v3912
      %v4051 = vadd.f32 %v4019, %v3956
      %v4052 = vadd.f32 %v4020, %v3916
      %v4053 = vadd.f32 %v4021, %v3958
      %v4054 = vadd.f32 %v4022, %v3920
      %v4055 = vadd.f32 %v4023, %v3960
      %v4056 = vadd.f32 %v4024, %v3924
      %v4057 = vadd.f32 %v4025, %v3962
      %v4058 = vadd.f32 %v4026, %v3928
      %v4059 = vadd.f32 %v4027, %v3964
      %v4060 = vadd.f32 %v4028, %v3932
      %v4061 = vpack.c.bf16 %v4030, %v4029
      %v4062 = vpack.c.bf16 %v4032, %v4031
      %v4063 = vpack.c.bf16 %v4034, %v4033
      %v4064 = vpack.c.bf16 %v4036, %v4035
      %v4065 = vpack.c.bf16 %v4038, %v4037
      %v4066 = vpack.c.bf16 %v4040, %v4039
      %v4067 = vpack.c.bf16 %v4042, %v4041
      %v4068 = vpack.c.bf16 %v4044, %v4043
      %v4069 = vpack.c.bf16 %v4046, %v4045
      %v4070 = vpack.c.bf16 %v4048, %v4047
      %v4071 = vpack.c.bf16 %v4050, %v4049
      %v4072 = vpack.c.bf16 %v4052, %v4051
      %v4073 = vpack.c.bf16 %v4054, %v4053
      %v4074 = vpack.c.bf16 %v4056, %v4055
      %v4075 = vpack.c.bf16 %v4058, %v4057
      %v4076 = vpack.c.bf16 %v4060, %v4059
      %v4077 = vld [vmem:[%s3] sm:$0xf]
      %v4078 = vld [vmem:[%s3 + $0x4] sm:$0xf]
      %v4079 = vld [vmem:[%s3 + $0x8] sm:$0xf]
      %v4080 = vld [vmem:[%s3 + $0xc] sm:$0xf]
      %v4081 = vld [vmem:[%s3 + $0x10] sm:$0xf]
      %v4082 = vld [vmem:[%s3 + $0x14] sm:$0xf]
      %v4083 = vld [vmem:[%s3 + $0x18] sm:$0xf]
      %v4084 = vld [vmem:[%s3 + $0x1c] sm:$0xf]
      %v4085 = vld [vmem:[%s3 + $0x20] sm:$0xf]
      %v4086 = vld [vmem:[%s3 + $0x24] sm:$0xf]
      %v4087 = vld [vmem:[%s3 + $0x28] sm:$0xf]
      %v4088 = vld [vmem:[%s3 + $0x2c] sm:$0xf]
      %v4089 = vld [vmem:[%s3 + $0x30] sm:$0xf]
      %v4090 = vld [vmem:[%s3 + $0x34] sm:$0xf]
      %v4091 = vld [vmem:[%s3 + $0x38] sm:$0xf]
      %v4092 = vld [vmem:[%s3 + $0x3c] sm:$0xf]
      %v4093 = vld [vmem:[%s3 + $0x40] sm:$0xf]
      %v4094 = vld [vmem:[%s3 + $0x44] sm:$0xf]
      %v4095 = vld [vmem:[%s3 + $0x48] sm:$0xf]
      %v4096 = vld [vmem:[%s3 + $0x4c] sm:$0xf]
      %v4097 = vld [vmem:[%s3 + $0x50] sm:$0xf]
      %v4098 = vld [vmem:[%s3 + $0x54] sm:$0xf]
      %v4099 = vld [vmem:[%s3 + $0x58] sm:$0xf]
      %v4100 = vld [vmem:[%s3 + $0x5c] sm:$0xf]
      %v4101 = vld [vmem:[%s3 + $0x60] sm:$0xf]
      %v4102 = vld [vmem:[%s3 + $0x64] sm:$0xf]
      %v4103 = vld [vmem:[%s3 + $0x68] sm:$0xf]
      %v4104 = vld [vmem:[%s3 + $0x6c] sm:$0xf]
      %v4105 = vld [vmem:[%s3 + $0x70] sm:$0xf]
      %v4106 = vld [vmem:[%s3 + $0x74] sm:$0xf]
      %v4107 = vld [vmem:[%s3 + $0x78] sm:$0xf]
      %v4108 = vld [vmem:[%s3 + $0x7c] sm:$0xf]
      %v4109 = vld [vmem:[%s3 + $0x80] sm:$0xf]
      %v4110 = vld [vmem:[%s3 + $0x84] sm:$0xf]
      %v4111 = vld [vmem:[%s3 + $0x88] sm:$0xf]
      %v4112 = vld [vmem:[%s3 + $0x8c] sm:$0xf]
      %v4113 = vld [vmem:[%s3 + $0x90] sm:$0xf]
      %v4114 = vld [vmem:[%s3 + $0x94] sm:$0xf]
      %v4115 = vld [vmem:[%s3 + $0x98] sm:$0xf]
      %v4116 = vld [vmem:[%s3 + $0x9c] sm:$0xf]
      %v4117 = vld [vmem:[%s3 + $0xa0] sm:$0xf]
      %v4118 = vld [vmem:[%s3 + $0xa4] sm:$0xf]
      %v4119 = vld [vmem:[%s3 + $0xa8] sm:$0xf]
      %v4120 = vld [vmem:[%s3 + $0xac] sm:$0xf]
      %v4121 = vld [vmem:[%s3 + $0xb0] sm:$0xf]
      %v4122 = vld [vmem:[%s3 + $0xb4] sm:$0xf]
      %v4123 = vld [vmem:[%s3 + $0xb8] sm:$0xf]
      %v4124 = vld [vmem:[%s3 + $0xbc] sm:$0xf]
      %v4173 = vunpack.c.l.b16 %v4077
      %v4174 = vunpack.c.l.b16 %v4078
      %v4175 = vunpack.c.l.b16 %v4079
      %v4176 = vunpack.c.l.b16 %v4080
      %v4177 = vunpack.c.l.b16 %v4081
      %v4178 = vunpack.c.l.b16 %v4082
      %v4179 = vunpack.c.l.b16 %v4083
      %v4180 = vunpack.c.l.b16 %v4084
      %v4181 = vunpack.c.l.b16 %v4085
      %v4182 = vunpack.c.l.b16 %v4086
      %v4183 = vunpack.c.l.b16 %v4087
      %v4184 = vunpack.c.l.b16 %v4088
      %v4185 = vunpack.c.l.b16 %v4089
      %v4186 = vunpack.c.l.b16 %v4090
      %v4187 = vunpack.c.l.b16 %v4091
      %v4188 = vunpack.c.l.b16 %v4092
      %v4189 = vunpack.c.l.b16 %v4093
      %v4190 = vunpack.c.l.b16 %v4094
      %v4191 = vunpack.c.l.b16 %v4095
      %v4192 = vunpack.c.l.b16 %v4096
      %v4193 = vunpack.c.l.b16 %v4097
      %v4194 = vunpack.c.l.b16 %v4098
      %v4195 = vunpack.c.l.b16 %v4099
      %v4196 = vunpack.c.l.b16 %v4100
      %v4197 = vunpack.c.l.b16 %v4101
      %v4198 = vunpack.c.l.b16 %v4102
      %v4199 = vunpack.c.l.b16 %v4103
      %v4200 = vunpack.c.l.b16 %v4104
      %v4201 = vunpack.c.l.b16 %v4105
      %v4202 = vunpack.c.l.b16 %v4106
      %v4203 = vunpack.c.l.b16 %v4107
      %v4204 = vunpack.c.l.b16 %v4108
      %v4205 = vunpack.c.l.b16 %v4109
      %v4206 = vunpack.c.l.b16 %v4110
      %v4207 = vunpack.c.l.b16 %v4111
      %v4208 = vunpack.c.l.b16 %v4112
      %v4209 = vunpack.c.l.b16 %v4113
      %v4210 = vunpack.c.l.b16 %v4114
      %v4211 = vunpack.c.l.b16 %v4115
      %v4212 = vunpack.c.l.b16 %v4116
      %v4213 = vunpack.c.l.b16 %v4117
      %v4214 = vunpack.c.l.b16 %v4118
      %v4215 = vunpack.c.l.b16 %v4119
      %v4216 = vunpack.c.l.b16 %v4120
      %v4217 = vunpack.c.l.b16 %v4121
      %v4218 = vunpack.c.l.b16 %v4122
      %v4219 = vunpack.c.l.b16 %v4123
      %v4220 = vunpack.c.l.b16 %v4124
      %v4221 = vpack.c.b16 %v4174, %v4173
      %v4222 = vpack.c.b16 %v4176, %v4175
      %v4223 = vpack.c.b16 %v4178, %v4177
      %v4224 = vpack.c.b16 %v4180, %v4179
      %v4225 = vpack.c.b16 %v4182, %v4181
      %v4226 = vpack.c.b16 %v4184, %v4183
      %v4227 = vpack.c.b16 %v4186, %v4185
      %v4228 = vpack.c.b16 %v4188, %v4187
      %v4229 = vpack.c.b16 %v4190, %v4189
      %v4230 = vpack.c.b16 %v4192, %v4191
      %v4231 = vpack.c.b16 %v4194, %v4193
      %v4232 = vpack.c.b16 %v4196, %v4195
      %v4233 = vpack.c.b16 %v4198, %v4197
      %v4234 = vpack.c.b16 %v4200, %v4199
      %v4235 = vpack.c.b16 %v4202, %v4201
      %v4236 = vpack.c.b16 %v4204, %v4203
      %v4237 = vpack.c.b16 %v4206, %v4205
      %v4238 = vpack.c.b16 %v4208, %v4207
      %v4239 = vpack.c.b16 %v4210, %v4209
      %v4240 = vpack.c.b16 %v4212, %v4211
      %v4241 = vpack.c.b16 %v4214, %v4213
      %v4242 = vpack.c.b16 %v4216, %v4215
      %v4243 = vpack.c.b16 %v4218, %v4217
      %v4244 = vpack.c.b16 %v4220, %v4219
      %4269 = vmatprep.subr.bf16.mxu0 0
      %4270 = vmatpush1.bf16.msra.mxu0 %v4221
      %4271 = vmatprep.subr.bf16.mxu0 0
      %4272 = vmatpush1.bf16.msra.mxu0 %v4222
      %4273 = vmatprep.subr.bf16.mxu0 0
      %4274 = vmatpush1.bf16.msra.mxu0 %v4223
      %4275 = vmatprep.subr.bf16.mxu0 0
      %4276 = vmatpush1.bf16.msra.mxu0 %v4224
      %4277 = vmatprep.subr.bf16.mxu0 0
      %4278 = vmatpush1.bf16.msra.mxu0 %v4225
      %4279 = vmatprep.subr.bf16.mxu0 0
      %4280 = vmatpush1.bf16.msra.mxu0 %v4226
      %4281 = vmatprep.subr.bf16.mxu0 0
      %4282 = vmatpush1.bf16.msra.mxu0 %v4227
      %4283 = vmatprep.subr.bf16.mxu0 0
      %4284 = vmatpush1.bf16.msra.mxu0 %v4228
      %4285 = vmatprep.subr.bf16.mxu0 0
      %4286 = vmatpush1.bf16.msra.mxu0 %v4229
      %4287 = vmatprep.subr.bf16.mxu0 0
      %4288 = vmatpush1.bf16.msra.mxu0 %v4230
      %4289 = vmatprep.subr.bf16.mxu0 0
      %4290 = vmatpush1.bf16.msra.mxu0 %v4231
      %4291 = vmatprep.subr.bf16.mxu0 0
      %4292 = vmatpush1.bf16.msra.mxu0 %v4232
      %4293 = vmatprep.subr.bf16.mxu0 0
      %4294 = vmatpush1.bf16.msra.mxu0 %v4233
      %4295 = vmatprep.subr.bf16.mxu0 0
      %4296 = vmatpush1.bf16.msra.mxu0 %v4234
      %4297 = vmatprep.subr.bf16.mxu0 0
      %4298 = vmatpush1.bf16.msra.mxu0 %v4235
      %4299 = vmatprep.subr.bf16.mxu0 0
      %4300 = vmatpush1.bf16.msra.mxu0 %v4236
      %4301 = vmatprep.mubr.bf16.mxu0 %v4061
      %4302 = vmatmul.mubr.bf16.gmra.mrb[0].mxu0 0
      %v4303 = vpop.f32.mrb[0].mxu0
      %v4304 = vadd.f32 0.0, %v4303
      %v4305 = vpop.f32.mrb[0].mxu0
      %v4306 = vpop.f32.mrb[0].mxu0
      %v4307 = vadd.f32 0.0, %v4306
      %v4308 = vpop.f32.mrb[0].mxu0
      %4309 = vmatprep.mubr.bf16.mxu0 %v4062
      %4310 = vmatmul.mubr.bf16.gmra.mrb[0].mxu0 %v4061
      %v4311 = vpop.f32.mrb[0].mxu0
      %v4312 = vadd.f32 0.0, %v4311
      %v4313 = vpop.f32.mrb[0].mxu0
      %v4314 = vpop.f32.mrb[0].mxu0
      %v4315 = vadd.f32 0.0, %v4314
      %v4316 = vpop.f32.mrb[0].mxu0
      %4317 = vmatprep.mubr.bf16.mxu0 %v4063
      %4318 = vmatmul.mubr.bf16.gmra.mrb[0].mxu0 %v4062
      %v4319 = vpop.f32.mrb[0].mxu0
      %v4320 = vadd.f32 0.0, %v4319
      %v4321 = vpop.f32.mrb[0].mxu0
      %v4322 = vpop.f32.mrb[0].mxu0
      %v4323 = vadd.f32 0.0, %v4322
      %v4324 = vpop.f32.mrb[0].mxu0
      %4325 = vmatprep.mubr.bf16.mxu0 %v4064
      %4326 = vmatmul.mubr.bf16.gmra.mrb[0].mxu0 %v4063
      %v4327 = vpop.f32.mrb[0].mxu0
      %v4328 = vadd.f32 0.0, %v4327
      %v4329 = vpop.f32.mrb[0].mxu0
      %v4330 = vpop.f32.mrb[0].mxu0
      %v4331 = vadd.f32 0.0, %v4330
      %v4332 = vpop.f32.mrb[0].mxu0
      %4333 = vmatprep.mubr.bf16.mxu0 %v4065
      %4334 = vmatmul.mubr.bf16.gmra.mrb[0].mxu0 %v4064
      %v4335 = vpop.f32.mrb[0].mxu0
      %v4336 = vadd.f32 0.0, %v4335
      %v4337 = vpop.f32.mrb[0].mxu0
      %v4338 = vpop.f32.mrb[0].mxu0
      %v4339 = vadd.f32 0.0, %v4338
      %v4340 = vpop.f32.mrb[0].mxu0
      %4341 = vmatprep.mubr.bf16.mxu0 %v4066
      %4342 = vmatmul.mubr.bf16.gmra.mrb[0].mxu0 %v4065
      %v4343 = vpop.f32.mrb[0].mxu0
      %v4344 = vadd.f32 0.0, %v4343
      %v4345 = vpop.f32.mrb[0].mxu0
      %v4346 = vpop.f32.mrb[0].mxu0
      %v4347 = vadd.f32 0.0, %v4346
      %v4348 = vpop.f32.mrb[0].mxu0
      %4349 = vmatprep.mubr.bf16.mxu0 %v4067
      %4350 = vmatmul.mubr.bf16.gmra.mrb[0].mxu0 %v4066
      %v4351 = vpop.f32.mrb[0].mxu0
      %v4352 = vadd.f32 0.0, %v4351
      %v4353 = vpop.f32.mrb[0].mxu0
      %v4354 = vpop.f32.mrb[0].mxu0
      %v4355 = vadd.f32 0.0, %v4354
      %v4356 = vpop.f32.mrb[0].mxu0
      %4357 = vmatprep.mubr.bf16.mxu0 %v4068
      %4358 = vmatmul.mubr.bf16.gmra.mrb[0].mxu0 %v4067
      %v4359 = vpop.f32.mrb[0].mxu0
      %v4360 = vadd.f32 0.0, %v4359
      %v4361 = vpop.f32.mrb[0].mxu0
      %v4362 = vpop.f32.mrb[0].mxu0
      %v4363 = vadd.f32 0.0, %v4362
      %v4364 = vpop.f32.mrb[0].mxu0
      %4365 = vmatprep.mubr.bf16.mxu0 %v4069
      %4366 = vmatmul.mubr.bf16.gmra.mrb[0].mxu0 %v4068
      %v4367 = vpop.f32.mrb[0].mxu0
      %v4368 = vadd.f32 0.0, %v4367
      %v4369 = vpop.f32.mrb[0].mxu0
      %v4370 = vpop.f32.mrb[0].mxu0
      %v4371 = vadd.f32 0.0, %v4370
      %v4372 = vpop.f32.mrb[0].mxu0
      %4373 = vmatprep.mubr.bf16.mxu0 %v4070
      %4374 = vmatmul.mubr.bf16.gmra.mrb[0].mxu0 %v4069
      %v4375 = vpop.f32.mrb[0].mxu0
      %v4376 = vadd.f32 0.0, %v4375
      %v4377 = vpop.f32.mrb[0].mxu0
      %v4378 = vpop.f32.mrb[0].mxu0
      %v4379 = vadd.f32 0.0, %v4378
      %v4380 = vpop.f32.mrb[0].mxu0
      %4381 = vmatprep.mubr.bf16.mxu0 %v4071
      %4382 = vmatmul.mubr.bf16.gmra.mrb[0].mxu0 %v4070
      %v4383 = vpop.f32.mrb[0].mxu0
      %v4384 = vadd.f32 0.0, %v4383
      %v4385 = vpop.f32.mrb[0].mxu0
      %v4386 = vpop.f32.mrb[0].mxu0
      %v4387 = vadd.f32 0.0, %v4386
      %v4388 = vpop.f32.mrb[0].mxu0
      %4389 = vmatprep.mubr.bf16.mxu0 %v4072
      %4390 = vmatmul.mubr.bf16.gmra.mrb[0].mxu0 %v4071
      %v4391 = vpop.f32.mrb[0].mxu0
      %v4392 = vadd.f32 0.0, %v4391
      %v4393 = vpop.f32.mrb[0].mxu0
      %v4394 = vpop.f32.mrb[0].mxu0
      %v4395 = vadd.f32 0.0, %v4394
      %v4396 = vpop.f32.mrb[0].mxu0
      %4397 = vmatprep.mubr.bf16.mxu0 %v4073
      %4398 = vmatmul.mubr.bf16.gmra.mrb[0].mxu0 %v4072
      %v4399 = vpop.f32.mrb[0].mxu0
      %v4400 = vadd.f32 0.0, %v4399
      %v4401 = vpop.f32.mrb[0].mxu0
      %v4402 = vpop.f32.mrb[0].mxu0
      %v4403 = vadd.f32 0.0, %v4402
      %v4404 = vpop.f32.mrb[0].mxu0
      %4405 = vmatprep.mubr.bf16.mxu0 %v4074
      %4406 = vmatmul.mubr.bf16.gmra.mrb[0].mxu0 %v4073
      %v4407 = vpop.f32.mrb[0].mxu0
      %v4408 = vadd.f32 0.0, %v4407
      %v4409 = vpop.f32.mrb[0].mxu0
      %v4410 = vpop.f32.mrb[0].mxu0
      %v4411 = vadd.f32 0.0, %v4410
      %v4412 = vpop.f32.mrb[0].mxu0
      %4413 = vmatprep.mubr.bf16.mxu0 %v4075
      %4414 = vmatmul.mubr.bf16.gmra.mrb[0].mxu0 %v4074
      %v4415 = vpop.f32.mrb[0].mxu0
      %v4416 = vadd.f32 0.0, %v4415
      %v4417 = vpop.f32.mrb[0].mxu0
      %v4418 = vpop.f32.mrb[0].mxu0
      %v4419 = vadd.f32 0.0, %v4418
      %v4420 = vpop.f32.mrb[0].mxu0
      %4421 = vmatprep.mubr.bf16.mxu0 %v4076
      %4422 = vmatmul.mubr.bf16.gmra.mrb[0].mxu0 %v4075
      %v4423 = vpop.f32.mrb[0].mxu0
      %v4424 = vadd.f32 0.0, %v4423
      %v4425 = vpop.f32.mrb[0].mxu0
      %v4426 = vpop.f32.mrb[0].mxu0
      %v4427 = vadd.f32 0.0, %v4426
      %v4428 = vpop.f32.mrb[0].mxu0
      %4429 = vdwg.mxu0
      %4430 = vmatprep.subr.bf16.mxu0 0
      %4431 = vmatpush1.bf16.msra.mxu0 %v4237
      %4432 = vmatprep.subr.bf16.mxu0 0
      %4433 = vmatpush1.bf16.msra.mxu0 %v4238
      %4434 = vmatprep.subr.bf16.mxu0 0
      %4435 = vmatpush1.bf16.msra.mxu0 %v4239
      %4436 = vmatprep.subr.bf16.mxu0 0
      %4437 = vmatpush1.bf16.msra.mxu0 %v4240
      %4438 = vmatprep.subr.bf16.mxu0 0
      %4439 = vmatpush1.bf16.msra.mxu0 %v4241
      %4440 = vmatprep.subr.bf16.mxu0 0
      %4441 = vmatpush1.bf16.msra.mxu0 %v4242
      %4442 = vmatprep.subr.bf16.mxu0 0
      %4443 = vmatpush1.bf16.msra.mxu0 %v4243
      %4444 = vmatprep.subr.bf16.mxu0 0
      %4445 = vmatpush1.bf16.msra.mxu0 %v4244
      %4446 = vmatprep.subr.bf16.mxu0 0
      %4447 = vmatpush1.bf16.msra.mxu0 0
      %4448 = vmatprep.subr.bf16.mxu0 0
      %4449 = vmatpush1.bf16.msra.mxu0 0
      %4450 = vmatprep.subr.bf16.mxu0 0
      %4451 = vmatpush1.bf16.msra.mxu0 0
      %4452 = vmatprep.subr.bf16.mxu0 0
      %4453 = vmatpush1.bf16.msra.mxu0 0
      %4454 = vmatprep.subr.bf16.mxu0 0
      %4455 = vmatpush1.bf16.msra.mxu0 0
      %4456 = vmatprep.subr.bf16.mxu0 0
      %4457 = vmatpush1.bf16.msra.mxu0 0
      %4458 = vmatprep.subr.bf16.mxu0 0
      %4459 = vmatpush1.bf16.msra.mxu0 0
      %4460 = vmatprep.subr.bf16.mxu0 0
      %4461 = vmatpush1.bf16.msra.mxu0 0
      %4462 = vmatprep.mubr.bf16.mxu0 0
      %4463 = vmatmul.mubr.bf16.gmra.mrb[0].mxu0 %v4062
      %v4464 = vpop.f32.mrb[0].mxu0
      %v4465 = vadd.f32 %v4304, %v4464
      %v4466 = vpop.f32.mrb[0].mxu0
      %v4467 = vpop.f32.mrb[0].mxu0
      %v4468 = vadd.f32 %v4307, %v4467
      %v4469 = vpop.f32.mrb[0].mxu0
      %4470 = vmatprep.mubr.bf16.mxu0 0
      %4471 = vmatmul.mubr.bf16.gmra.mrb[0].mxu0 %v4063
      %v4472 = vpop.f32.mrb[0].mxu0
      %v4473 = vadd.f32 %v4312, %v4472
      %v4474 = vpop.f32.mrb[0].mxu0
      %v4475 = vpop.f32.mrb[0].mxu0
      %v4476 = vadd.f32 %v4315, %v4475
      %v4477 = vpop.f32.mrb[0].mxu0
      %4478 = vmatprep.mubr.bf16.mxu0 0
      %4479 = vmatmul.mubr.bf16.gmra.mrb[0].mxu0 %v4064
      %v4480 = vpop.f32.mrb[0].mxu0
      %v4481 = vadd.f32 %v4320, %v4480
      %v4482 = vpop.f32.mrb[0].mxu0
      %v4483 = vpop.f32.mrb[0].mxu0
      %v4484 = vadd.f32 %v4323, %v4483
      %v4485 = vpop.f32.mrb[0].mxu0
      %4486 = vmatprep.mubr.bf16.mxu0 0
      %4487 = vmatmul.mubr.bf16.gmra.mrb[0].mxu0 %v4065
      %v4488 = vpop.f32.mrb[0].mxu0
      %v4489 = vadd.f32 %v4328, %v4488
      %v4490 = vpop.f32.mrb[0].mxu0
      %v4491 = vpop.f32.mrb[0].mxu0
      %v4492 = vadd.f32 %v4331, %v4491
      %v4493 = vpop.f32.mrb[0].mxu0
      %4494 = vmatprep.mubr.bf16.mxu0 0
      %4495 = vmatmul.mubr.bf16.gmra.mrb[0].mxu0 %v4066
      %v4496 = vpop.f32.mrb[0].mxu0
      %v4497 = vadd.f32 %v4336, %v4496
      %v4498 = vpop.f32.mrb[0].mxu0
      %v4499 = vpop.f32.mrb[0].mxu0
      %v4500 = vadd.f32 %v4339, %v4499
      %v4501 = vpop.f32.mrb[0].mxu0
      %4502 = vmatprep.mubr.bf16.mxu0 0
      %4503 = vmatmul.mubr.bf16.gmra.mrb[0].mxu0 %v4067
      %v4504 = vpop.f32.mrb[0].mxu0
      %v4505 = vadd.f32 %v4344, %v4504
      %v4506 = vpop.f32.mrb[0].mxu0
      %v4507 = vpop.f32.mrb[0].mxu0
      %v4508 = vadd.f32 %v4347, %v4507
      %v4509 = vpop.f32.mrb[0].mxu0
      %4510 = vmatprep.mubr.bf16.mxu0 0
      %4511 = vmatmul.mubr.bf16.gmra.mrb[0].mxu0 %v4068
      %v4512 = vpop.f32.mrb[0].mxu0
      %v4513 = vadd.f32 %v4352, %v4512
      %v4514 = vpop.f32.mrb[0].mxu0
      %v4515 = vpop.f32.mrb[0].mxu0
      %v4516 = vadd.f32 %v4355, %v4515
      %v4517 = vpop.f32.mrb[0].mxu0
      %4518 = vmatprep.mubr.bf16.mxu0 0
      %4519 = vmatmul.mubr.bf16.gmra.mrb[0].mxu0 %v4069
      %v4520 = vpop.f32.mrb[0].mxu0
      %v4521 = vadd.f32 %v4360, %v4520
      %v4522 = vpop.f32.mrb[0].mxu0
      %v4523 = vpop.f32.mrb[0].mxu0
      %v4524 = vadd.f32 %v4363, %v4523
      %v4525 = vpop.f32.mrb[0].mxu0
      %4526 = vmatprep.mubr.bf16.mxu0 0
      %4527 = vmatmul.mubr.bf16.gmra.mrb[0].mxu0 %v4070
      %v4528 = vpop.f32.mrb[0].mxu0
      %v4529 = vadd.f32 %v4368, %v4528
      %v4530 = vpop.f32.mrb[0].mxu0
      %v4531 = vpop.f32.mrb[0].mxu0
      %v4532 = vadd.f32 %v4371, %v4531
      %v4533 = vpop.f32.mrb[0].mxu0
      %4534 = vmatprep.mubr.bf16.mxu0 0
      %4535 = vmatmul.mubr.bf16.gmra.mrb[0].mxu0 %v4071
      %v4536 = vpop.f32.mrb[0].mxu0
      %v4537 = vadd.f32 %v4376, %v4536
      %v4538 = vpop.f32.mrb[0].mxu0
      %v4539 = vpop.f32.mrb[0].mxu0
      %v4540 = vadd.f32 %v4379, %v4539
      %v4541 = vpop.f32.mrb[0].mxu0
      %4542 = vmatprep.mubr.bf16.mxu0 0
      %4543 = vmatmul.mubr.bf16.gmra.mrb[0].mxu0 %v4072
      %v4544 = vpop.f32.mrb[0].mxu0
      %v4545 = vadd.f32 %v4384, %v4544
      %v4546 = vpop.f32.mrb[0].mxu0
      %v4547 = vpop.f32.mrb[0].mxu0
      %v4548 = vadd.f32 %v4387, %v4547
      %v4549 = vpop.f32.mrb[0].mxu0
      %4550 = vmatprep.mubr.bf16.mxu0 0
      %4551 = vmatmul.mubr.bf16.gmra.mrb[0].mxu0 %v4073
      %v4552 = vpop.f32.mrb[0].mxu0
      %v4553 = vadd.f32 %v4392, %v4552
      %v4554 = vpop.f32.mrb[0].mxu0
      %v4555 = vpop.f32.mrb[0].mxu0
      %v4556 = vadd.f32 %v4395, %v4555
      %v4557 = vpop.f32.mrb[0].mxu0
      %4558 = vmatprep.mubr.bf16.mxu0 0
      %4559 = vmatmul.mubr.bf16.gmra.mrb[0].mxu0 %v4074
      %v4560 = vpop.f32.mrb[0].mxu0
      %v4561 = vadd.f32 %v4400, %v4560
      %v4562 = vpop.f32.mrb[0].mxu0
      %v4563 = vpop.f32.mrb[0].mxu0
      %v4564 = vadd.f32 %v4403, %v4563
      %v4565 = vpop.f32.mrb[0].mxu0
      %4566 = vmatprep.mubr.bf16.mxu0 0
      %4567 = vmatmul.mubr.bf16.gmra.mrb[0].mxu0 %v4075
      %v4568 = vpop.f32.mrb[0].mxu0
      %v4569 = vadd.f32 %v4408, %v4568
      %v4570 = vpop.f32.mrb[0].mxu0
      %v4571 = vpop.f32.mrb[0].mxu0
      %v4572 = vadd.f32 %v4411, %v4571
      %v4573 = vpop.f32.mrb[0].mxu0
      %4574 = vmatprep.mubr.bf16.mxu0 0
      %4575 = vmatmul.mubr.bf16.gmra.mrb[0].mxu0 %v4076
      %v4576 = vpop.f32.mrb[0].mxu0
      %v4577 = vadd.f32 %v4416, %v4576
      %v4578 = vpop.f32.mrb[0].mxu0
      %v4579 = vpop.f32.mrb[0].mxu0
      %v4580 = vadd.f32 %v4419, %v4579
      %v4581 = vpop.f32.mrb[0].mxu0
      %4582 = vmatprep.mubr.bf16.mxu0 0
      %4583 = vmatmul.mubr.bf16.gmra.mrb[0].mxu0 0
      %v4584 = vpop.f32.mrb[0].mxu0
      %v4585 = vadd.f32 %v4424, %v4584
      %v4586 = vpop.f32.mrb[0].mxu0
      %v4587 = vpop.f32.mrb[0].mxu0
      %v4588 = vadd.f32 %v4427, %v4587
      %v4589 = vpop.f32.mrb[0].mxu0
      %4590 = vdwg.mxu0
      %v4623 = vrot.slane %v4465, 7
      %v4624 = vrot.slane %v4468, 7
      %v4625 = vsel %vm316, %v4623, %v4624
      %v4626 = vrot.slane %v4473, 7
      %v4627 = vrot.slane %v4476, 7
      %v4628 = vsel %vm316, %v4626, %v4627
      %v4629 = vrot.slane %v4481, 7
      %v4630 = vrot.slane %v4484, 7
      %v4631 = vsel %vm316, %v4629, %v4630
      %v4632 = vrot.slane %v4489, 7
      %v4633 = vrot.slane %v4492, 7
      %v4634 = vsel %vm316, %v4632, %v4633
      %v4635 = vrot.slane %v4497, 7
      %v4636 = vrot.slane %v4500, 7
      %v4637 = vsel %vm316, %v4635, %v4636
      %v4638 = vrot.slane %v4505, 7
      %v4639 = vrot.slane %v4508, 7
      %v4640 = vsel %vm316, %v4638, %v4639
      %v4641 = vrot.slane %v4513, 7
      %v4642 = vrot.slane %v4516, 7
      %v4643 = vsel %vm316, %v4641, %v4642
      %v4644 = vrot.slane %v4521, 7
      %v4645 = vrot.slane %v4524, 7
      %v4646 = vsel %vm316, %v4644, %v4645
      %v4647 = vrot.slane %v4529, 7
      %v4648 = vrot.slane %v4532, 7
      %v4649 = vsel %vm316, %v4647, %v4648
      %v4650 = vrot.slane %v4537, 7
      %v4651 = vrot.slane %v4540, 7
      %v4652 = vsel %vm316, %v4650, %v4651
      %v4653 = vrot.slane %v4545, 7
      %v4654 = vrot.slane %v4548, 7
      %v4655 = vsel %vm316, %v4653, %v4654
      %v4656 = vrot.slane %v4553, 7
      %v4657 = vrot.slane %v4556, 7
      %v4658 = vsel %vm316, %v4656, %v4657
      %v4659 = vrot.slane %v4561, 7
      %v4660 = vrot.slane %v4564, 7
      %v4661 = vsel %vm316, %v4659, %v4660
      %v4662 = vrot.slane %v4569, 7
      %v4663 = vrot.slane %v4572, 7
      %v4664 = vsel %vm316, %v4662, %v4663
      %v4665 = vrot.slane %v4577, 7
      %v4666 = vrot.slane %v4580, 7
      %v4667 = vsel %vm316, %v4665, %v4666
      %v4668 = vrot.slane %v4585, 7
      %v4669 = vrot.slane %v4588, 7
      %v4670 = vsel %vm316, %v4668, %v4669
      %v4687 = vsel %vm316, 0.0, %v4623
      %v4688 = vsel %vm316, 0.0, %v4626
      %v4689 = vsel %vm316, 0.0, %v4629
      %v4690 = vsel %vm316, 0.0, %v4632
      %v4691 = vsel %vm316, 0.0, %v4635
      %v4692 = vsel %vm316, 0.0, %v4638
      %v4693 = vsel %vm316, 0.0, %v4641
      %v4694 = vsel %vm316, 0.0, %v4644
      %v4695 = vsel %vm316, 0.0, %v4647
      %v4696 = vsel %vm316, 0.0, %v4650
      %v4697 = vsel %vm316, 0.0, %v4653
      %v4698 = vsel %vm316, 0.0, %v4656
      %v4699 = vsel %vm316, 0.0, %v4659
      %v4700 = vsel %vm316, 0.0, %v4662
      %v4701 = vsel %vm316, 0.0, %v4665
      %v4702 = vsel %vm316, 0.0, %v4668
      %4719 = vrot.lane.b32.xlu0 %v4687, 4
      %v4720 = vpop.permute.xlu0 %4719
      %4721 = vrot.lane.b32.xlu0 %v4625, 4
      %v4722 = vpop.permute.xlu0 %4721
      %4723 = vrot.lane.b32.xlu0 %v4688, 4
      %v4724 = vpop.permute.xlu0 %4723
      %4725 = vrot.lane.b32.xlu0 %v4628, 4
      %v4726 = vpop.permute.xlu0 %4725
      %4727 = vrot.lane.b32.xlu0 %v4689, 4
      %v4728 = vpop.permute.xlu0 %4727
      %4729 = vrot.lane.b32.xlu0 %v4631, 4
      %v4730 = vpop.permute.xlu0 %4729
      %4731 = vrot.lane.b32.xlu0 %v4690, 4
      %v4732 = vpop.permute.xlu0 %4731
      %4733 = vrot.lane.b32.xlu0 %v4634, 4
      %v4734 = vpop.permute.xlu0 %4733
      %4735 = vrot.lane.b32.xlu0 %v4691, 4
      %v4736 = vpop.permute.xlu0 %4735
      %4737 = vrot.lane.b32.xlu0 %v4637, 4
      %v4738 = vpop.permute.xlu0 %4737
      %4739 = vrot.lane.b32.xlu0 %v4692, 4
      %v4740 = vpop.permute.xlu0 %4739
      %4741 = vrot.lane.b32.xlu0 %v4640, 4
      %v4742 = vpop.permute.xlu0 %4741
      %4743 = vrot.lane.b32.xlu0 %v4693, 4
      %v4744 = vpop.permute.xlu0 %4743
      %4745 = vrot.lane.b32.xlu0 %v4643, 4
      %v4746 = vpop.permute.xlu0 %4745
      %4747 = vrot.lane.b32.xlu0 %v4694, 4
      %v4748 = vpop.permute.xlu0 %4747
      %4749 = vrot.lane.b32.xlu0 %v4646, 4
      %v4750 = vpop.permute.xlu0 %4749
      %4751 = vrot.lane.b32.xlu0 %v4695, 4
      %v4752 = vpop.permute.xlu0 %4751
      %4753 = vrot.lane.b32.xlu0 %v4649, 4
      %v4754 = vpop.permute.xlu0 %4753
      %4755 = vrot.lane.b32.xlu0 %v4696, 4
      %v4756 = vpop.permute.xlu0 %4755
      %4757 = vrot.lane.b32.xlu0 %v4652, 4
      %v4758 = vpop.permute.xlu0 %4757
      %4759 = vrot.lane.b32.xlu0 %v4697, 4
      %v4760 = vpop.permute.xlu0 %4759
      %4761 = vrot.lane.b32.xlu0 %v4655, 4
      %v4762 = vpop.permute.xlu0 %4761
      %4763 = vrot.lane.b32.xlu0 %v4698, 4
      %v4764 = vpop.permute.xlu0 %4763
      %4765 = vrot.lane.b32.xlu0 %v4658, 4
      %v4766 = vpop.permute.xlu0 %4765
      %4767 = vrot.lane.b32.xlu0 %v4699, 4
      %v4768 = vpop.permute.xlu0 %4767
      %4769 = vrot.lane.b32.xlu0 %v4661, 4
      %v4770 = vpop.permute.xlu0 %4769
      %4771 = vrot.lane.b32.xlu0 %v4700, 4
      %v4772 = vpop.permute.xlu0 %4771
      %4773 = vrot.lane.b32.xlu0 %v4664, 4
      %v4774 = vpop.permute.xlu0 %4773
      %4775 = vrot.lane.b32.xlu0 %v4701, 4
      %v4776 = vpop.permute.xlu0 %4775
      %4777 = vrot.lane.b32.xlu0 %v4667, 4
      %v4778 = vpop.permute.xlu0 %4777
      %4779 = vrot.lane.b32.xlu0 %v4702, 4
      %v4780 = vpop.permute.xlu0 %4779
      %4781 = vrot.lane.b32.xlu0 %v4670, 4
      %v4782 = vpop.permute.xlu0 %4781
      %v4815 = vadd.f32 %v4465, %v4720
      %v4816 = vadd.f32 %v4468, %v4722
      %v4817 = vadd.f32 %v4473, %v4724
      %v4818 = vadd.f32 %v4476, %v4726
      %v4819 = vadd.f32 %v4481, %v4728
      %v4820 = vadd.f32 %v4484, %v4730
      %v4821 = vadd.f32 %v4489, %v4732
      %v4822 = vadd.f32 %v4492, %v4734
      %v4823 = vadd.f32 %v4497, %v4736
      %v4824 = vadd.f32 %v4500, %v4738
      %v4825 = vadd.f32 %v4505, %v4740
      %v4826 = vadd.f32 %v4508, %v4742
      %v4827 = vadd.f32 %v4513, %v4744
      %v4828 = vadd.f32 %v4516, %v4746
      %v4829 = vadd.f32 %v4521, %v4748
      %v4830 = vadd.f32 %v4524, %v4750
      %v4831 = vadd.f32 %v4529, %v4752
      %v4832 = vadd.f32 %v4532, %v4754
      %v4833 = vadd.f32 %v4537, %v4756
      %v4834 = vadd.f32 %v4540, %v4758
      %v4835 = vadd.f32 %v4545, %v4760
      %v4836 = vadd.f32 %v4548, %v4762
      %v4837 = vadd.f32 %v4553, %v4764
      %v4838 = vadd.f32 %v4556, %v4766
      %v4839 = vadd.f32 %v4561, %v4768
      %v4840 = vadd.f32 %v4564, %v4770
      %v4841 = vadd.f32 %v4569, %v4772
      %v4842 = vadd.f32 %v4572, %v4774
      %v4843 = vadd.f32 %v4577, %v4776
      %v4844 = vadd.f32 %v4580, %v4778
      %v4845 = vadd.f32 %v4585, %v4780
      %v4846 = vadd.f32 %v4588, %v4782
      %v4847 = vrot.slane %v4465, 1
      %v4848 = vrot.slane %v4468, 1
      %v4849 = vsel %vm412, %v4847, %v4848
      %v4850 = vrot.slane %v4473, 1
      %v4851 = vrot.slane %v4476, 1
      %v4852 = vsel %vm412, %v4850, %v4851
      %v4853 = vrot.slane %v4481, 1
      %v4854 = vrot.slane %v4484, 1
      %v4855 = vsel %vm412, %v4853, %v4854
      %v4856 = vrot.slane %v4489, 1
      %v4857 = vrot.slane %v4492, 1
      %v4858 = vsel %vm412, %v4856, %v4857
      %v4859 = vrot.slane %v4497, 1
      %v4860 = vrot.slane %v4500, 1
      %v4861 = vsel %vm412, %v4859, %v4860
      %v4862 = vrot.slane %v4505, 1
      %v4863 = vrot.slane %v4508, 1
      %v4864 = vsel %vm412, %v4862, %v4863
      %v4865 = vrot.slane %v4513, 1
      %v4866 = vrot.slane %v4516, 1
      %v4867 = vsel %vm412, %v4865, %v4866
      %v4868 = vrot.slane %v4521, 1
      %v4869 = vrot.slane %v4524, 1
      %v4870 = vsel %vm412, %v4868, %v4869
      %v4871 = vrot.slane %v4529, 1
      %v4872 = vrot.slane %v4532, 1
      %v4873 = vsel %vm412, %v4871, %v4872
      %v4874 = vrot.slane %v4537, 1
      %v4875 = vrot.slane %v4540, 1
      %v4876 = vsel %vm412, %v4874, %v4875
      %v4877 = vrot.slane %v4545, 1
      %v4878 = vrot.slane %v4548, 1
      %v4879 = vsel %vm412, %v4877, %v4878
      %v4880 = vrot.slane %v4553, 1
      %v4881 = vrot.slane %v4556, 1
      %v4882 = vsel %vm412, %v4880, %v4881
      %v4883 = vrot.slane %v4561, 1
      %v4884 = vrot.slane %v4564, 1
      %v4885 = vsel %vm412, %v4883, %v4884
      %v4886 = vrot.slane %v4569, 1
      %v4887 = vrot.slane %v4572, 1
      %v4888 = vsel %vm412, %v4886, %v4887
      %v4889 = vrot.slane %v4577, 1
      %v4890 = vrot.slane %v4580, 1
      %v4891 = vsel %vm412, %v4889, %v4890
      %v4892 = vrot.slane %v4585, 1
      %v4893 = vrot.slane %v4588, 1
      %v4894 = vsel %vm412, %v4892, %v4893
      %v4911 = vsel %vm412, %v4848, 0.0
      %v4912 = vsel %vm412, %v4851, 0.0
      %v4913 = vsel %vm412, %v4854, 0.0
      %v4914 = vsel %vm412, %v4857, 0.0
      %v4915 = vsel %vm412, %v4860, 0.0
      %v4916 = vsel %vm412, %v4863, 0.0
      %v4917 = vsel %vm412, %v4866, 0.0
      %v4918 = vsel %vm412, %v4869, 0.0
      %v4919 = vsel %vm412, %v4872, 0.0
      %v4920 = vsel %vm412, %v4875, 0.0
      %v4921 = vsel %vm412, %v4878, 0.0
      %v4922 = vsel %vm412, %v4881, 0.0
      %v4923 = vsel %vm412, %v4884, 0.0
      %v4924 = vsel %vm412, %v4887, 0.0
      %v4925 = vsel %vm412, %v4890, 0.0
      %v4926 = vsel %vm412, %v4893, 0.0
      %4943 = vrot.lane.b32.xlu0 %v4849, 124
      %v4944 = vpop.permute.xlu0 %4943
      %4945 = vrot.lane.b32.xlu0 %v4911, 124
      %v4946 = vpop.permute.xlu0 %4945
      %4947 = vrot.lane.b32.xlu0 %v4852, 124
      %v4948 = vpop.permute.xlu0 %4947
      %4949 = vrot.lane.b32.xlu0 %v4912, 124
      %v4950 = vpop.permute.xlu0 %4949
      %4951 = vrot.lane.b32.xlu0 %v4855, 124
      %v4952 = vpop.permute.xlu0 %4951
      %4953 = vrot.lane.b32.xlu0 %v4913, 124
      %v4954 = vpop.permute.xlu0 %4953
      %4955 = vrot.lane.b32.xlu0 %v4858, 124
      %v4956 = vpop.permute.xlu0 %4955
      %4957 = vrot.lane.b32.xlu0 %v4914, 124
      %v4958 = vpop.permute.xlu0 %4957
      %4959 = vrot.lane.b32.xlu0 %v4861, 124
      %v4960 = vpop.permute.xlu0 %4959
      %4961 = vrot.lane.b32.xlu0 %v4915, 124
      %v4962 = vpop.permute.xlu0 %4961
      %4963 = vrot.lane.b32.xlu0 %v4864, 124
      %v4964 = vpop.permute.xlu0 %4963
      %4965 = vrot.lane.b32.xlu0 %v4916, 124
      %v4966 = vpop.permute.xlu0 %4965
      %4967 = vrot.lane.b32.xlu0 %v4867, 124
      %v4968 = vpop.permute.xlu0 %4967
      %4969 = vrot.lane.b32.xlu0 %v4917, 124
      %v4970 = vpop.permute.xlu0 %4969
      %4971 = vrot.lane.b32.xlu0 %v4870, 124
      %v4972 = vpop.permute.xlu0 %4971
      %4973 = vrot.lane.b32.xlu0 %v4918, 124
      %v4974 = vpop.permute.xlu0 %4973
      %4975 = vrot.lane.b32.xlu0 %v4873, 124
      %v4976 = vpop.permute.xlu0 %4975
      %4977 = vrot.lane.b32.xlu0 %v4919, 124
      %v4978 = vpop.permute.xlu0 %4977
      %4979 = vrot.lane.b32.xlu0 %v4876, 124
      %v4980 = vpop.permute.xlu0 %4979
      %4981 = vrot.lane.b32.xlu0 %v4920, 124
      %v4982 = vpop.permute.xlu0 %4981
      %4983 = vrot.lane.b32.xlu0 %v4879, 124
      %v4984 = vpop.permute.xlu0 %4983
      %4985 = vrot.lane.b32.xlu0 %v4921, 124
      %v4986 = vpop.permute.xlu0 %4985
      %4987 = vrot.lane.b32.xlu0 %v4882, 124
      %v4988 = vpop.permute.xlu0 %4987
      %4989 = vrot.lane.b32.xlu0 %v4922, 124
      %v4990 = vpop.permute.xlu0 %4989
      %4991 = vrot.lane.b32.xlu0 %v4885, 124
      %v4992 = vpop.permute.xlu0 %4991
      %4993 = vrot.lane.b32.xlu0 %v4923, 124
      %v4994 = vpop.permute.xlu0 %4993
      %4995 = vrot.lane.b32.xlu0 %v4888, 124
      %v4996 = vpop.permute.xlu0 %4995
      %4997 = vrot.lane.b32.xlu0 %v4924, 124
      %v4998 = vpop.permute.xlu0 %4997
      %4999 = vrot.lane.b32.xlu0 %v4891, 124
      %v5000 = vpop.permute.xlu0 %4999
      %5001 = vrot.lane.b32.xlu0 %v4925, 124
      %v5002 = vpop.permute.xlu0 %5001
      %5003 = vrot.lane.b32.xlu0 %v4894, 124
      %v5004 = vpop.permute.xlu0 %5003
      %5005 = vrot.lane.b32.xlu0 %v4926, 124
      %v5006 = vpop.permute.xlu0 %5005
      %v5039 = vadd.f32 %v4815, %v4944
      %v5040 = vadd.f32 %v4816, %v4946
      %v5041 = vadd.f32 %v4817, %v4948
      %v5042 = vadd.f32 %v4818, %v4950
      %v5043 = vadd.f32 %v4819, %v4952
      %v5044 = vadd.f32 %v4820, %v4954
      %v5045 = vadd.f32 %v4821, %v4956
      %v5046 = vadd.f32 %v4822, %v4958
      %v5047 = vadd.f32 %v4823, %v4960
      %v5048 = vadd.f32 %v4824, %v4962
      %v5049 = vadd.f32 %v4825, %v4964
      %v5050 = vadd.f32 %v4826, %v4966
      %v5051 = vadd.f32 %v4827, %v4968
      %v5052 = vadd.f32 %v4828, %v4970
      %v5053 = vadd.f32 %v4829, %v4972
      %v5054 = vadd.f32 %v4830, %v4974
      %v5055 = vadd.f32 %v4831, %v4976
      %v5056 = vadd.f32 %v4832, %v4978
      %v5057 = vadd.f32 %v4833, %v4980
      %v5058 = vadd.f32 %v4834, %v4982
      %v5059 = vadd.f32 %v4835, %v4984
      %v5060 = vadd.f32 %v4836, %v4986
      %v5061 = vadd.f32 %v4837, %v4988
      %v5062 = vadd.f32 %v4838, %v4990
      %v5063 = vadd.f32 %v4839, %v4992
      %v5064 = vadd.f32 %v4840, %v4994
      %v5065 = vadd.f32 %v4841, %v4996
      %v5066 = vadd.f32 %v4842, %v4998
      %v5067 = vadd.f32 %v4843, %v5000
      %v5068 = vadd.f32 %v4844, %v5002
      %v5069 = vadd.f32 %v4845, %v5004
      %v5070 = vadd.f32 %v4846, %v5006
      %v5071 = vld [vmem:[%s5] sm:$0x1]
      %v5072 = vlaneseq
      %v5073 = vshrl.u32 %v5072, 7
      %v5074 = vsub.s32 0, %v5073
      %v5075 = vrot.slane %v5071, %v5074
      %5077 = vrot.lane.b32.xlu0 %v5075, 4
      %v5078 = vpop.permute.xlu0 %5077
      %v5080 = vmul.f32 %v5039, %v5078
      %v5081 = vmul.f32 %v5040, %v5078
      %v5082 = vmul.f32 %v5041, %v5078
      %v5083 = vmul.f32 %v5042, %v5078
      %v5084 = vmul.f32 %v5043, %v5078
      %v5085 = vmul.f32 %v5044, %v5078
      %v5086 = vmul.f32 %v5045, %v5078
      %v5087 = vmul.f32 %v5046, %v5078
      %v5088 = vmul.f32 %v5047, %v5078
      %v5089 = vmul.f32 %v5048, %v5078
      %v5090 = vmul.f32 %v5049, %v5078
      %v5091 = vmul.f32 %v5050, %v5078
      %v5092 = vmul.f32 %v5051, %v5078
      %v5093 = vmul.f32 %v5052, %v5078
      %v5094 = vmul.f32 %v5053, %v5078
      %v5095 = vmul.f32 %v5054, %v5078
      %v5096 = vmul.f32 %v5055, %v5078
      %v5097 = vmul.f32 %v5056, %v5078
      %v5098 = vmul.f32 %v5057, %v5078
      %v5099 = vmul.f32 %v5058, %v5078
      %v5100 = vmul.f32 %v5059, %v5078
      %v5101 = vmul.f32 %v5060, %v5078
      %v5102 = vmul.f32 %v5061, %v5078
      %v5103 = vmul.f32 %v5062, %v5078
      %v5104 = vmul.f32 %v5063, %v5078
      %v5105 = vmul.f32 %v5064, %v5078
      %v5106 = vmul.f32 %v5065, %v5078
      %v5107 = vmul.f32 %v5066, %v5078
      %v5108 = vmul.f32 %v5067, %v5078
      %v5109 = vmul.f32 %v5068, %v5078
      %v5110 = vmul.f32 %v5069, %v5078
      %v5111 = vmul.f32 %v5070, %v5078
      %v5112 = vld [vmem:[%s5 + $0x1] sm:$0x1]
      %v5113 = vlaneseq
      %v5114 = vshrl.u32 %v5113, 7
      %v5115 = vsub.s32 0, %v5114
      %v5116 = vrot.slane %v5112, %v5115
      %5118 = vrot.lane.b32.xlu0 %v5116, 4
      %v5119 = vpop.permute.xlu0 %5118
      %v5121 = vadd.f32 %v5080, %v5119
      %v5122 = vadd.f32 %v5081, %v5119
      %v5123 = vadd.f32 %v5082, %v5119
      %v5124 = vadd.f32 %v5083, %v5119
      %v5125 = vadd.f32 %v5084, %v5119
      %v5126 = vadd.f32 %v5085, %v5119
      %v5127 = vadd.f32 %v5086, %v5119
      %v5128 = vadd.f32 %v5087, %v5119
      %v5129 = vadd.f32 %v5088, %v5119
      %v5130 = vadd.f32 %v5089, %v5119
      %v5131 = vadd.f32 %v5090, %v5119
      %v5132 = vadd.f32 %v5091, %v5119
      %v5133 = vadd.f32 %v5092, %v5119
      %v5134 = vadd.f32 %v5093, %v5119
      %v5135 = vadd.f32 %v5094, %v5119
      %v5136 = vadd.f32 %v5095, %v5119
      %v5137 = vadd.f32 %v5096, %v5119
      %v5138 = vadd.f32 %v5097, %v5119
      %v5139 = vadd.f32 %v5098, %v5119
      %v5140 = vadd.f32 %v5099, %v5119
      %v5141 = vadd.f32 %v5100, %v5119
      %v5142 = vadd.f32 %v5101, %v5119
      %v5143 = vadd.f32 %v5102, %v5119
      %v5144 = vadd.f32 %v5103, %v5119
      %v5145 = vadd.f32 %v5104, %v5119
      %v5146 = vadd.f32 %v5105, %v5119
      %v5147 = vadd.f32 %v5106, %v5119
      %v5148 = vadd.f32 %v5107, %v5119
      %v5149 = vadd.f32 %v5108, %v5119
      %v5150 = vadd.f32 %v5109, %v5119
      %v5151 = vadd.f32 %v5110, %v5119
      %v5152 = vadd.f32 %v5111, %v5119
      %5185 = vrot.lane.b32.xlu0 %v2491, 4
      %v5186 = vpop.permute.xlu0 %5185
      %5187 = vrot.lane.b32.xlu0 %v2496, 4
      %v5188 = vpop.permute.xlu0 %5187
      %5189 = vrot.lane.b32.xlu0 %v2501, 4
      %v5190 = vpop.permute.xlu0 %5189
      %5191 = vrot.lane.b32.xlu0 %v2506, 4
      %v5192 = vpop.permute.xlu0 %5191
      %5193 = vrot.lane.b32.xlu0 %v2511, 4
      %v5194 = vpop.permute.xlu0 %5193
      %5195 = vrot.lane.b32.xlu0 %v2516, 4
      %v5196 = vpop.permute.xlu0 %5195
      %5197 = vrot.lane.b32.xlu0 %v2521, 4
      %v5198 = vpop.permute.xlu0 %5197
      %5199 = vrot.lane.b32.xlu0 %v2526, 4
      %v5200 = vpop.permute.xlu0 %5199
      %5201 = vrot.lane.b32.xlu0 %v2531, 4
      %v5202 = vpop.permute.xlu0 %5201
      %5203 = vrot.lane.b32.xlu0 %v2536, 4
      %v5204 = vpop.permute.xlu0 %5203
      %5205 = vrot.lane.b32.xlu0 %v2541, 4
      %v5206 = vpop.permute.xlu0 %5205
      %5207 = vrot.lane.b32.xlu0 %v2546, 4
      %v5208 = vpop.permute.xlu0 %5207
      %5209 = vrot.lane.b32.xlu0 %v2551, 4
      %v5210 = vpop.permute.xlu0 %5209
      %5211 = vrot.lane.b32.xlu0 %v2556, 4
      %v5212 = vpop.permute.xlu0 %5211
      %5213 = vrot.lane.b32.xlu0 %v2561, 4
      %v5214 = vpop.permute.xlu0 %5213
      %5215 = vrot.lane.b32.xlu0 %v2566, 4
      %v5216 = vpop.permute.xlu0 %5215
      %5217 = vrot.lane.b32.xlu0 %v2571, 4
      %v5218 = vpop.permute.xlu0 %5217
      %5219 = vrot.lane.b32.xlu0 %v2576, 4
      %v5220 = vpop.permute.xlu0 %5219
      %5221 = vrot.lane.b32.xlu0 %v2581, 4
      %v5222 = vpop.permute.xlu0 %5221
      %5223 = vrot.lane.b32.xlu0 %v2586, 4
      %v5224 = vpop.permute.xlu0 %5223
      %5225 = vrot.lane.b32.xlu0 %v2591, 4
      %v5226 = vpop.permute.xlu0 %5225
      %5227 = vrot.lane.b32.xlu0 %v2596, 4
      %v5228 = vpop.permute.xlu0 %5227
      %5229 = vrot.lane.b32.xlu0 %v2601, 4
      %v5230 = vpop.permute.xlu0 %5229
      %5231 = vrot.lane.b32.xlu0 %v2606, 4
      %v5232 = vpop.permute.xlu0 %5231
      %5233 = vrot.lane.b32.xlu0 %v2611, 4
      %v5234 = vpop.permute.xlu0 %5233
      %5235 = vrot.lane.b32.xlu0 %v2616, 4
      %v5236 = vpop.permute.xlu0 %5235
      %5237 = vrot.lane.b32.xlu0 %v2621, 4
      %v5238 = vpop.permute.xlu0 %5237
      %5239 = vrot.lane.b32.xlu0 %v2626, 4
      %v5240 = vpop.permute.xlu0 %5239
      %5241 = vrot.lane.b32.xlu0 %v2631, 4
      %v5242 = vpop.permute.xlu0 %5241
      %5243 = vrot.lane.b32.xlu0 %v2636, 4
      %v5244 = vpop.permute.xlu0 %5243
      %5245 = vrot.lane.b32.xlu0 %v2641, 4
      %v5246 = vpop.permute.xlu0 %5245
      %5247 = vrot.lane.b32.xlu0 %v2646, 4
      %v5248 = vpop.permute.xlu0 %5247
      %v5281 = vadd.f32 %v5121, %v5186
      %v5282 = vadd.f32 %v5122, %v5188
      %v5283 = vadd.f32 %v5123, %v5190
      %v5284 = vadd.f32 %v5124, %v5192
      %v5285 = vadd.f32 %v5125, %v5194
      %v5286 = vadd.f32 %v5126, %v5196
      %v5287 = vadd.f32 %v5127, %v5198
      %v5288 = vadd.f32 %v5128, %v5200
      %v5289 = vadd.f32 %v5129, %v5202
      %v5290 = vadd.f32 %v5130, %v5204
      %v5291 = vadd.f32 %v5131, %v5206
      %v5292 = vadd.f32 %v5132, %v5208
      %v5293 = vadd.f32 %v5133, %v5210
      %v5294 = vadd.f32 %v5134, %v5212
      %v5295 = vadd.f32 %v5135, %v5214
      %v5296 = vadd.f32 %v5136, %v5216
      %v5297 = vadd.f32 %v5137, %v5218
      %v5298 = vadd.f32 %v5138, %v5220
      %v5299 = vadd.f32 %v5139, %v5222
      %v5300 = vadd.f32 %v5140, %v5224
      %v5301 = vadd.f32 %v5141, %v5226
      %v5302 = vadd.f32 %v5142, %v5228
      %v5303 = vadd.f32 %v5143, %v5230
      %v5304 = vadd.f32 %v5144, %v5232
      %v5305 = vadd.f32 %v5145, %v5234
      %v5306 = vadd.f32 %v5146, %v5236
      %v5307 = vadd.f32 %v5147, %v5238
      %v5308 = vadd.f32 %v5148, %v5240
      %v5309 = vadd.f32 %v5149, %v5242
      %v5310 = vadd.f32 %v5150, %v5244
      %v5311 = vadd.f32 %v5151, %v5246
      %v5312 = vadd.f32 %v5152, %v5248
      %v5313 = vmax.f32 %v5281, 0.0
      %v5314 = vmax.f32 %v5282, 0.0
      %v5315 = vmax.f32 %v5283, 0.0
      %v5316 = vmax.f32 %v5284, 0.0
      %v5317 = vmax.f32 %v5285, 0.0
      %v5318 = vmax.f32 %v5286, 0.0
      %v5319 = vmax.f32 %v5287, 0.0
      %v5320 = vmax.f32 %v5288, 0.0
      %v5321 = vmax.f32 %v5289, 0.0
      %v5322 = vmax.f32 %v5290, 0.0
      %v5323 = vmax.f32 %v5291, 0.0
      %v5324 = vmax.f32 %v5292, 0.0
      %v5325 = vmax.f32 %v5293, 0.0
      %v5326 = vmax.f32 %v5294, 0.0
      %v5327 = vmax.f32 %v5295, 0.0
      %v5328 = vmax.f32 %v5296, 0.0
      %v5329 = vmax.f32 %v5297, 0.0
      %v5330 = vmax.f32 %v5298, 0.0
      %v5331 = vmax.f32 %v5299, 0.0
      %v5332 = vmax.f32 %v5300, 0.0
      %v5333 = vmax.f32 %v5301, 0.0
      %v5334 = vmax.f32 %v5302, 0.0
      %v5335 = vmax.f32 %v5303, 0.0
      %v5336 = vmax.f32 %v5304, 0.0
      %v5337 = vmax.f32 %v5305, 0.0
      %v5338 = vmax.f32 %v5306, 0.0
      %v5339 = vmax.f32 %v5307, 0.0
      %v5340 = vmax.f32 %v5308, 0.0
      %v5341 = vmax.f32 %v5309, 0.0
      %v5342 = vmax.f32 %v5310, 0.0
      %v5343 = vmax.f32 %v5311, 0.0
      %v5344 = vmax.f32 %v5312, 0.0
      %5375 = vrot.lane.b32.xlu0 %v5313, 124
      %v5376 = vpop.permute.xlu0 %5375
      %5377 = vrot.lane.b32.xlu0 %v5314, 124
      %v5378 = vpop.permute.xlu0 %5377
      %5379 = vrot.lane.b32.xlu0 %v5315, 124
      %v5380 = vpop.permute.xlu0 %5379
      %5381 = vrot.lane.b32.xlu0 %v5316, 124
      %v5382 = vpop.permute.xlu0 %5381
      %5383 = vrot.lane.b32.xlu0 %v5317, 124
      %v5384 = vpop.permute.xlu0 %5383
      %5385 = vrot.lane.b32.xlu0 %v5318, 124
      %v5386 = vpop.permute.xlu0 %5385
      %5387 = vrot.lane.b32.xlu0 %v5319, 124
      %v5388 = vpop.permute.xlu0 %5387
      %5389 = vrot.lane.b32.xlu0 %v5320, 124
      %v5390 = vpop.permute.xlu0 %5389
      %5391 = vrot.lane.b32.xlu0 %v5321, 124
      %v5392 = vpop.permute.xlu0 %5391
      %5393 = vrot.lane.b32.xlu0 %v5322, 124
      %v5394 = vpop.permute.xlu0 %5393
      %5395 = vrot.lane.b32.xlu0 %v5323, 124
      %v5396 = vpop.permute.xlu0 %5395
      %5397 = vrot.lane.b32.xlu0 %v5324, 124
      %v5398 = vpop.permute.xlu0 %5397
      %5399 = vrot.lane.b32.xlu0 %v5325, 124
      %v5400 = vpop.permute.xlu0 %5399
      %5401 = vrot.lane.b32.xlu0 %v5326, 124
      %v5402 = vpop.permute.xlu0 %5401
      %5403 = vrot.lane.b32.xlu0 %v5327, 124
      %v5404 = vpop.permute.xlu0 %5403
      %5405 = vrot.lane.b32.xlu0 %v5328, 124
      %v5406 = vpop.permute.xlu0 %5405
      %5407 = vrot.lane.b32.xlu0 %v5329, 124
      %v5408 = vpop.permute.xlu0 %5407
      %5409 = vrot.lane.b32.xlu0 %v5330, 124
      %v5410 = vpop.permute.xlu0 %5409
      %5411 = vrot.lane.b32.xlu0 %v5331, 124
      %v5412 = vpop.permute.xlu0 %5411
      %5413 = vrot.lane.b32.xlu0 %v5332, 124
      %v5414 = vpop.permute.xlu0 %5413
      %5415 = vrot.lane.b32.xlu0 %v5333, 124
      %v5416 = vpop.permute.xlu0 %5415
      %5417 = vrot.lane.b32.xlu0 %v5334, 124
      %v5418 = vpop.permute.xlu0 %5417
      %5419 = vrot.lane.b32.xlu0 %v5335, 124
      %v5420 = vpop.permute.xlu0 %5419
      %5421 = vrot.lane.b32.xlu0 %v5336, 124
      %v5422 = vpop.permute.xlu0 %5421
      %5423 = vrot.lane.b32.xlu0 %v5337, 124
      %v5424 = vpop.permute.xlu0 %5423
      %5425 = vrot.lane.b32.xlu0 %v5338, 124
      %v5426 = vpop.permute.xlu0 %5425
      %5427 = vrot.lane.b32.xlu0 %v5339, 124
      %v5428 = vpop.permute.xlu0 %5427
      %5429 = vrot.lane.b32.xlu0 %v5340, 124
      %v5430 = vpop.permute.xlu0 %5429
      %5431 = vrot.lane.b32.xlu0 %v5341, 124
      %v5432 = vpop.permute.xlu0 %5431
      %5433 = vrot.lane.b32.xlu0 %v5342, 124
      %v5434 = vpop.permute.xlu0 %5433
      %v5435 = vrot.slane %v5376, 7
      %v5436 = vrot.slane %v5378, 7
      %v5437 = vsel %vm316, %v5435, %v5436
      %v5438 = vrot.slane %v5380, 7
      %v5439 = vrot.slane %v5382, 7
      %v5440 = vsel %vm316, %v5438, %v5439
      %v5441 = vrot.slane %v5384, 7
      %v5442 = vrot.slane %v5386, 7
      %v5443 = vsel %vm316, %v5441, %v5442
      %v5444 = vrot.slane %v5388, 7
      %v5445 = vrot.slane %v5390, 7
      %v5446 = vsel %vm316, %v5444, %v5445
      %v5447 = vrot.slane %v5392, 7
      %v5448 = vrot.slane %v5394, 7
      %v5449 = vsel %vm316, %v5447, %v5448
      %v5450 = vrot.slane %v5396, 7
      %v5451 = vrot.slane %v5398, 7
      %v5452 = vsel %vm316, %v5450, %v5451
      %v5453 = vrot.slane %v5400, 7
      %v5454 = vrot.slane %v5402, 7
      %v5455 = vsel %vm316, %v5453, %v5454
      %v5456 = vrot.slane %v5404, 7
      %v5457 = vrot.slane %v5406, 7
      %v5458 = vsel %vm316, %v5456, %v5457
      %v5459 = vrot.slane %v5408, 7
      %v5460 = vrot.slane %v5410, 7
      %v5461 = vsel %vm316, %v5459, %v5460
      %v5462 = vrot.slane %v5412, 7
      %v5463 = vrot.slane %v5414, 7
      %v5464 = vsel %vm316, %v5462, %v5463
      %v5465 = vrot.slane %v5416, 7
      %v5466 = vrot.slane %v5418, 7
      %v5467 = vsel %vm316, %v5465, %v5466
      %v5468 = vrot.slane %v5420, 7
      %v5469 = vrot.slane %v5422, 7
      %v5470 = vsel %vm316, %v5468, %v5469
      %v5471 = vrot.slane %v5424, 7
      %v5472 = vrot.slane %v5426, 7
      %v5473 = vsel %vm316, %v5471, %v5472
      %v5474 = vrot.slane %v5428, 7
      %v5475 = vrot.slane %v5430, 7
      %v5476 = vsel %vm316, %v5474, %v5475
      %v5477 = vrot.slane %v5432, 7
      %v5478 = vrot.slane %v5434, 7
      %v5479 = vsel %vm316, %v5477, %v5478
      %v5510 = vsel %vm316, 0.0, %v5435
      %v5511 = vsel %vm316, 0.0, %v5438
      %v5512 = vsel %vm316, 0.0, %v5441
      %v5513 = vsel %vm316, 0.0, %v5444
      %v5514 = vsel %vm316, 0.0, %v5447
      %v5515 = vsel %vm316, 0.0, %v5450
      %v5516 = vsel %vm316, 0.0, %v5453
      %v5517 = vsel %vm316, 0.0, %v5456
      %v5518 = vsel %vm316, 0.0, %v5459
      %v5519 = vsel %vm316, 0.0, %v5462
      %v5520 = vsel %vm316, 0.0, %v5465
      %v5521 = vsel %vm316, 0.0, %v5468
      %v5522 = vsel %vm316, 0.0, %v5471
      %v5523 = vsel %vm316, 0.0, %v5474
      %v5524 = vsel %vm316, 0.0, %v5477
      %v5525 = vrot.slane %v5376, 1
      %v5526 = vrot.slane %v5378, 1
      %v5527 = vsel %vm412, %v5525, %v5526
      %v5528 = vrot.slane %v5380, 1
      %v5529 = vrot.slane %v5382, 1
      %v5530 = vsel %vm412, %v5528, %v5529
      %v5531 = vrot.slane %v5384, 1
      %v5532 = vrot.slane %v5386, 1
      %v5533 = vsel %vm412, %v5531, %v5532
      %v5534 = vrot.slane %v5388, 1
      %v5535 = vrot.slane %v5390, 1
      %v5536 = vsel %vm412, %v5534, %v5535
      %v5537 = vrot.slane %v5392, 1
      %v5538 = vrot.slane %v5394, 1
      %v5539 = vsel %vm412, %v5537, %v5538
      %v5540 = vrot.slane %v5396, 1
      %v5541 = vrot.slane %v5398, 1
      %v5542 = vsel %vm412, %v5540, %v5541
      %v5543 = vrot.slane %v5400, 1
      %v5544 = vrot.slane %v5402, 1
      %v5545 = vsel %vm412, %v5543, %v5544
      %v5546 = vrot.slane %v5404, 1
      %v5547 = vrot.slane %v5406, 1
      %v5548 = vsel %vm412, %v5546, %v5547
      %v5549 = vrot.slane %v5408, 1
      %v5550 = vrot.slane %v5410, 1
      %v5551 = vsel %vm412, %v5549, %v5550
      %v5552 = vrot.slane %v5412, 1
      %v5553 = vrot.slane %v5414, 1
      %v5554 = vsel %vm412, %v5552, %v5553
      %v5555 = vrot.slane %v5416, 1
      %v5556 = vrot.slane %v5418, 1
      %v5557 = vsel %vm412, %v5555, %v5556
      %v5558 = vrot.slane %v5420, 1
      %v5559 = vrot.slane %v5422, 1
      %v5560 = vsel %vm412, %v5558, %v5559
      %v5561 = vrot.slane %v5424, 1
      %v5562 = vrot.slane %v5426, 1
      %v5563 = vsel %vm412, %v5561, %v5562
      %v5564 = vrot.slane %v5428, 1
      %v5565 = vrot.slane %v5430, 1
      %v5566 = vsel %vm412, %v5564, %v5565
      %v5567 = vrot.slane %v5432, 1
      %v5568 = vrot.slane %v5434, 1
      %v5569 = vsel %vm412, %v5567, %v5568
      %v5585 = vsel %vm412, %v5526, 0.0
      %v5586 = vsel %vm412, %v5529, 0.0
      %v5587 = vsel %vm412, %v5532, 0.0
      %v5588 = vsel %vm412, %v5535, 0.0
      %v5589 = vsel %vm412, %v5538, 0.0
      %v5590 = vsel %vm412, %v5541, 0.0
      %v5591 = vsel %vm412, %v5544, 0.0
      %v5592 = vsel %vm412, %v5547, 0.0
      %v5593 = vsel %vm412, %v5550, 0.0
      %v5594 = vsel %vm412, %v5553, 0.0
      %v5595 = vsel %vm412, %v5556, 0.0
      %v5596 = vsel %vm412, %v5559, 0.0
      %v5597 = vsel %vm412, %v5562, 0.0
      %v5598 = vsel %vm412, %v5565, 0.0
      %v5599 = vsel %vm412, %v5568, 0.0
      %v5602 = vrot.slane %v5313, 7
      %v5603 = vrot.slane %v5314, 7
      %v5604 = vsel %vm316, %v5602, %v5603
      %v5605 = vrot.slane %v5315, 7
      %v5606 = vrot.slane %v5316, 7
      %v5607 = vsel %vm316, %v5605, %v5606
      %v5608 = vrot.slane %v5317, 7
      %v5609 = vrot.slane %v5318, 7
      %v5610 = vsel %vm316, %v5608, %v5609
      %v5611 = vrot.slane %v5319, 7
      %v5612 = vrot.slane %v5320, 7
      %v5613 = vsel %vm316, %v5611, %v5612
      %v5614 = vrot.slane %v5321, 7
      %v5615 = vrot.slane %v5322, 7
      %v5616 = vsel %vm316, %v5614, %v5615
      %v5617 = vrot.slane %v5323, 7
      %v5618 = vrot.slane %v5324, 7
      %v5619 = vsel %vm316, %v5617, %v5618
      %v5620 = vrot.slane %v5325, 7
      %v5621 = vrot.slane %v5326, 7
      %v5622 = vsel %vm316, %v5620, %v5621
      %v5623 = vrot.slane %v5327, 7
      %v5624 = vrot.slane %v5328, 7
      %v5625 = vsel %vm316, %v5623, %v5624
      %v5626 = vrot.slane %v5329, 7
      %v5627 = vrot.slane %v5330, 7
      %v5628 = vsel %vm316, %v5626, %v5627
      %v5629 = vrot.slane %v5331, 7
      %v5630 = vrot.slane %v5332, 7
      %v5631 = vsel %vm316, %v5629, %v5630
      %v5632 = vrot.slane %v5333, 7
      %v5633 = vrot.slane %v5334, 7
      %v5634 = vsel %vm316, %v5632, %v5633
      %v5635 = vrot.slane %v5335, 7
      %v5636 = vrot.slane %v5336, 7
      %v5637 = vsel %vm316, %v5635, %v5636
      %v5638 = vrot.slane %v5337, 7
      %v5639 = vrot.slane %v5338, 7
      %v5640 = vsel %vm316, %v5638, %v5639
      %v5641 = vrot.slane %v5339, 7
      %v5642 = vrot.slane %v5340, 7
      %v5643 = vsel %vm316, %v5641, %v5642
      %v5644 = vrot.slane %v5341, 7
      %v5645 = vrot.slane %v5342, 7
      %v5646 = vsel %vm316, %v5644, %v5645
      %v5647 = vrot.slane %v5343, 7
      %v5648 = vrot.slane %v5344, 7
      %v5649 = vsel %vm316, %v5647, %v5648
      %5650 = vrot.lane.b32.xlu0 %v5602, 124
      %v5651 = vpop.permute.xlu0 %5650
      %5652 = vrot.lane.b32.xlu0 %v5604, 124
      %v5653 = vpop.permute.xlu0 %5652
      %5654 = vrot.lane.b32.xlu0 %v5605, 124
      %v5655 = vpop.permute.xlu0 %5654
      %5656 = vrot.lane.b32.xlu0 %v5607, 124
      %v5657 = vpop.permute.xlu0 %5656
      %5658 = vrot.lane.b32.xlu0 %v5608, 124
      %v5659 = vpop.permute.xlu0 %5658
      %5660 = vrot.lane.b32.xlu0 %v5610, 124
      %v5661 = vpop.permute.xlu0 %5660
      %5662 = vrot.lane.b32.xlu0 %v5611, 124
      %v5663 = vpop.permute.xlu0 %5662
      %5664 = vrot.lane.b32.xlu0 %v5613, 124
      %v5665 = vpop.permute.xlu0 %5664
      %5666 = vrot.lane.b32.xlu0 %v5614, 124
      %v5667 = vpop.permute.xlu0 %5666
      %5668 = vrot.lane.b32.xlu0 %v5616, 124
      %v5669 = vpop.permute.xlu0 %5668
      %5670 = vrot.lane.b32.xlu0 %v5617, 124
      %v5671 = vpop.permute.xlu0 %5670
      %5672 = vrot.lane.b32.xlu0 %v5619, 124
      %v5673 = vpop.permute.xlu0 %5672
      %5674 = vrot.lane.b32.xlu0 %v5620, 124
      %v5675 = vpop.permute.xlu0 %5674
      %5676 = vrot.lane.b32.xlu0 %v5622, 124
      %v5677 = vpop.permute.xlu0 %5676
      %5678 = vrot.lane.b32.xlu0 %v5623, 124
      %v5679 = vpop.permute.xlu0 %5678
      %5680 = vrot.lane.b32.xlu0 %v5625, 124
      %v5681 = vpop.permute.xlu0 %5680
      %5682 = vrot.lane.b32.xlu0 %v5626, 124
      %v5683 = vpop.permute.xlu0 %5682
      %5684 = vrot.lane.b32.xlu0 %v5628, 124
      %v5685 = vpop.permute.xlu0 %5684
      %5686 = vrot.lane.b32.xlu0 %v5629, 124
      %v5687 = vpop.permute.xlu0 %5686
      %5688 = vrot.lane.b32.xlu0 %v5631, 124
      %v5689 = vpop.permute.xlu0 %5688
      %5690 = vrot.lane.b32.xlu0 %v5632, 124
      %v5691 = vpop.permute.xlu0 %5690
      %5692 = vrot.lane.b32.xlu0 %v5634, 124
      %v5693 = vpop.permute.xlu0 %5692
      %5694 = vrot.lane.b32.xlu0 %v5635, 124
      %v5695 = vpop.permute.xlu0 %5694
      %5696 = vrot.lane.b32.xlu0 %v5637, 124
      %v5697 = vpop.permute.xlu0 %5696
      %5698 = vrot.lane.b32.xlu0 %v5638, 124
      %v5699 = vpop.permute.xlu0 %5698
      %5700 = vrot.lane.b32.xlu0 %v5640, 124
      %v5701 = vpop.permute.xlu0 %5700
      %5702 = vrot.lane.b32.xlu0 %v5641, 124
      %v5703 = vpop.permute.xlu0 %5702
      %5704 = vrot.lane.b32.xlu0 %v5643, 124
      %v5705 = vpop.permute.xlu0 %5704
      %5706 = vrot.lane.b32.xlu0 %v5644, 124
      %v5707 = vpop.permute.xlu0 %5706
      %5708 = vrot.lane.b32.xlu0 %v5646, 124
      %v5709 = vpop.permute.xlu0 %5708
      %5710 = vrot.lane.b32.xlu0 %v5647, 124
      %v5711 = vpop.permute.xlu0 %5710
      %5712 = vrot.lane.b32.xlu0 %v5649, 124
      %v5713 = vpop.permute.xlu0 %5712
      %v5730 = vsel %vm316, 0.0, %v5651
      %v5731 = vsel %vm316, 0.0, %v5655
      %v5732 = vsel %vm316, 0.0, %v5659
      %v5733 = vsel %vm316, 0.0, %v5663
      %v5734 = vsel %vm316, 0.0, %v5667
      %v5735 = vsel %vm316, 0.0, %v5671
      %v5736 = vsel %vm316, 0.0, %v5675
      %v5737 = vsel %vm316, 0.0, %v5679
      %v5738 = vsel %vm316, 0.0, %v5683
      %v5739 = vsel %vm316, 0.0, %v5687
      %v5740 = vsel %vm316, 0.0, %v5691
      %v5741 = vsel %vm316, 0.0, %v5695
      %v5742 = vsel %vm316, 0.0, %v5699
      %v5743 = vsel %vm316, 0.0, %v5703
      %v5744 = vsel %vm316, 0.0, %v5707
      %v5745 = vsel %vm316, 0.0, %v5711
      %v5746 = vrot.slane %v5313, 1
      %v5747 = vrot.slane %v5314, 1
      %v5748 = vsel %vm412, %v5746, %v5747
      %v5749 = vrot.slane %v5315, 1
      %v5750 = vrot.slane %v5316, 1
      %v5751 = vsel %vm412, %v5749, %v5750
      %v5752 = vrot.slane %v5317, 1
      %v5753 = vrot.slane %v5318, 1
      %v5754 = vsel %vm412, %v5752, %v5753
      %v5755 = vrot.slane %v5319, 1
      %v5756 = vrot.slane %v5320, 1
      %v5757 = vsel %vm412, %v5755, %v5756
      %v5758 = vrot.slane %v5321, 1
      %v5759 = vrot.slane %v5322, 1
      %v5760 = vsel %vm412, %v5758, %v5759
      %v5761 = vrot.slane %v5323, 1
      %v5762 = vrot.slane %v5324, 1
      %v5763 = vsel %vm412, %v5761, %v5762
      %v5764 = vrot.slane %v5325, 1
      %v5765 = vrot.slane %v5326, 1
      %v5766 = vsel %vm412, %v5764, %v5765
      %v5767 = vrot.slane %v5327, 1
      %v5768 = vrot.slane %v5328, 1
      %v5769 = vsel %vm412, %v5767, %v5768
      %v5770 = vrot.slane %v5329, 1
      %v5771 = vrot.slane %v5330, 1
      %v5772 = vsel %vm412, %v5770, %v5771
      %v5773 = vrot.slane %v5331, 1
      %v5774 = vrot.slane %v5332, 1
      %v5775 = vsel %vm412, %v5773, %v5774
      %v5776 = vrot.slane %v5333, 1
      %v5777 = vrot.slane %v5334, 1
      %v5778 = vsel %vm412, %v5776, %v5777
      %v5779 = vrot.slane %v5335, 1
      %v5780 = vrot.slane %v5336, 1
      %v5781 = vsel %vm412, %v5779, %v5780
      %v5782 = vrot.slane %v5337, 1
      %v5783 = vrot.slane %v5338, 1
      %v5784 = vsel %vm412, %v5782, %v5783
      %v5785 = vrot.slane %v5339, 1
      %v5786 = vrot.slane %v5340, 1
      %v5787 = vsel %vm412, %v5785, %v5786
      %v5788 = vrot.slane %v5341, 1
      %v5789 = vrot.slane %v5342, 1
      %v5790 = vsel %vm412, %v5788, %v5789
      %v5791 = vrot.slane %v5343, 1
      %v5792 = vrot.slane %v5344, 1
      %v5793 = vsel %vm412, %v5791, %v5792
      %v5810 = vsel %vm412, %v5747, 0.0
      %v5811 = vsel %vm412, %v5750, 0.0
      %v5812 = vsel %vm412, %v5753, 0.0
      %v5813 = vsel %vm412, %v5756, 0.0
      %v5814 = vsel %vm412, %v5759, 0.0
      %v5815 = vsel %vm412, %v5762, 0.0
      %v5816 = vsel %vm412, %v5765, 0.0
      %v5817 = vsel %vm412, %v5768, 0.0
      %v5818 = vsel %vm412, %v5771, 0.0
      %v5819 = vsel %vm412, %v5774, 0.0
      %v5820 = vsel %vm412, %v5777, 0.0
      %v5821 = vsel %vm412, %v5780, 0.0
      %v5822 = vsel %vm412, %v5783, 0.0
      %v5823 = vsel %vm412, %v5786, 0.0
      %v5824 = vsel %vm412, %v5789, 0.0
      %v5825 = vsel %vm412, %v5792, 0.0
      %5826 = vrot.lane.b32.xlu0 %v317, 124
      %v5827 = vpop.permute.xlu0 %5826
      %5828 = vrot.lane.b32.xlu0 %v318, 124
      %v5829 = vpop.permute.xlu0 %5828
      %v5831 = vsel %vm316, 0.0, %v5827
      %5832 = vrot.lane.b32.xlu0 %v5376, 4
      %v5833 = vpop.permute.xlu0 %5832
      %5834 = vrot.lane.b32.xlu0 %v5378, 4
      %v5835 = vpop.permute.xlu0 %5834
      %5836 = vrot.lane.b32.xlu0 %v5380, 4
      %v5837 = vpop.permute.xlu0 %5836
      %5838 = vrot.lane.b32.xlu0 %v5382, 4
      %v5839 = vpop.permute.xlu0 %5838
      %5840 = vrot.lane.b32.xlu0 %v5384, 4
      %v5841 = vpop.permute.xlu0 %5840
      %5842 = vrot.lane.b32.xlu0 %v5386, 4
      %v5843 = vpop.permute.xlu0 %5842
      %5844 = vrot.lane.b32.xlu0 %v5388, 4
      %v5845 = vpop.permute.xlu0 %5844
      %5846 = vrot.lane.b32.xlu0 %v5390, 4
      %v5847 = vpop.permute.xlu0 %5846
      %5848 = vrot.lane.b32.xlu0 %v5392, 4
      %v5849 = vpop.permute.xlu0 %5848
      %5850 = vrot.lane.b32.xlu0 %v5394, 4
      %v5851 = vpop.permute.xlu0 %5850
      %5852 = vrot.lane.b32.xlu0 %v5396, 4
      %v5853 = vpop.permute.xlu0 %5852
      %5854 = vrot.lane.b32.xlu0 %v5398, 4
      %v5855 = vpop.permute.xlu0 %5854
      %5856 = vrot.lane.b32.xlu0 %v5400, 4
      %v5857 = vpop.permute.xlu0 %5856
      %5858 = vrot.lane.b32.xlu0 %v5402, 4
      %v5859 = vpop.permute.xlu0 %5858
      %5860 = vrot.lane.b32.xlu0 %v5404, 4
      %v5861 = vpop.permute.xlu0 %5860
      %5862 = vrot.lane.b32.xlu0 %v5406, 4
      %v5863 = vpop.permute.xlu0 %5862
      %5864 = vrot.lane.b32.xlu0 %v5408, 4
      %v5865 = vpop.permute.xlu0 %5864
      %5866 = vrot.lane.b32.xlu0 %v5410, 4
      %v5867 = vpop.permute.xlu0 %5866
      %5868 = vrot.lane.b32.xlu0 %v5412, 4
      %v5869 = vpop.permute.xlu0 %5868
      %5870 = vrot.lane.b32.xlu0 %v5414, 4
      %v5871 = vpop.permute.xlu0 %5870
      %5872 = vrot.lane.b32.xlu0 %v5416, 4
      %v5873 = vpop.permute.xlu0 %5872
      %5874 = vrot.lane.b32.xlu0 %v5418, 4
      %v5875 = vpop.permute.xlu0 %5874
      %5876 = vrot.lane.b32.xlu0 %v5420, 4
      %v5877 = vpop.permute.xlu0 %5876
      %5878 = vrot.lane.b32.xlu0 %v5422, 4
      %v5879 = vpop.permute.xlu0 %5878
      %5880 = vrot.lane.b32.xlu0 %v5424, 4
      %v5881 = vpop.permute.xlu0 %5880
      %5882 = vrot.lane.b32.xlu0 %v5426, 4
      %v5883 = vpop.permute.xlu0 %5882
      %5884 = vrot.lane.b32.xlu0 %v5428, 4
      %v5885 = vpop.permute.xlu0 %5884
      %5886 = vrot.lane.b32.xlu0 %v5430, 4
      %v5887 = vpop.permute.xlu0 %5886
      %5888 = vrot.lane.b32.xlu0 %v5432, 4
      %v5889 = vpop.permute.xlu0 %5888
      %5890 = vrot.lane.b32.xlu0 %v5434, 4
      %v5891 = vpop.permute.xlu0 %5890
      %5937 = vrot.lane.b32.xlu0 %v5527, 8
      %v5938 = vpop.permute.xlu0 %5937
      %5939 = vrot.lane.b32.xlu0 %v5585, 8
      %v5940 = vpop.permute.xlu0 %5939
      %5941 = vrot.lane.b32.xlu0 %v5530, 8
      %v5942 = vpop.permute.xlu0 %5941
      %5943 = vrot.lane.b32.xlu0 %v5586, 8
      %v5944 = vpop.permute.xlu0 %5943
      %5945 = vrot.lane.b32.xlu0 %v5533, 8
      %v5946 = vpop.permute.xlu0 %5945
      %5947 = vrot.lane.b32.xlu0 %v5587, 8
      %v5948 = vpop.permute.xlu0 %5947
      %5949 = vrot.lane.b32.xlu0 %v5536, 8
      %v5950 = vpop.permute.xlu0 %5949
      %5951 = vrot.lane.b32.xlu0 %v5588, 8
      %v5952 = vpop.permute.xlu0 %5951
      %5953 = vrot.lane.b32.xlu0 %v5539, 8
      %v5954 = vpop.permute.xlu0 %5953
      %5955 = vrot.lane.b32.xlu0 %v5589, 8
      %v5956 = vpop.permute.xlu0 %5955
      %5957 = vrot.lane.b32.xlu0 %v5542, 8
      %v5958 = vpop.permute.xlu0 %5957
      %5959 = vrot.lane.b32.xlu0 %v5590, 8
      %v5960 = vpop.permute.xlu0 %5959
      %5961 = vrot.lane.b32.xlu0 %v5545, 8
      %v5962 = vpop.permute.xlu0 %5961
      %5963 = vrot.lane.b32.xlu0 %v5591, 8
      %v5964 = vpop.permute.xlu0 %5963
      %5965 = vrot.lane.b32.xlu0 %v5548, 8
      %v5966 = vpop.permute.xlu0 %5965
      %5967 = vrot.lane.b32.xlu0 %v5592, 8
      %v5968 = vpop.permute.xlu0 %5967
      %5969 = vrot.lane.b32.xlu0 %v5551, 8
      %v5970 = vpop.permute.xlu0 %5969
      %5971 = vrot.lane.b32.xlu0 %v5593, 8
      %v5972 = vpop.permute.xlu0 %5971
      %5973 = vrot.lane.b32.xlu0 %v5554, 8
      %v5974 = vpop.permute.xlu0 %5973
      %5975 = vrot.lane.b32.xlu0 %v5594, 8
      %v5976 = vpop.permute.xlu0 %5975
      %5977 = vrot.lane.b32.xlu0 %v5557, 8
      %v5978 = vpop.permute.xlu0 %5977
      %5979 = vrot.lane.b32.xlu0 %v5595, 8
      %v5980 = vpop.permute.xlu0 %5979
      %5981 = vrot.lane.b32.xlu0 %v5560, 8
      %v5982 = vpop.permute.xlu0 %5981
      %5983 = vrot.lane.b32.xlu0 %v5596, 8
      %v5984 = vpop.permute.xlu0 %5983
      %5985 = vrot.lane.b32.xlu0 %v5563, 8
      %v5986 = vpop.permute.xlu0 %5985
      %5987 = vrot.lane.b32.xlu0 %v5597, 8
      %v5988 = vpop.permute.xlu0 %5987
      %5989 = vrot.lane.b32.xlu0 %v5566, 8
      %v5990 = vpop.permute.xlu0 %5989
      %5991 = vrot.lane.b32.xlu0 %v5598, 8
      %v5992 = vpop.permute.xlu0 %5991
      %5993 = vrot.lane.b32.xlu0 %v5569, 8
      %v5994 = vpop.permute.xlu0 %5993
      %5995 = vrot.lane.b32.xlu0 %v5599, 8
      %v5996 = vpop.permute.xlu0 %5995
      %6043 = vrot.lane.b32.xlu0 %v5730, 12
      %v6044 = vpop.permute.xlu0 %6043
      %6045 = vrot.lane.b32.xlu0 %v5653, 12
      %v6046 = vpop.permute.xlu0 %6045
      %6047 = vrot.lane.b32.xlu0 %v5731, 12
      %v6048 = vpop.permute.xlu0 %6047
      %6049 = vrot.lane.b32.xlu0 %v5657, 12
      %v6050 = vpop.permute.xlu0 %6049
      %6051 = vrot.lane.b32.xlu0 %v5732, 12
      %v6052 = vpop.permute.xlu0 %6051
      %6053 = vrot.lane.b32.xlu0 %v5661, 12
      %v6054 = vpop.permute.xlu0 %6053
      %6055 = vrot.lane.b32.xlu0 %v5733, 12
      %v6056 = vpop.permute.xlu0 %6055
      %6057 = vrot.lane.b32.xlu0 %v5665, 12
      %v6058 = vpop.permute.xlu0 %6057
      %6059 = vrot.lane.b32.xlu0 %v5734, 12
      %v6060 = vpop.permute.xlu0 %6059
      %6061 = vrot.lane.b32.xlu0 %v5669, 12
      %v6062 = vpop.permute.xlu0 %6061
      %6063 = vrot.lane.b32.xlu0 %v5735, 12
      %v6064 = vpop.permute.xlu0 %6063
      %6065 = vrot.lane.b32.xlu0 %v5673, 12
      %v6066 = vpop.permute.xlu0 %6065
      %6067 = vrot.lane.b32.xlu0 %v5736, 12
      %v6068 = vpop.permute.xlu0 %6067
      %6069 = vrot.lane.b32.xlu0 %v5677, 12
      %v6070 = vpop.permute.xlu0 %6069
      %6071 = vrot.lane.b32.xlu0 %v5737, 12
      %v6072 = vpop.permute.xlu0 %6071
      %6073 = vrot.lane.b32.xlu0 %v5681, 12
      %v6074 = vpop.permute.xlu0 %6073
      %6075 = vrot.lane.b32.xlu0 %v5738, 12
      %v6076 = vpop.permute.xlu0 %6075
      %6077 = vrot.lane.b32.xlu0 %v5685, 12
      %v6078 = vpop.permute.xlu0 %6077
      %6079 = vrot.lane.b32.xlu0 %v5739, 12
      %v6080 = vpop.permute.xlu0 %6079
      %6081 = vrot.lane.b32.xlu0 %v5689, 12
      %v6082 = vpop.permute.xlu0 %6081
      %6083 = vrot.lane.b32.xlu0 %v5740, 12
      %v6084 = vpop.permute.xlu0 %6083
      %6085 = vrot.lane.b32.xlu0 %v5693, 12
      %v6086 = vpop.permute.xlu0 %6085
      %6087 = vrot.lane.b32.xlu0 %v5741, 12
      %v6088 = vpop.permute.xlu0 %6087
      %6089 = vrot.lane.b32.xlu0 %v5697, 12
      %v6090 = vpop.permute.xlu0 %6089
      %6091 = vrot.lane.b32.xlu0 %v5742, 12
      %v6092 = vpop.permute.xlu0 %6091
      %6093 = vrot.lane.b32.xlu0 %v5701, 12
      %v6094 = vpop.permute.xlu0 %6093
      %6095 = vrot.lane.b32.xlu0 %v5743, 12
      %v6096 = vpop.permute.xlu0 %6095
      %6097 = vrot.lane.b32.xlu0 %v5705, 12
      %v6098 = vpop.permute.xlu0 %6097
      %6099 = vrot.lane.b32.xlu0 %v5744, 12
      %v6100 = vpop.permute.xlu0 %6099
      %6101 = vrot.lane.b32.xlu0 %v5709, 12
      %v6102 = vpop.permute.xlu0 %6101
      %6103 = vrot.lane.b32.xlu0 %v5745, 12
      %v6104 = vpop.permute.xlu0 %6103
      %6105 = vrot.lane.b32.xlu0 %v5713, 12
      %v6106 = vpop.permute.xlu0 %6105
      %6139 = vrot.lane.b32.xlu0 %v5313, 12
      %v6140 = vpop.permute.xlu0 %6139
      %6141 = vrot.lane.b32.xlu0 %v5314, 12
      %v6142 = vpop.permute.xlu0 %6141
      %6143 = vrot.lane.b32.xlu0 %v5315, 12
      %v6144 = vpop.permute.xlu0 %6143
      %6145 = vrot.lane.b32.xlu0 %v5316, 12
      %v6146 = vpop.permute.xlu0 %6145
      %6147 = vrot.lane.b32.xlu0 %v5317, 12
      %v6148 = vpop.permute.xlu0 %6147
      %6149 = vrot.lane.b32.xlu0 %v5318, 12
      %v6150 = vpop.permute.xlu0 %6149
      %6151 = vrot.lane.b32.xlu0 %v5319, 12
      %v6152 = vpop.permute.xlu0 %6151
      %6153 = vrot.lane.b32.xlu0 %v5320, 12
      %v6154 = vpop.permute.xlu0 %6153
      %6155 = vrot.lane.b32.xlu0 %v5321, 12
      %v6156 = vpop.permute.xlu0 %6155
      %6157 = vrot.lane.b32.xlu0 %v5322, 12
      %v6158 = vpop.permute.xlu0 %6157
      %6159 = vrot.lane.b32.xlu0 %v5323, 12
      %v6160 = vpop.permute.xlu0 %6159
      %6161 = vrot.lane.b32.xlu0 %v5324, 12
      %v6162 = vpop.permute.xlu0 %6161
      %6163 = vrot.lane.b32.xlu0 %v5325, 12
      %v6164 = vpop.permute.xlu0 %6163
      %6165 = vrot.lane.b32.xlu0 %v5326, 12
      %v6166 = vpop.permute.xlu0 %6165
      %6167 = vrot.lane.b32.xlu0 %v5327, 12
      %v6168 = vpop.permute.xlu0 %6167
      %6169 = vrot.lane.b32.xlu0 %v5328, 12
      %v6170 = vpop.permute.xlu0 %6169
      %6171 = vrot.lane.b32.xlu0 %v5329, 12
      %v6172 = vpop.permute.xlu0 %6171
      %6173 = vrot.lane.b32.xlu0 %v5330, 12
      %v6174 = vpop.permute.xlu0 %6173
      %6175 = vrot.lane.b32.xlu0 %v5331, 12
      %v6176 = vpop.permute.xlu0 %6175
      %6177 = vrot.lane.b32.xlu0 %v5332, 12
      %v6178 = vpop.permute.xlu0 %6177
      %6179 = vrot.lane.b32.xlu0 %v5333, 12
      %v6180 = vpop.permute.xlu0 %6179
      %6181 = vrot.lane.b32.xlu0 %v5334, 12
      %v6182 = vpop.permute.xlu0 %6181
      %6183 = vrot.lane.b32.xlu0 %v5335, 12
      %v6184 = vpop.permute.xlu0 %6183
      %6185 = vrot.lane.b32.xlu0 %v5336, 12
      %v6186 = vpop.permute.xlu0 %6185
      %6187 = vrot.lane.b32.xlu0 %v5337, 12
      %v6188 = vpop.permute.xlu0 %6187
      %6189 = vrot.lane.b32.xlu0 %v5338, 12
      %v6190 = vpop.permute.xlu0 %6189
      %6191 = vrot.lane.b32.xlu0 %v5339, 12
      %v6192 = vpop.permute.xlu0 %6191
      %6193 = vrot.lane.b32.xlu0 %v5340, 12
      %v6194 = vpop.permute.xlu0 %6193
      %6195 = vrot.lane.b32.xlu0 %v5341, 12
      %v6196 = vpop.permute.xlu0 %6195
      %6197 = vrot.lane.b32.xlu0 %v5342, 12
      %v6198 = vpop.permute.xlu0 %6197
      %6199 = vrot.lane.b32.xlu0 %v5343, 12
      %v6200 = vpop.permute.xlu0 %6199
      %6201 = vrot.lane.b32.xlu0 %v5344, 12
      %v6202 = vpop.permute.xlu0 %6201
      %6251 = vrot.lane.b32.xlu0 %v5748, 16
      %v6252 = vpop.permute.xlu0 %6251
      %6253 = vrot.lane.b32.xlu0 %v5810, 16
      %v6254 = vpop.permute.xlu0 %6253
      %6255 = vrot.lane.b32.xlu0 %v5751, 16
      %v6256 = vpop.permute.xlu0 %6255
      %6257 = vrot.lane.b32.xlu0 %v5811, 16
      %v6258 = vpop.permute.xlu0 %6257
      %6259 = vrot.lane.b32.xlu0 %v5754, 16
      %v6260 = vpop.permute.xlu0 %6259
      %6261 = vrot.lane.b32.xlu0 %v5812, 16
      %v6262 = vpop.permute.xlu0 %6261
      %6263 = vrot.lane.b32.xlu0 %v5757, 16
      %v6264 = vpop.permute.xlu0 %6263
      %6265 = vrot.lane.b32.xlu0 %v5813, 16
      %v6266 = vpop.permute.xlu0 %6265
      %6267 = vrot.lane.b32.xlu0 %v5760, 16
      %v6268 = vpop.permute.xlu0 %6267
      %6269 = vrot.lane.b32.xlu0 %v5814, 16
      %v6270 = vpop.permute.xlu0 %6269
      %6271 = vrot.lane.b32.xlu0 %v5763, 16
      %v6272 = vpop.permute.xlu0 %6271
      %6273 = vrot.lane.b32.xlu0 %v5815, 16
      %v6274 = vpop.permute.xlu0 %6273
      %6275 = vrot.lane.b32.xlu0 %v5766, 16
      %v6276 = vpop.permute.xlu0 %6275
      %6277 = vrot.lane.b32.xlu0 %v5816, 16
      %v6278 = vpop.permute.xlu0 %6277
      %6279 = vrot.lane.b32.xlu0 %v5769, 16
      %v6280 = vpop.permute.xlu0 %6279
      %6281 = vrot.lane.b32.xlu0 %v5817, 16
      %v6282 = vpop.permute.xlu0 %6281
      %6283 = vrot.lane.b32.xlu0 %v5772, 16
      %v6284 = vpop.permute.xlu0 %6283
      %6285 = vrot.lane.b32.xlu0 %v5818, 16
      %v6286 = vpop.permute.xlu0 %6285
      %6287 = vrot.lane.b32.xlu0 %v5775, 16
      %v6288 = vpop.permute.xlu0 %6287
      %6289 = vrot.lane.b32.xlu0 %v5819, 16
      %v6290 = vpop.permute.xlu0 %6289
      %6291 = vrot.lane.b32.xlu0 %v5778, 16
      %v6292 = vpop.permute.xlu0 %6291
      %6293 = vrot.lane.b32.xlu0 %v5820, 16
      %v6294 = vpop.permute.xlu0 %6293
      %6295 = vrot.lane.b32.xlu0 %v5781, 16
      %v6296 = vpop.permute.xlu0 %6295
      %6297 = vrot.lane.b32.xlu0 %v5821, 16
      %v6298 = vpop.permute.xlu0 %6297
      %6299 = vrot.lane.b32.xlu0 %v5784, 16
      %v6300 = vpop.permute.xlu0 %6299
      %6301 = vrot.lane.b32.xlu0 %v5822, 16
      %v6302 = vpop.permute.xlu0 %6301
      %6303 = vrot.lane.b32.xlu0 %v5787, 16
      %v6304 = vpop.permute.xlu0 %6303
      %6305 = vrot.lane.b32.xlu0 %v5823, 16
      %v6306 = vpop.permute.xlu0 %6305
      %6307 = vrot.lane.b32.xlu0 %v5790, 16
      %v6308 = vpop.permute.xlu0 %6307
      %6309 = vrot.lane.b32.xlu0 %v5824, 16
      %v6310 = vpop.permute.xlu0 %6309
      %6311 = vrot.lane.b32.xlu0 %v5793, 16
      %v6312 = vpop.permute.xlu0 %6311
      %6313 = vrot.lane.b32.xlu0 %v5825, 16
      %v6314 = vpop.permute.xlu0 %6313
      %6348 = vrot.lane.b32.xlu0 %v5731, 24
      %v6349 = vpop.permute.xlu0 %6348
      %6350 = vrot.lane.b32.xlu0 %v5657, 24
      %v6351 = vpop.permute.xlu0 %6350
      %6352 = vrot.lane.b32.xlu0 %v5732, 24
      %v6353 = vpop.permute.xlu0 %6352
      %6354 = vrot.lane.b32.xlu0 %v5661, 24
      %v6355 = vpop.permute.xlu0 %6354
      %6356 = vrot.lane.b32.xlu0 %v5733, 24
      %v6357 = vpop.permute.xlu0 %6356
      %6358 = vrot.lane.b32.xlu0 %v5665, 24
      %v6359 = vpop.permute.xlu0 %6358
      %6360 = vrot.lane.b32.xlu0 %v5734, 24
      %v6361 = vpop.permute.xlu0 %6360
      %6362 = vrot.lane.b32.xlu0 %v5669, 24
      %v6363 = vpop.permute.xlu0 %6362
      %6364 = vrot.lane.b32.xlu0 %v5735, 24
      %v6365 = vpop.permute.xlu0 %6364
      %6366 = vrot.lane.b32.xlu0 %v5673, 24
      %v6367 = vpop.permute.xlu0 %6366
      %6368 = vrot.lane.b32.xlu0 %v5736, 24
      %v6369 = vpop.permute.xlu0 %6368
      %6370 = vrot.lane.b32.xlu0 %v5677, 24
      %v6371 = vpop.permute.xlu0 %6370
      %6372 = vrot.lane.b32.xlu0 %v5737, 24
      %v6373 = vpop.permute.xlu0 %6372
      %6374 = vrot.lane.b32.xlu0 %v5681, 24
      %v6375 = vpop.permute.xlu0 %6374
      %6376 = vrot.lane.b32.xlu0 %v5738, 24
      %v6377 = vpop.permute.xlu0 %6376
      %6378 = vrot.lane.b32.xlu0 %v5685, 24
      %v6379 = vpop.permute.xlu0 %6378
      %6380 = vrot.lane.b32.xlu0 %v5739, 24
      %v6381 = vpop.permute.xlu0 %6380
      %6382 = vrot.lane.b32.xlu0 %v5689, 24
      %v6383 = vpop.permute.xlu0 %6382
      %6384 = vrot.lane.b32.xlu0 %v5740, 24
      %v6385 = vpop.permute.xlu0 %6384
      %6386 = vrot.lane.b32.xlu0 %v5693, 24
      %v6387 = vpop.permute.xlu0 %6386
      %6388 = vrot.lane.b32.xlu0 %v5741, 24
      %v6389 = vpop.permute.xlu0 %6388
      %6390 = vrot.lane.b32.xlu0 %v5697, 24
      %v6391 = vpop.permute.xlu0 %6390
      %6392 = vrot.lane.b32.xlu0 %v5742, 24
      %v6393 = vpop.permute.xlu0 %6392
      %6394 = vrot.lane.b32.xlu0 %v5701, 24
      %v6395 = vpop.permute.xlu0 %6394
      %6396 = vrot.lane.b32.xlu0 %v5743, 24
      %v6397 = vpop.permute.xlu0 %6396
      %6398 = vrot.lane.b32.xlu0 %v5705, 24
      %v6399 = vpop.permute.xlu0 %6398
      %6400 = vrot.lane.b32.xlu0 %v5744, 24
      %v6401 = vpop.permute.xlu0 %6400
      %6402 = vrot.lane.b32.xlu0 %v5709, 24
      %v6403 = vpop.permute.xlu0 %6402
      %6404 = vrot.lane.b32.xlu0 %v5745, 24
      %v6405 = vpop.permute.xlu0 %6404
      %6406 = vrot.lane.b32.xlu0 %v5713, 24
      %v6407 = vpop.permute.xlu0 %6406
      %6408 = vrot.lane.b32.xlu0 %v5831, 24
      %v6409 = vpop.permute.xlu0 %6408
      %6410 = vrot.lane.b32.xlu0 %v5829, 24
      %v6411 = vpop.permute.xlu0 %6410
      %6444 = vrot.lane.b32.xlu0 %v5315, 24
      %v6445 = vpop.permute.xlu0 %6444
      %6446 = vrot.lane.b32.xlu0 %v5316, 24
      %v6447 = vpop.permute.xlu0 %6446
      %6448 = vrot.lane.b32.xlu0 %v5317, 24
      %v6449 = vpop.permute.xlu0 %6448
      %6450 = vrot.lane.b32.xlu0 %v5318, 24
      %v6451 = vpop.permute.xlu0 %6450
      %6452 = vrot.lane.b32.xlu0 %v5319, 24
      %v6453 = vpop.permute.xlu0 %6452
      %6454 = vrot.lane.b32.xlu0 %v5320, 24
      %v6455 = vpop.permute.xlu0 %6454
      %6456 = vrot.lane.b32.xlu0 %v5321, 24
      %v6457 = vpop.permute.xlu0 %6456
      %6458 = vrot.lane.b32.xlu0 %v5322, 24
      %v6459 = vpop.permute.xlu0 %6458
      %6460 = vrot.lane.b32.xlu0 %v5323, 24
      %v6461 = vpop.permute.xlu0 %6460
      %6462 = vrot.lane.b32.xlu0 %v5324, 24
      %v6463 = vpop.permute.xlu0 %6462
      %6464 = vrot.lane.b32.xlu0 %v5325, 24
      %v6465 = vpop.permute.xlu0 %6464
      %6466 = vrot.lane.b32.xlu0 %v5326, 24
      %v6467 = vpop.permute.xlu0 %6466
      %6468 = vrot.lane.b32.xlu0 %v5327, 24
      %v6469 = vpop.permute.xlu0 %6468
      %6470 = vrot.lane.b32.xlu0 %v5328, 24
      %v6471 = vpop.permute.xlu0 %6470
      %6472 = vrot.lane.b32.xlu0 %v5329, 24
      %v6473 = vpop.permute.xlu0 %6472
      %6474 = vrot.lane.b32.xlu0 %v5330, 24
      %v6475 = vpop.permute.xlu0 %6474
      %6476 = vrot.lane.b32.xlu0 %v5331, 24
      %v6477 = vpop.permute.xlu0 %6476
      %6478 = vrot.lane.b32.xlu0 %v5332, 24
      %v6479 = vpop.permute.xlu0 %6478
      %6480 = vrot.lane.b32.xlu0 %v5333, 24
      %v6481 = vpop.permute.xlu0 %6480
      %6482 = vrot.lane.b32.xlu0 %v5334, 24
      %v6483 = vpop.permute.xlu0 %6482
      %6484 = vrot.lane.b32.xlu0 %v5335, 24
      %v6485 = vpop.permute.xlu0 %6484
      %6486 = vrot.lane.b32.xlu0 %v5336, 24
      %v6487 = vpop.permute.xlu0 %6486
      %6488 = vrot.lane.b32.xlu0 %v5337, 24
      %v6489 = vpop.permute.xlu0 %6488
      %6490 = vrot.lane.b32.xlu0 %v5338, 24
      %v6491 = vpop.permute.xlu0 %6490
      %6492 = vrot.lane.b32.xlu0 %v5339, 24
      %v6493 = vpop.permute.xlu0 %6492
      %6494 = vrot.lane.b32.xlu0 %v5340, 24
      %v6495 = vpop.permute.xlu0 %6494
      %6496 = vrot.lane.b32.xlu0 %v5341, 24
      %v6497 = vpop.permute.xlu0 %6496
      %6498 = vrot.lane.b32.xlu0 %v5342, 24
      %v6499 = vpop.permute.xlu0 %6498
      %6500 = vrot.lane.b32.xlu0 %v5343, 24
      %v6501 = vpop.permute.xlu0 %6500
      %6502 = vrot.lane.b32.xlu0 %v5344, 24
      %v6503 = vpop.permute.xlu0 %6502
      %6504 = vrot.lane.b32.xlu0 0.0, 24
      %v6505 = vpop.permute.xlu0 %6504
      %6537 = vrot.lane.b32.xlu0 %v5751, 28
      %v6538 = vpop.permute.xlu0 %6537
      %6539 = vrot.lane.b32.xlu0 %v5811, 28
      %v6540 = vpop.permute.xlu0 %6539
      %6541 = vrot.lane.b32.xlu0 %v5754, 28
      %v6542 = vpop.permute.xlu0 %6541
      %6543 = vrot.lane.b32.xlu0 %v5812, 28
      %v6544 = vpop.permute.xlu0 %6543
      %6545 = vrot.lane.b32.xlu0 %v5757, 28
      %v6546 = vpop.permute.xlu0 %6545
      %6547 = vrot.lane.b32.xlu0 %v5813, 28
      %v6548 = vpop.permute.xlu0 %6547
      %6549 = vrot.lane.b32.xlu0 %v5760, 28
      %v6550 = vpop.permute.xlu0 %6549
      %6551 = vrot.lane.b32.xlu0 %v5814, 28
      %v6552 = vpop.permute.xlu0 %6551
      %6553 = vrot.lane.b32.xlu0 %v5763, 28
      %v6554 = vpop.permute.xlu0 %6553
      %6555 = vrot.lane.b32.xlu0 %v5815, 28
      %v6556 = vpop.permute.xlu0 %6555
      %6557 = vrot.lane.b32.xlu0 %v5766, 28
      %v6558 = vpop.permute.xlu0 %6557
      %6559 = vrot.lane.b32.xlu0 %v5816, 28
      %v6560 = vpop.permute.xlu0 %6559
      %6561 = vrot.lane.b32.xlu0 %v5769, 28
      %v6562 = vpop.permute.xlu0 %6561
      %6563 = vrot.lane.b32.xlu0 %v5817, 28
      %v6564 = vpop.permute.xlu0 %6563
      %6565 = vrot.lane.b32.xlu0 %v5772, 28
      %v6566 = vpop.permute.xlu0 %6565
      %6567 = vrot.lane.b32.xlu0 %v5818, 28
      %v6568 = vpop.permute.xlu0 %6567
      %6569 = vrot.lane.b32.xlu0 %v5775, 28
      %v6570 = vpop.permute.xlu0 %6569
      %6571 = vrot.lane.b32.xlu0 %v5819, 28
      %v6572 = vpop.permute.xlu0 %6571
      %6573 = vrot.lane.b32.xlu0 %v5778, 28
      %v6574 = vpop.permute.xlu0 %6573
      %6575 = vrot.lane.b32.xlu0 %v5820, 28
      %v6576 = vpop.permute.xlu0 %6575
      %6577 = vrot.lane.b32.xlu0 %v5781, 28
      %v6578 = vpop.permute.xlu0 %6577
      %6579 = vrot.lane.b32.xlu0 %v5821, 28
      %v6580 = vpop.permute.xlu0 %6579
      %6581 = vrot.lane.b32.xlu0 %v5784, 28
      %v6582 = vpop.permute.xlu0 %6581
      %6583 = vrot.lane.b32.xlu0 %v5822, 28
      %v6584 = vpop.permute.xlu0 %6583
      %6585 = vrot.lane.b32.xlu0 %v5787, 28
      %v6586 = vpop.permute.xlu0 %6585
      %6587 = vrot.lane.b32.xlu0 %v5823, 28
      %v6588 = vpop.permute.xlu0 %6587
      %6589 = vrot.lane.b32.xlu0 %v5790, 28
      %v6590 = vpop.permute.xlu0 %6589
      %6591 = vrot.lane.b32.xlu0 %v5824, 28
      %v6592 = vpop.permute.xlu0 %6591
      %6593 = vrot.lane.b32.xlu0 %v5793, 28
      %v6594 = vpop.permute.xlu0 %6593
      %6595 = vrot.lane.b32.xlu0 %v5825, 28
      %v6596 = vpop.permute.xlu0 %6595
      %6597 = vrot.lane.b32.xlu0 %v414, 28
      %v6598 = vpop.permute.xlu0 %6597
      %6599 = vrot.lane.b32.xlu0 %v476, 28
      %v6600 = vpop.permute.xlu0 %6599
      %v6633 = vsel %vm1300, %v5510, %v5833
      %v6634 = vsel %vm1300, %v5437, %v5835
      %v6635 = vsel %vm1300, %v5511, %v5837
      %v6636 = vsel %vm1300, %v5440, %v5839
      %v6637 = vsel %vm1300, %v5512, %v5841
      %v6638 = vsel %vm1300, %v5443, %v5843
      %v6639 = vsel %vm1300, %v5513, %v5845
      %v6640 = vsel %vm1300, %v5446, %v5847
      %v6641 = vsel %vm1300, %v5514, %v5849
      %v6642 = vsel %vm1300, %v5449, %v5851
      %v6643 = vsel %vm1300, %v5515, %v5853
      %v6644 = vsel %vm1300, %v5452, %v5855
      %v6645 = vsel %vm1300, %v5516, %v5857
      %v6646 = vsel %vm1300, %v5455, %v5859
      %v6647 = vsel %vm1300, %v5517, %v5861
      %v6648 = vsel %vm1300, %v5458, %v5863
      %v6649 = vsel %vm1300, %v5518, %v5865
      %v6650 = vsel %vm1300, %v5461, %v5867
      %v6651 = vsel %vm1300, %v5519, %v5869
      %v6652 = vsel %vm1300, %v5464, %v5871
      %v6653 = vsel %vm1300, %v5520, %v5873
      %v6654 = vsel %vm1300, %v5467, %v5875
      %v6655 = vsel %vm1300, %v5521, %v5877
      %v6656 = vsel %vm1300, %v5470, %v5879
      %v6657 = vsel %vm1300, %v5522, %v5881
      %v6658 = vsel %vm1300, %v5473, %v5883
      %v6659 = vsel %vm1300, %v5523, %v5885
      %v6660 = vsel %vm1300, %v5476, %v5887
      %v6661 = vsel %vm1300, %v5524, %v5889
      %v6662 = vsel %vm1300, %v5479, %v5891
      %v6663 = vsel %vm1333, %v6633, %v5938
      %v6664 = vsel %vm1333, %v6634, %v5940
      %v6665 = vsel %vm1333, %v6635, %v5942
      %v6666 = vsel %vm1333, %v6636, %v5944
      %v6667 = vsel %vm1333, %v6637, %v5946
      %v6668 = vsel %vm1333, %v6638, %v5948
      %v6669 = vsel %vm1333, %v6639, %v5950
      %v6670 = vsel %vm1333, %v6640, %v5952
      %v6671 = vsel %vm1333, %v6641, %v5954
      %v6672 = vsel %vm1333, %v6642, %v5956
      %v6673 = vsel %vm1333, %v6643, %v5958
      %v6674 = vsel %vm1333, %v6644, %v5960
      %v6675 = vsel %vm1333, %v6645, %v5962
      %v6676 = vsel %vm1333, %v6646, %v5964
      %v6677 = vsel %vm1333, %v6647, %v5966
      %v6678 = vsel %vm1333, %v6648, %v5968
      %v6679 = vsel %vm1333, %v6649, %v5970
      %v6680 = vsel %vm1333, %v6650, %v5972
      %v6681 = vsel %vm1333, %v6651, %v5974
      %v6682 = vsel %vm1333, %v6652, %v5976
      %v6683 = vsel %vm1333, %v6653, %v5978
      %v6684 = vsel %vm1333, %v6654, %v5980
      %v6685 = vsel %vm1333, %v6655, %v5982
      %v6686 = vsel %vm1333, %v6656, %v5984
      %v6687 = vsel %vm1333, %v6657, %v5986
      %v6688 = vsel %vm1333, %v6658, %v5988
      %v6689 = vsel %vm1333, %v6659, %v5990
      %v6690 = vsel %vm1333, %v6660, %v5992
      %v6691 = vsel %vm1333, %v6661, %v5994
      %v6692 = vsel %vm1333, %v6662, %v5996
      %v6693 = vsel %vm1366, %v1334, %v6044
      %v6694 = vsel %vm1366, %v1335, %v6046
      %v6695 = vsel %vm1366, %v6663, %v6048
      %v6696 = vsel %vm1366, %v6664, %v6050
      %v6697 = vsel %vm1366, %v6665, %v6052
      %v6698 = vsel %vm1366, %v6666, %v6054
      %v6699 = vsel %vm1366, %v6667, %v6056
      %v6700 = vsel %vm1366, %v6668, %v6058
      %v6701 = vsel %vm1366, %v6669, %v6060
      %v6702 = vsel %vm1366, %v6670, %v6062
      %v6703 = vsel %vm1366, %v6671, %v6064
      %v6704 = vsel %vm1366, %v6672, %v6066
      %v6705 = vsel %vm1366, %v6673, %v6068
      %v6706 = vsel %vm1366, %v6674, %v6070
      %v6707 = vsel %vm1366, %v6675, %v6072
      %v6708 = vsel %vm1366, %v6676, %v6074
      %v6709 = vsel %vm1366, %v6677, %v6076
      %v6710 = vsel %vm1366, %v6678, %v6078
      %v6711 = vsel %vm1366, %v6679, %v6080
      %v6712 = vsel %vm1366, %v6680, %v6082
      %v6713 = vsel %vm1366, %v6681, %v6084
      %v6714 = vsel %vm1366, %v6682, %v6086
      %v6715 = vsel %vm1366, %v6683, %v6088
      %v6716 = vsel %vm1366, %v6684, %v6090
      %v6717 = vsel %vm1366, %v6685, %v6092
      %v6718 = vsel %vm1366, %v6686, %v6094
      %v6719 = vsel %vm1366, %v6687, %v6096
      %v6720 = vsel %vm1366, %v6688, %v6098
      %v6721 = vsel %vm1366, %v6689, %v6100
      %v6722 = vsel %vm1366, %v6690, %v6102
      %v6723 = vsel %vm1366, %v6691, %v6104
      %v6724 = vsel %vm1366, %v6692, %v6106
      %v6725 = vsel %vm1399, %v6693, %v6140
      %v6726 = vsel %vm1399, %v6694, %v6142
      %v6727 = vsel %vm1399, %v6695, %v6144
      %v6728 = vsel %vm1399, %v6696, %v6146
      %v6729 = vsel %vm1399, %v6697, %v6148
      %v6730 = vsel %vm1399, %v6698, %v6150
      %v6731 = vsel %vm1399, %v6699, %v6152
      %v6732 = vsel %vm1399, %v6700, %v6154
      %v6733 = vsel %vm1399, %v6701, %v6156
      %v6734 = vsel %vm1399, %v6702, %v6158
      %v6735 = vsel %vm1399, %v6703, %v6160
      %v6736 = vsel %vm1399, %v6704, %v6162
      %v6737 = vsel %vm1399, %v6705, %v6164
      %v6738 = vsel %vm1399, %v6706, %v6166
      %v6739 = vsel %vm1399, %v6707, %v6168
      %v6740 = vsel %vm1399, %v6708, %v6170
      %v6741 = vsel %vm1399, %v6709, %v6172
      %v6742 = vsel %vm1399, %v6710, %v6174
      %v6743 = vsel %vm1399, %v6711, %v6176
      %v6744 = vsel %vm1399, %v6712, %v6178
      %v6745 = vsel %vm1399, %v6713, %v6180
      %v6746 = vsel %vm1399, %v6714, %v6182
      %v6747 = vsel %vm1399, %v6715, %v6184
      %v6748 = vsel %vm1399, %v6716, %v6186
      %v6749 = vsel %vm1399, %v6717, %v6188
      %v6750 = vsel %vm1399, %v6718, %v6190
      %v6751 = vsel %vm1399, %v6719, %v6192
      %v6752 = vsel %vm1399, %v6720, %v6194
      %v6753 = vsel %vm1399, %v6721, %v6196
      %v6754 = vsel %vm1399, %v6722, %v6198
      %v6755 = vsel %vm1399, %v6723, %v6200
      %v6756 = vsel %vm1399, %v6724, %v6202
      %v6757 = vsel %vm1432, %v6725, %v6252
      %v6758 = vsel %vm1432, %v6726, %v6254
      %v6759 = vsel %vm1432, %v6727, %v6256
      %v6760 = vsel %vm1432, %v6728, %v6258
      %v6761 = vsel %vm1432, %v6729, %v6260
      %v6762 = vsel %vm1432, %v6730, %v6262
      %v6763 = vsel %vm1432, %v6731, %v6264
      %v6764 = vsel %vm1432, %v6732, %v6266
      %v6765 = vsel %vm1432, %v6733, %v6268
      %v6766 = vsel %vm1432, %v6734, %v6270
      %v6767 = vsel %vm1432, %v6735, %v6272
      %v6768 = vsel %vm1432, %v6736, %v6274
      %v6769 = vsel %vm1432, %v6737, %v6276
      %v6770 = vsel %vm1432, %v6738, %v6278
      %v6771 = vsel %vm1432, %v6739, %v6280
      %v6772 = vsel %vm1432, %v6740, %v6282
      %v6773 = vsel %vm1432, %v6741, %v6284
      %v6774 = vsel %vm1432, %v6742, %v6286
      %v6775 = vsel %vm1432, %v6743, %v6288
      %v6776 = vsel %vm1432, %v6744, %v6290
      %v6777 = vsel %vm1432, %v6745, %v6292
      %v6778 = vsel %vm1432, %v6746, %v6294
      %v6779 = vsel %vm1432, %v6747, %v6296
      %v6780 = vsel %vm1432, %v6748, %v6298
      %v6781 = vsel %vm1432, %v6749, %v6300
      %v6782 = vsel %vm1432, %v6750, %v6302
      %v6783 = vsel %vm1432, %v6751, %v6304
      %v6784 = vsel %vm1432, %v6752, %v6306
      %v6785 = vsel %vm1432, %v6753, %v6308
      %v6786 = vsel %vm1432, %v6754, %v6310
      %v6787 = vsel %vm1432, %v6755, %v6312
      %v6788 = vsel %vm1432, %v6756, %v6314
      %v6789 = vsel %vm1465, %v6757, %v6349
      %v6790 = vsel %vm1465, %v6758, %v6351
      %v6791 = vsel %vm1465, %v6759, %v6353
      %v6792 = vsel %vm1465, %v6760, %v6355
      %v6793 = vsel %vm1465, %v6761, %v6357
      %v6794 = vsel %vm1465, %v6762, %v6359
      %v6795 = vsel %vm1465, %v6763, %v6361
      %v6796 = vsel %vm1465, %v6764, %v6363
      %v6797 = vsel %vm1465, %v6765, %v6365
      %v6798 = vsel %vm1465, %v6766, %v6367
      %v6799 = vsel %vm1465, %v6767, %v6369
      %v6800 = vsel %vm1465, %v6768, %v6371
      %v6801 = vsel %vm1465, %v6769, %v6373
      %v6802 = vsel %vm1465, %v6770, %v6375
      %v6803 = vsel %vm1465, %v6771, %v6377
      %v6804 = vsel %vm1465, %v6772, %v6379
      %v6805 = vsel %vm1465, %v6773, %v6381
      %v6806 = vsel %vm1465, %v6774, %v6383
      %v6807 = vsel %vm1465, %v6775, %v6385
      %v6808 = vsel %vm1465, %v6776, %v6387
      %v6809 = vsel %vm1465, %v6777, %v6389
      %v6810 = vsel %vm1465, %v6778, %v6391
      %v6811 = vsel %vm1465, %v6779, %v6393
      %v6812 = vsel %vm1465, %v6780, %v6395
      %v6813 = vsel %vm1465, %v6781, %v6397
      %v6814 = vsel %vm1465, %v6782, %v6399
      %v6815 = vsel %vm1465, %v6783, %v6401
      %v6816 = vsel %vm1465, %v6784, %v6403
      %v6817 = vsel %vm1465, %v6785, %v6405
      %v6818 = vsel %vm1465, %v6786, %v6407
      %v6819 = vsel %vm1465, %v6787, %v6409
      %v6820 = vsel %vm1465, %v6788, %v6411
      %v6821 = vsel %vm1498, %v6789, %v6445
      %v6822 = vsel %vm1498, %v6790, %v6447
      %v6823 = vsel %vm1498, %v6791, %v6449
      %v6824 = vsel %vm1498, %v6792, %v6451
      %v6825 = vsel %vm1498, %v6793, %v6453
      %v6826 = vsel %vm1498, %v6794, %v6455
      %v6827 = vsel %vm1498, %v6795, %v6457
      %v6828 = vsel %vm1498, %v6796, %v6459
      %v6829 = vsel %vm1498, %v6797, %v6461
      %v6830 = vsel %vm1498, %v6798, %v6463
      %v6831 = vsel %vm1498, %v6799, %v6465
      %v6832 = vsel %vm1498, %v6800, %v6467
      %v6833 = vsel %vm1498, %v6801, %v6469
      %v6834 = vsel %vm1498, %v6802, %v6471
      %v6835 = vsel %vm1498, %v6803, %v6473
      %v6836 = vsel %vm1498, %v6804, %v6475
      %v6837 = vsel %vm1498, %v6805, %v6477
      %v6838 = vsel %vm1498, %v6806, %v6479
      %v6839 = vsel %vm1498, %v6807, %v6481
      %v6840 = vsel %vm1498, %v6808, %v6483
      %v6841 = vsel %vm1498, %v6809, %v6485
      %v6842 = vsel %vm1498, %v6810, %v6487
      %v6843 = vsel %vm1498, %v6811, %v6489
      %v6844 = vsel %vm1498, %v6812, %v6491
      %v6845 = vsel %vm1498, %v6813, %v6493
      %v6846 = vsel %vm1498, %v6814, %v6495
      %v6847 = vsel %vm1498, %v6815, %v6497
      %v6848 = vsel %vm1498, %v6816, %v6499
      %v6849 = vsel %vm1498, %v6817, %v6501
      %v6850 = vsel %vm1498, %v6818, %v6503
      %v6851 = vsel %vm1498, %v6819, %v6505
      %v6852 = vsel %vm1498, %v6820, %v6505
      %v6853 = vsel %vm1531, %v6821, %v6538
      %v6854 = vsel %vm1531, %v6822, %v6540
      %v6855 = vsel %vm1531, %v6823, %v6542
      %v6856 = vsel %vm1531, %v6824, %v6544
      %v6857 = vsel %vm1531, %v6825, %v6546
      %v6858 = vsel %vm1531, %v6826, %v6548
      %v6859 = vsel %vm1531, %v6827, %v6550
      %v6860 = vsel %vm1531, %v6828, %v6552
      %v6861 = vsel %vm1531, %v6829, %v6554
      %v6862 = vsel %vm1531, %v6830, %v6556
      %v6863 = vsel %vm1531, %v6831, %v6558
      %v6864 = vsel %vm1531, %v6832, %v6560
      %v6865 = vsel %vm1531, %v6833, %v6562
      %v6866 = vsel %vm1531, %v6834, %v6564
      %v6867 = vsel %vm1531, %v6835, %v6566
      %v6868 = vsel %vm1531, %v6836, %v6568
      %v6869 = vsel %vm1531, %v6837, %v6570
      %v6870 = vsel %vm1531, %v6838, %v6572
      %v6871 = vsel %vm1531, %v6839, %v6574
      %v6872 = vsel %vm1531, %v6840, %v6576
      %v6873 = vsel %vm1531, %v6841, %v6578
      %v6874 = vsel %vm1531, %v6842, %v6580
      %v6875 = vsel %vm1531, %v6843, %v6582
      %v6876 = vsel %vm1531, %v6844, %v6584
      %v6877 = vsel %vm1531, %v6845, %v6586
      %v6878 = vsel %vm1531, %v6846, %v6588
      %v6879 = vsel %vm1531, %v6847, %v6590
      %v6880 = vsel %vm1531, %v6848, %v6592
      %v6881 = vsel %vm1531, %v6849, %v6594
      %v6882 = vsel %vm1531, %v6850, %v6596
      %v6883 = vsel %vm1531, %v6851, %v6598
      %v6884 = vsel %vm1531, %v6852, %v6600
      %v6885 = vpack.c.bf16 %v6854, %v6853
      %v6886 = vpack.c.bf16 %v6856, %v6855
      %v6887 = vpack.c.bf16 %v6858, %v6857
      %v6888 = vpack.c.bf16 %v6860, %v6859
      %v6889 = vpack.c.bf16 %v6862, %v6861
      %v6890 = vpack.c.bf16 %v6864, %v6863
      %v6891 = vpack.c.bf16 %v6866, %v6865
      %v6892 = vpack.c.bf16 %v6868, %v6867
      %v6893 = vpack.c.bf16 %v6870, %v6869
      %v6894 = vpack.c.bf16 %v6872, %v6871
      %v6895 = vpack.c.bf16 %v6874, %v6873
      %v6896 = vpack.c.bf16 %v6876, %v6875
      %v6897 = vpack.c.bf16 %v6878, %v6877
      %v6898 = vpack.c.bf16 %v6880, %v6879
      %v6899 = vpack.c.bf16 %v6882, %v6881
      %v6900 = vpack.c.bf16 %v6884, %v6883
      %v6901 = vld [vmem:[%s4] sm:$0xf]
      %v6902 = vld [vmem:[%s4 + $0x4] sm:$0xf]
      %v6903 = vld [vmem:[%s4 + $0x8] sm:$0xf]
      %v6904 = vld [vmem:[%s4 + $0xc] sm:$0xf]
      %v6905 = vld [vmem:[%s4 + $0x10] sm:$0x3]
      %v6911 = vunpack.c.l.b16 %v6901
      %v6912 = vunpack.c.l.b16 %v6902
      %v6913 = vunpack.c.l.b16 %v6903
      %v6914 = vunpack.c.l.b16 %v6904
      %v6915 = vunpack.c.l.b16 %v6905
      %v6916 = vpack.c.b16 %v6912, %v6911
      %v6917 = vpack.c.b16 %v6914, %v6913
      %v6918 = vpack.c.b16 %v6915, %v6915
      %v6922 = vsel %vm1660, %v6885, 0
      %v6925 = vsel %vm1660, %v6886, 0
      %v6928 = vsel %vm1660, %v6887, 0
      %v6931 = vsel %vm1660, %v6888, 0
      %v6934 = vsel %vm1660, %v6889, 0
      %v6937 = vsel %vm1660, %v6890, 0
      %v6940 = vsel %vm1660, %v6891, 0
      %v6943 = vsel %vm1660, %v6892, 0
      %v6946 = vsel %vm1660, %v6893, 0
      %v6949 = vsel %vm1660, %v6894, 0
      %v6952 = vsel %vm1660, %v6895, 0
      %v6955 = vsel %vm1660, %v6896, 0
      %v6958 = vsel %vm1660, %v6897, 0
      %v6961 = vsel %vm1660, %v6898, 0
      %v6964 = vsel %vm1660, %v6899, 0
      %v6967 = vsel %vm1660, %v6900, 0
      %v6970 = vsel %vm1709, %v6918, 0
      %6972 = vmatprep.subr.bf16.mxu0 0
      %6973 = vmatpush1.bf16.msra.mxu0 %v6916
      %6974 = vmatprep.subr.bf16.mxu0 0
      %6975 = vmatpush1.bf16.msra.mxu0 %v6917
      %6976 = vmatprep.subr.bf16.mxu0 0
      %6977 = vmatpush1.bf16.msra.mxu0 %v6970
      %6978 = vmatprep.subr.bf16.mxu0 0
      %6979 = vmatpush1.bf16.msra.mxu0 0
      %6980 = vmatprep.subr.bf16.mxu0 0
      %6981 = vmatpush1.bf16.msra.mxu0 0
      %6982 = vmatprep.subr.bf16.mxu0 0
      %6983 = vmatpush1.bf16.msra.mxu0 0
      %6984 = vmatprep.subr.bf16.mxu0 0
      %6985 = vmatpush1.bf16.msra.mxu0 0
      %6986 = vmatprep.subr.bf16.mxu0 0
      %6987 = vmatpush1.bf16.msra.mxu0 0
      %6988 = vmatprep.subr.bf16.mxu0 0
      %6989 = vmatpush1.bf16.msra.mxu0 0
      %6990 = vmatprep.subr.bf16.mxu0 0
      %6991 = vmatpush1.bf16.msra.mxu0 0
      %6992 = vmatprep.subr.bf16.mxu0 0
      %6993 = vmatpush1.bf16.msra.mxu0 0
      %6994 = vmatprep.subr.bf16.mxu0 0
      %6995 = vmatpush1.bf16.msra.mxu0 0
      %6996 = vmatprep.subr.bf16.mxu0 0
      %6997 = vmatpush1.bf16.msra.mxu0 0
      %6998 = vmatprep.subr.bf16.mxu0 0
      %6999 = vmatpush1.bf16.msra.mxu0 0
      %7000 = vmatprep.subr.bf16.mxu0 0
      %7001 = vmatpush1.bf16.msra.mxu0 0
      %7002 = vmatprep.subr.bf16.mxu0 0
      %7003 = vmatpush1.bf16.msra.mxu0 0
      %7004 = vmatprep.mubr.bf16.mxu0 0
      %7005 = vmatmul.mubr.bf16.gmra.mrb[0].mxu0 %v6922
      %v7006 = vpop.f32.mrb[0].mxu0
      %v7007 = vadd.f32 0.0, %v7006
      %v7008 = vpop.f32.mrb[0].mxu0
      %v7009 = vpop.f32.mrb[0].mxu0
      %v7010 = vadd.f32 0.0, %v7009
      %v7011 = vpop.f32.mrb[0].mxu0
      %7012 = vmatprep.mubr.bf16.mxu0 0
      %7013 = vmatmul.mubr.bf16.gmra.mrb[0].mxu0 %v6925
      %v7014 = vpop.f32.mrb[0].mxu0
      %v7015 = vadd.f32 0.0, %v7014
      %v7016 = vpop.f32.mrb[0].mxu0
      %v7017 = vpop.f32.mrb[0].mxu0
      %v7018 = vadd.f32 0.0, %v7017
      %v7019 = vpop.f32.mrb[0].mxu0
      %7020 = vmatprep.mubr.bf16.mxu0 0
      %7021 = vmatmul.mubr.bf16.gmra.mrb[0].mxu0 %v6928
      %v7022 = vpop.f32.mrb[0].mxu0
      %v7023 = vadd.f32 0.0, %v7022
      %v7024 = vpop.f32.mrb[0].mxu0
      %v7025 = vpop.f32.mrb[0].mxu0
      %v7026 = vadd.f32 0.0, %v7025
      %v7027 = vpop.f32.mrb[0].mxu0
      %7028 = vmatprep.mubr.bf16.mxu0 0
      %7029 = vmatmul.mubr.bf16.gmra.mrb[0].mxu0 %v6931
      %v7030 = vpop.f32.mrb[0].mxu0
      %v7031 = vadd.f32 0.0, %v7030
      %v7032 = vpop.f32.mrb[0].mxu0
      %v7033 = vpop.f32.mrb[0].mxu0
      %v7034 = vadd.f32 0.0, %v7033
      %v7035 = vpop.f32.mrb[0].mxu0
      %7036 = vmatprep.mubr.bf16.mxu0 0
      %7037 = vmatmul.mubr.bf16.gmra.mrb[0].mxu0 %v6934
      %v7038 = vpop.f32.mrb[0].mxu0
      %v7039 = vadd.f32 0.0, %v7038
      %v7040 = vpop.f32.mrb[0].mxu0
      %v7041 = vpop.f32.mrb[0].mxu0
      %v7042 = vadd.f32 0.0, %v7041
      %v7043 = vpop.f32.mrb[0].mxu0
      %7044 = vmatprep.mubr.bf16.mxu0 0
      %7045 = vmatmul.mubr.bf16.gmra.mrb[0].mxu0 %v6937
      %v7046 = vpop.f32.mrb[0].mxu0
      %v7047 = vadd.f32 0.0, %v7046
      %v7048 = vpop.f32.mrb[0].mxu0
      %v7049 = vpop.f32.mrb[0].mxu0
      %v7050 = vadd.f32 0.0, %v7049
      %v7051 = vpop.f32.mrb[0].mxu0
      %7052 = vmatprep.mubr.bf16.mxu0 0
      %7053 = vmatmul.mubr.bf16.gmra.mrb[0].mxu0 %v6940
      %v7054 = vpop.f32.mrb[0].mxu0
      %v7055 = vadd.f32 0.0, %v7054
      %v7056 = vpop.f32.mrb[0].mxu0
      %v7057 = vpop.f32.mrb[0].mxu0
      %v7058 = vadd.f32 0.0, %v7057
      %v7059 = vpop.f32.mrb[0].mxu0
      %7060 = vmatprep.mubr.bf16.mxu0 0
      %7061 = vmatmul.mubr.bf16.gmra.mrb[0].mxu0 %v6943
      %v7062 = vpop.f32.mrb[0].mxu0
      %v7063 = vadd.f32 0.0, %v7062
      %v7064 = vpop.f32.mrb[0].mxu0
      %v7065 = vpop.f32.mrb[0].mxu0
      %v7066 = vadd.f32 0.0, %v7065
      %v7067 = vpop.f32.mrb[0].mxu0
      %7068 = vmatprep.mubr.bf16.mxu0 0
      %7069 = vmatmul.mubr.bf16.gmra.mrb[0].mxu0 %v6946
      %v7070 = vpop.f32.mrb[0].mxu0
      %v7071 = vadd.f32 0.0, %v7070
      %v7072 = vpop.f32.mrb[0].mxu0
      %v7073 = vpop.f32.mrb[0].mxu0
      %v7074 = vadd.f32 0.0, %v7073
      %v7075 = vpop.f32.mrb[0].mxu0
      %7076 = vmatprep.mubr.bf16.mxu0 0
      %7077 = vmatmul.mubr.bf16.gmra.mrb[0].mxu0 %v6949
      %v7078 = vpop.f32.mrb[0].mxu0
      %v7079 = vadd.f32 0.0, %v7078
      %v7080 = vpop.f32.mrb[0].mxu0
      %v7081 = vpop.f32.mrb[0].mxu0
      %v7082 = vadd.f32 0.0, %v7081
      %v7083 = vpop.f32.mrb[0].mxu0
      %7084 = vmatprep.mubr.bf16.mxu0 0
      %7085 = vmatmul.mubr.bf16.gmra.mrb[0].mxu0 %v6952
      %v7086 = vpop.f32.mrb[0].mxu0
      %v7087 = vadd.f32 0.0, %v7086
      %v7088 = vpop.f32.mrb[0].mxu0
      %v7089 = vpop.f32.mrb[0].mxu0
      %v7090 = vadd.f32 0.0, %v7089
      %v7091 = vpop.f32.mrb[0].mxu0
      %7092 = vmatprep.mubr.bf16.mxu0 0
      %7093 = vmatmul.mubr.bf16.gmra.mrb[0].mxu0 %v6955
      %v7094 = vpop.f32.mrb[0].mxu0
      %v7095 = vadd.f32 0.0, %v7094
      %v7096 = vpop.f32.mrb[0].mxu0
      %v7097 = vpop.f32.mrb[0].mxu0
      %v7098 = vadd.f32 0.0, %v7097
      %v7099 = vpop.f32.mrb[0].mxu0
      %7100 = vmatprep.mubr.bf16.mxu0 0
      %7101 = vmatmul.mubr.bf16.gmra.mrb[0].mxu0 %v6958
      %v7102 = vpop.f32.mrb[0].mxu0
      %v7103 = vadd.f32 0.0, %v7102
      %v7104 = vpop.f32.mrb[0].mxu0
      %v7105 = vpop.f32.mrb[0].mxu0
      %v7106 = vadd.f32 0.0, %v7105
      %v7107 = vpop.f32.mrb[0].mxu0
      %7108 = vmatprep.mubr.bf16.mxu0 0
      %7109 = vmatmul.mubr.bf16.gmra.mrb[0].mxu0 %v6961
      %v7110 = vpop.f32.mrb[0].mxu0
      %v7111 = vadd.f32 0.0, %v7110
      %v7112 = vpop.f32.mrb[0].mxu0
      %v7113 = vpop.f32.mrb[0].mxu0
      %v7114 = vadd.f32 0.0, %v7113
      %v7115 = vpop.f32.mrb[0].mxu0
      %7116 = vmatprep.mubr.bf16.mxu0 0
      %7117 = vmatmul.mubr.bf16.gmra.mrb[0].mxu0 %v6964
      %v7118 = vpop.f32.mrb[0].mxu0
      %v7119 = vadd.f32 0.0, %v7118
      %v7120 = vpop.f32.mrb[0].mxu0
      %v7121 = vpop.f32.mrb[0].mxu0
      %v7122 = vadd.f32 0.0, %v7121
      %v7123 = vpop.f32.mrb[0].mxu0
      %7124 = vmatprep.mubr.bf16.mxu0 0
      %7125 = vmatmul.mubr.bf16.gmra.mrb[0].mxu0 %v6967
      %v7126 = vpop.f32.mrb[0].mxu0
      %v7127 = vadd.f32 0.0, %v7126
      %v7128 = vpop.f32.mrb[0].mxu0
      %v7129 = vpop.f32.mrb[0].mxu0
      %v7130 = vadd.f32 0.0, %v7129
      %v7131 = vpop.f32.mrb[0].mxu0
      %7132 = vdwg.mxu0
      %v7133 = vld [vmem:[%s5 + $0x2] sm:$0x1]
      %v7134 = vlaneseq
      %v7135 = vshrl.u32 %v7134, 7
      %v7136 = vsub.s32 0, %v7135
      %v7137 = vrot.slane %v7133, %v7136
      %v7138 = vmul.f32 %v7007, %v7137
      %v7139 = vmul.f32 %v7010, %v7137
      %v7140 = vmul.f32 %v7015, %v7137
      %v7141 = vmul.f32 %v7018, %v7137
      %v7142 = vmul.f32 %v7023, %v7137
      %v7143 = vmul.f32 %v7026, %v7137
      %v7144 = vmul.f32 %v7031, %v7137
      %v7145 = vmul.f32 %v7034, %v7137
      %v7146 = vmul.f32 %v7039, %v7137
      %v7147 = vmul.f32 %v7042, %v7137
      %v7148 = vmul.f32 %v7047, %v7137
      %v7149 = vmul.f32 %v7050, %v7137
      %v7150 = vmul.f32 %v7055, %v7137
      %v7151 = vmul.f32 %v7058, %v7137
      %v7152 = vmul.f32 %v7063, %v7137
      %v7153 = vmul.f32 %v7066, %v7137
      %v7154 = vmul.f32 %v7071, %v7137
      %v7155 = vmul.f32 %v7074, %v7137
      %v7156 = vmul.f32 %v7079, %v7137
      %v7157 = vmul.f32 %v7082, %v7137
      %v7158 = vmul.f32 %v7087, %v7137
      %v7159 = vmul.f32 %v7090, %v7137
      %v7160 = vmul.f32 %v7095, %v7137
      %v7161 = vmul.f32 %v7098, %v7137
      %v7162 = vmul.f32 %v7103, %v7137
      %v7163 = vmul.f32 %v7106, %v7137
      %v7164 = vmul.f32 %v7111, %v7137
      %v7165 = vmul.f32 %v7114, %v7137
      %v7166 = vmul.f32 %v7119, %v7137
      %v7167 = vmul.f32 %v7122, %v7137
      %v7168 = vmul.f32 %v7127, %v7137
      %v7169 = vmul.f32 %v7130, %v7137
      %v7170 = vld [vmem:[%s5 + $0x3] sm:$0x1]
      %v7171 = vlaneseq
      %v7172 = vshrl.u32 %v7171, 7
      %v7173 = vsub.s32 0, %v7172
      %v7174 = vrot.slane %v7170, %v7173
      %v7175 = vadd.f32 %v7138, %v7174
      %v7176 = vadd.f32 %v7139, %v7174
      %v7177 = vadd.f32 %v7140, %v7174
      %v7178 = vadd.f32 %v7141, %v7174
      %v7179 = vadd.f32 %v7142, %v7174
      %v7180 = vadd.f32 %v7143, %v7174
      %v7181 = vadd.f32 %v7144, %v7174
      %v7182 = vadd.f32 %v7145, %v7174
      %v7183 = vadd.f32 %v7146, %v7174
      %v7184 = vadd.f32 %v7147, %v7174
      %v7185 = vadd.f32 %v7148, %v7174
      %v7186 = vadd.f32 %v7149, %v7174
      %v7187 = vadd.f32 %v7150, %v7174
      %v7188 = vadd.f32 %v7151, %v7174
      %v7189 = vadd.f32 %v7152, %v7174
      %v7190 = vadd.f32 %v7153, %v7174
      %v7191 = vadd.f32 %v7154, %v7174
      %v7192 = vadd.f32 %v7155, %v7174
      %v7193 = vadd.f32 %v7156, %v7174
      %v7194 = vadd.f32 %v7157, %v7174
      %v7195 = vadd.f32 %v7158, %v7174
      %v7196 = vadd.f32 %v7159, %v7174
      %v7197 = vadd.f32 %v7160, %v7174
      %v7198 = vadd.f32 %v7161, %v7174
      %v7199 = vadd.f32 %v7162, %v7174
      %v7200 = vadd.f32 %v7163, %v7174
      %v7201 = vadd.f32 %v7164, %v7174
      %v7202 = vadd.f32 %v7165, %v7174
      %v7203 = vadd.f32 %v7166, %v7174
      %v7204 = vadd.f32 %v7167, %v7174
      %v7205 = vadd.f32 %v7168, %v7174
      %v7206 = vadd.f32 %v7169, %v7174
      %v7207 = vmax.f32 %v7175, 0.0
      %v7208 = vmax.f32 %v7176, 0.0
      %v7209 = vmax.f32 %v7177, 0.0
      %v7210 = vmax.f32 %v7178, 0.0
      %v7211 = vmax.f32 %v7179, 0.0
      %v7212 = vmax.f32 %v7180, 0.0
      %v7213 = vmax.f32 %v7181, 0.0
      %v7214 = vmax.f32 %v7182, 0.0
      %v7215 = vmax.f32 %v7183, 0.0
      %v7216 = vmax.f32 %v7184, 0.0
      %v7217 = vmax.f32 %v7185, 0.0
      %v7218 = vmax.f32 %v7186, 0.0
      %v7219 = vmax.f32 %v7187, 0.0
      %v7220 = vmax.f32 %v7188, 0.0
      %v7221 = vmax.f32 %v7189, 0.0
      %v7222 = vmax.f32 %v7190, 0.0
      %v7223 = vmax.f32 %v7191, 0.0
      %v7224 = vmax.f32 %v7192, 0.0
      %v7225 = vmax.f32 %v7193, 0.0
      %v7226 = vmax.f32 %v7194, 0.0
      %v7227 = vmax.f32 %v7195, 0.0
      %v7228 = vmax.f32 %v7196, 0.0
      %v7229 = vmax.f32 %v7197, 0.0
      %v7230 = vmax.f32 %v7198, 0.0
      %v7231 = vmax.f32 %v7199, 0.0
      %v7232 = vmax.f32 %v7200, 0.0
      %v7233 = vmax.f32 %v7201, 0.0
      %v7234 = vmax.f32 %v7202, 0.0
      %v7235 = vmax.f32 %v7203, 0.0
      %v7236 = vmax.f32 %v7204, 0.0
      %v7237 = vmax.f32 %v7205, 0.0
      %v7238 = vmax.f32 %v7206, 0.0
      %7239 = vst.msk [vmem:[%s251] sm:$0xff] %vm1300, %v7207
      %7240 = vst.msk [vmem:[%s251 + $0x8] sm:$0xff] %vm1300, %v7208
      %7241 = vst.msk [vmem:[%s251 + $0x10] sm:$0xff] %vm1300, %v7209
      %7242 = vst.msk [vmem:[%s251 + $0x18] sm:$0xff] %vm1300, %v7210
      %7243 = vst.msk [vmem:[%s251 + $0x20] sm:$0xff] %vm1300, %v7211
      %7244 = vst.msk [vmem:[%s251 + $0x28] sm:$0xff] %vm1300, %v7212
      %7245 = vst.msk [vmem:[%s251 + $0x30] sm:$0xff] %vm1300, %v7213
      %7246 = vst.msk [vmem:[%s251 + $0x38] sm:$0xff] %vm1300, %v7214
      %7247 = vst.msk [vmem:[%s251 + $0x40] sm:$0xff] %vm1300, %v7215
      %7248 = vst.msk [vmem:[%s251 + $0x48] sm:$0xff] %vm1300, %v7216
      %7249 = vst.msk [vmem:[%s251 + $0x50] sm:$0xff] %vm1300, %v7217
      %7250 = vst.msk [vmem:[%s251 + $0x58] sm:$0xff] %vm1300, %v7218
      %7251 = vst.msk [vmem:[%s251 + $0x60] sm:$0xff] %vm1300, %v7219
      %7252 = vst.msk [vmem:[%s251 + $0x68] sm:$0xff] %vm1300, %v7220
      %7253 = vst.msk [vmem:[%s251 + $0x70] sm:$0xff] %vm1300, %v7221
      %7254 = vst.msk [vmem:[%s251 + $0x78] sm:$0xff] %vm1300, %v7222
      %7255 = vst.msk [vmem:[%s251 + $0x80] sm:$0xff] %vm1300, %v7223
      %7256 = vst.msk [vmem:[%s251 + $0x88] sm:$0xff] %vm1300, %v7224
      %7257 = vst.msk [vmem:[%s251 + $0x90] sm:$0xff] %vm1300, %v7225
      %7258 = vst.msk [vmem:[%s251 + $0x98] sm:$0xff] %vm1300, %v7226
      %7259 = vst.msk [vmem:[%s251 + $0xa0] sm:$0xff] %vm1300, %v7227
      %7260 = vst.msk [vmem:[%s251 + $0xa8] sm:$0xff] %vm1300, %v7228
      %7261 = vst.msk [vmem:[%s251 + $0xb0] sm:$0xff] %vm1300, %v7229
      %7262 = vst.msk [vmem:[%s251 + $0xb8] sm:$0xff] %vm1300, %v7230
      %7263 = vst.msk [vmem:[%s251 + $0xc0] sm:$0xff] %vm1300, %v7231
      %7264 = vst.msk [vmem:[%s251 + $0xc8] sm:$0xff] %vm1300, %v7232
      %7265 = vst.msk [vmem:[%s251 + $0xd0] sm:$0xff] %vm1300, %v7233
      %7266 = vst.msk [vmem:[%s251 + $0xd8] sm:$0xff] %vm1300, %v7234
      %7267 = vst.msk [vmem:[%s251 + $0xe0] sm:$0xff] %vm1300, %v7235
      %7268 = vst.msk [vmem:[%s251 + $0xe8] sm:$0xff] %vm1300, %v7236
      %7269 = vst.msk [vmem:[%s251 + $0xf0] sm:$0xff] %vm1300, %v7237
      %7270 = vst.msk [vmem:[%s251 + $0xf8] sm:$0xff] %vm1300, %v7238
      %p7271 = scmp.lt.s32.totalorder %s17, 1
      %s7272 = scalar_select %p7271, %s17, 1
      %s7273 = smul.addr %s7272, 32
      %s7274 = smul.addr %s7273, 8
      %s7275 = scalar_lea.vmem %s6, %s7274
      // Predicated region
      $region45: #{tpu_custom_call.1} parent=43 // pred_check
        %p7276 = pneg %p166
      $region46: #{tpu_custom_call.1} parent=43 // pred_check_branch
        %7278 = sbr.rel (%p7276) target = $region48
      $region47: #{tpu_custom_call.1} parent=43 // pred_region
        _
      $region48: #{tpu_custom_call.1} parent=43 // pred_fallthru
        _
    $region44: #{tpu_custom_call.1} parent=5 // pred_fallthru
      _
    %p7279 = scmp.le.s32.totalorder 2, %s12
    // Predicated region
    $region49: #{tpu_custom_call.1} parent=5 // pred_check
      %p7280 = pneg %p7279
    $region50: #{tpu_custom_call.1} parent=5 // pred_check_branch
      %7282 = sbr.rel (%p7280) target = $region52
    $region51: #{tpu_custom_call.1} parent=5 // pred_region
      %s7283 = ssub.s32 %s12, 2
      // Predicated region
      $region53: #{tpu_custom_call.1} parent=51 // pred_check
        %p7284 = pneg %p172
      $region54: #{tpu_custom_call.1} parent=51 // pred_check_branch
        %7286 = sbr.rel (%p7284) target = $region56
      $region55: #{tpu_custom_call.1} parent=51 // pred_region
        %p7287 = scmp.lt.s32.totalorder %s18, 1
        %s7288 = scalar_select %p7287, %s18, 1
        %s7289 = smul.addr %s7288, 32
        %s7290 = smul.addr %s7289, 8
        %s7291 = scalar_lea.vmem %s6, %s7290
      $region56: #{tpu_custom_call.1} parent=51 // pred_fallthru
        _
    $region52: #{tpu_custom_call.1} parent=5 // pred_fallthru
      _
  $region6: #{tpu_custom_call.1} parent=0 // loop_footer
    %s16 = sadd.s32 1, %s12
  $region7: #{tpu_custom_call.1} parent=0 // loop_footer_branch
    %11 = sbr.rel target = $region3
  $region8: #{tpu_custom_call.1} parent=0 // loop_exit
    _

</llo_original>
